<compile_context>
chip_gen: v7x
topology: tpu7x:2x2x1
jax: 0.10.0
libtpu: 0.0.40
codegen_flags: <defaults>
</compile_context>

<pallas_src>
import math

import jax
import jax.numpy as jnp
from jax import lax
from jax.experimental import pallas as pl
from jax.experimental.pallas import tpu as pltpu


def motion_encoder_kernel(
    xf_ref,       # (Wt, Bb, Din) f32 : forward time chunk  (chunk c)
    xb_ref,       # (Wt, Bb, Din) f32 : backward time chunk (chunk nC-1-c)
    lens_ref,     # (Bb, 1) int32
    win_f_ref,    # (Din, 3H) bf16    : W_emb @ [Wih_r|Wih_z|Wih_n]   (forward)
    bin_f_ref,    # (1, 3H)  f32      : fused input bias (incl. bhh_r, bhh_z)
    whh_f_ref,    # (H, 3H)  bf16     : [Whh_r|Whh_z|Whh_n]           (forward)
    bhhn_f_ref,   # (1, H)   f32      : bhh_n (kept separate)
    h0f_ref,      # (1, H)   f32
    win_b_ref, bin_b_ref, whh_b_ref, bhhn_b_ref, h0b_ref,   # backward direction
    w1f_ref, w1b_ref, b1_ref, gamma_ref, beta_ref, w2_ref, b2_ref,  # output_net
    out_ref,      # (Bb, Dout) f32
    gf_s,         # scratch (Wt, Bb, 3H) f32 : fwd gate input pre-activations
    gb_s,         # scratch (Wt, Bb, 3H) f32 : bwd gate input pre-activations
    hf_s,         # scratch (Bb, H) f32       (persists across time chunks)
    hb_s,         # scratch (Bb, H) f32
):
    Wt, Bb, Din = xf_ref.shape
    H = whh_f_ref.shape[0]
    c = pl.program_id(1)
    n_c = pl.num_programs(1)

    # ---- init hidden state at the first time chunk of each batch block ----
    @pl.when(c == 0)
    def _init():
        hf_s[...] = jnp.broadcast_to(h0f_ref[...], (Bb, H))
        hb_s[...] = jnp.broadcast_to(h0b_ref[...], (Bb, H))

    # ---- per-chunk input projection (embedding folded into GRU Wih) -------
    # One MXU matmul per direction over this chunk's Wt*Bb rows; bf16 operands,
    # f32 accumulation.  Includes all constant biases except bhh_n.
    xf2d = xf_ref[...].reshape(Wt * Bb, Din).astype(jnp.bfloat16)
    xb2d = xb_ref[...].reshape(Wt * Bb, Din).astype(jnp.bfloat16)
    gf = jnp.dot(xf2d, win_f_ref[...], preferred_element_type=jnp.float32) + bin_f_ref[...]
    gb = jnp.dot(xb2d, win_b_ref[...], preferred_element_type=jnp.float32) + bin_b_ref[...]
    gf_s[...] = gf.reshape(Wt, Bb, 3 * H)
    gb_s[...] = gb.reshape(Wt, Bb, 3 * H)

    lens = lens_ref[...]                      # (Bb, 1) int32
    whh_f = whh_f_ref[...]
    whh_b = whh_b_ref[...]
    bhhn_f = bhhn_f_ref[...]
    bhhn_b = bhhn_b_ref[...]
    t0_f = c * Wt                             # first time index of fwd chunk
    t0_b = (n_c - 1 - c) * Wt                 # first time index of bwd chunk

    # ---- GRU cell (PyTorch gate order r, z, n), fused recurrent matmul ----
    def gru_step(gin, h, whh_cat, bhh_n):
        hh = jnp.dot(h.astype(jnp.bfloat16), whh_cat,
                     preferred_element_type=jnp.float32)          # (Bb, 3H)
        rz = jax.nn.sigmoid(gin[:, : 2 * H] + hh[:, : 2 * H])
        r = rz[:, :H]
        z = rz[:, H:]
        n = jnp.tanh(gin[:, 2 * H:] + r * (hh[:, 2 * H:] + bhh_n))
        return (1.0 - z) * n + z * h

    # ---- serial recurrence over this chunk: fwd & bwd interleaved ---------
    def body(j, carry):
        h_f, h_b = carry
        t_f = t0_f + j                 # forward walks the chunk upward
        jb = Wt - 1 - j
        t_b = t0_b + jb                # backward walks its chunk downward
        hf_new = gru_step(gf_s[j], h_f, whh_f, bhhn_f)
        hb_new = gru_step(gb_s[jb], h_b, whh_b, bhhn_b)
        # pack_padded semantics: freeze h outside the valid range
        h_f = jnp.where(t_f < lens, hf_new, h_f)
        h_b = jnp.where(t_b < lens, hb_new, h_b)
        return h_f, h_b

    h_f, h_b = lax.fori_loop(0, Wt, body, (hf_s[...], hb_s[...]), unroll=True)
    hf_s[...] = h_f
    hb_s[...] = h_b

    # ---- output_net at the last time chunk: Linear->LN->LeakyReLU->Linear -
    @pl.when(c == n_c - 1)
    def _final():
        # concat([h_f, h_b], -1) @ W1 == h_f @ W1_f + h_b @ W1_b  (pre-split)
        y = (
            jnp.dot(h_f, w1f_ref[...], preferred_element_type=jnp.float32)
            + jnp.dot(h_b, w1b_ref[...], preferred_element_type=jnp.float32)
            + b1_ref[...]
        )
        mean = jnp.mean(y, axis=-1, keepdims=True)
        var = jnp.mean((y - mean) ** 2, axis=-1, keepdims=True)
        y = (y - mean) * lax.rsqrt(var + 1e-5) * gamma_ref[...] + beta_ref[...]
        y = jnp.where(y > 0, y, 0.2 * y)                   # LeakyReLU(0.2)
        out = jnp.dot(y, w2_ref[...], preferred_element_type=jnp.float32) + b2_ref[...]
        out_ref[...] = out.astype(out_ref.dtype)


# ---------------- wrapper: parameter fusion + pallas_call --------------------
def _fuse_direction(p, wih, whh, bih, bhh):
    """Fold embedding Linear into the GRU input projection for one direction."""
    wih_cat = jnp.concatenate([wih[0], wih[1], wih[2]], axis=-1)   # (H, 3H)
    whh_cat = jnp.concatenate([whh[0], whh[1], whh[2]], axis=-1)   # (H, 3H)
    w_in = p["w_emb"] @ wih_cat                                    # (Din, 3H)
    b_in = (
        p["b_emb"] @ wih_cat
        + jnp.concatenate([bih[0], bih[1], bih[2]], axis=-1)
        + jnp.concatenate([bhh[0], bhh[1], jnp.zeros_like(bhh[2])], axis=-1)
    )                                                              # (1, 3H)
    return w_in, b_in, whh_cat, bhh[2]


def _bytes(shape, dtype):
    n = 1
    for s in shape:
        n *= int(s)
    return n * jnp.dtype(dtype).itemsize


def motion_encoder_forward(inputs, m_lens, params, *, block_b=8, block_t=8):
    """inputs: (B, T, Din) batch-first float32; m_lens: (B,) int (sorted desc)."""
    B, T, Din = inputs.shape
    H = params["w_emb"].shape[1]
    Dout = params["w2"].shape[1]
    bf16 = jnp.bfloat16

    block_b = max(8, ((block_b + 7) // 8) * 8)       # sublane-aligned batch block
    Bpad = ((B + block_b - 1) // block_b) * block_b
    Tpad = ((T + block_t - 1) // block_t) * block_t
    nB = Bpad // block_b
    nC = Tpad // block_t

    # time-major, padded (padded rows/steps are frozen by the t<lens mask)
    x_tm = jnp.transpose(inputs, (1, 0, 2)).astype(jnp.float32)     # (T, B, Din)
    x_tm = jnp.pad(x_tm, ((0, Tpad - T), (0, Bpad - B), (0, 0)))
    lens = jnp.pad(m_lens.astype(jnp.int32), (0, Bpad - B)).reshape(Bpad, 1)

    win_f, bin_f, whh_f, bhhn_f = _fuse_direction(
        params, params["wih_f"], params["whh_f"], params["bih_f"], params["bhh_f"])
    win_b, bin_b, whh_b, bhhn_b = _fuse_direction(
        params, params["wih_b"], params["whh_b"], params["bih_b"], params["bhh_b"])

    # bf16 MXU operands (accumulation stays f32 inside the kernel)
    win_f, whh_f = win_f.astype(bf16), whh_f.astype(bf16)
    win_b, whh_b = win_b.astype(bf16), whh_b.astype(bf16)

    h0_f = params["hidden"][0]                       # (1, H), broadcast in-kernel
    h0_b = params["hidden"][1]
    w1_f = params["w1"][:H]
    w1_b = params["w1"][H:]

    args = (
        x_tm, x_tm, lens,
        win_f, bin_f, whh_f, bhhn_f, h0_f,
        win_b, bin_b, whh_b, bhhn_b, h0_b,
        w1_f, w1_b, params["b1"], params["gamma"], params["beta"],
        params["w2"], params["b2"],
    )

    def rep(a):  # small weights: full block, replicated across the grid
        nd = a.ndim
        return pl.BlockSpec(a.shape, lambda b, c, _nd=nd: (0,) * _nd)

    in_specs = [
        pl.BlockSpec((block_t, block_b, Din), lambda b, c: (c, b, 0)),                    # fwd chunk
        pl.BlockSpec((block_t, block_b, Din), lambda b, c, _n=nC: (_n - 1 - c, b, 0)),    # bwd chunk
        pl.BlockSpec((block_b, 1), lambda b, c: (b, 0)),                                  # lens
    ] + [rep(a) for a in args[3:]]

    out_specs = pl.BlockSpec((block_b, Dout), lambda b, c: (b, 0))

    scratch_shapes = [
        pltpu.VMEM((block_t, block_b, 3 * H), jnp.float32),
        pltpu.VMEM((block_t, block_b, 3 * H), jnp.float32),
        pltpu.VMEM((block_b, H), jnp.float32),
        pltpu.VMEM((block_b, H), jnp.float32),
    ]

    # VMEM budget: double-buffered blocks + weights + scratch, with headroom.
    blk = 2 * _bytes((block_t, block_b, Din), jnp.float32)
    blk += _bytes((block_b, 1), jnp.int32)
    blk += sum(int(a.size) * a.dtype.itemsize for a in args[3:])
    blk += _bytes((block_b, Dout), jnp.float32)
    scr = 2 * _bytes((block_t, block_b, 3 * H), jnp.float32) + 2 * _bytes((block_b, H), jnp.float32)
    vmem_limit = int(min(64 << 20, max(8 << 20, 2 * blk + scr + (2 << 20))))

    out = pl.pallas_call(
        motion_encoder_kernel,
        out_shape=jax.ShapeDtypeStruct((Bpad, Dout), jnp.float32),
        grid=(nB, nC),
        in_specs=in_specs,
        out_specs=out_specs,
        scratch_shapes=scratch_shapes,
        compiler_params=pltpu.CompilerParams(
            dimension_semantics=("parallel", "arbitrary"),
            vmem_limit_bytes=vmem_limit),
    )(*args)
    return out[:B]


# ---------------- deterministic parameter construction ----------------------
def make_params(key, Din, H, Dout):
    ks = jax.random.split(key, 12)

    def xavier(k, fin, fout):  # xavier_normal_, stored transposed as (in, out)
        std = math.sqrt(2.0 / (fin + fout))
        return std * jax.random.normal(k, (fin, fout), dtype=jnp.float32)

    kg = 1.0 / math.sqrt(H)    # PyTorch GRU default init bound
    u = lambda k, shape: jax.random.uniform(k, shape, jnp.float32, -kg, kg)

    return dict(
        w_emb=xavier(ks[0], Din, H),
        b_emb=jnp.zeros((1, H), jnp.float32),
        wih_f=u(ks[1], (3, H, H)), whh_f=u(ks[2], (3, H, H)),
        bih_f=u(ks[3], (3, 1, H)), bhh_f=u(ks[4], (3, 1, H)),
        wih_b=u(ks[5], (3, H, H)), whh_b=u(ks[6], (3, H, H)),
        bih_b=u(ks[7], (3, 1, H)), bhh_b=u(ks[8], (3, 1, H)),
        hidden=jax.random.normal(ks[9], (2, 1, H), jnp.float32),
        w1=xavier(ks[10], 2 * H, H),
        b1=jnp.zeros((1, H), jnp.float32),
        gamma=jnp.ones((1, H), jnp.float32),
        beta=jnp.zeros((1, H), jnp.float32),
        w2=xavier(ks[11], H, Dout),
        b2=jnp.zeros((1, Dout), jnp.float32),
    )


# ---------------- pure-JAX reference (unfused f32 math, no Pallas) -----------
def reference_forward(inputs, m_lens, p):
    B, T, Din = inputs.shape
    H = p["w_emb"].shape[1]
    emb = inputs @ p["w_emb"] + p["b_emb"]
    lens = m_lens.astype(jnp.int32).reshape(B, 1)

    def cell(xt, h, wih, whh, bih, bhh):
        r = jax.nn.sigmoid(xt @ wih[0] + bih[0] + h @ whh[0] + bhh[0])
        z = jax.nn.sigmoid(xt @ wih[1] + bih[1] + h @ whh[1] + bhh[1])
        n = jnp.tanh(xt @ wih[2] + bih[2] + r * (h @ whh[2] + bhh[2]))
        return (1.0 - z) * n + z * h

    h_f = jnp.broadcast_to(p["hidden"][0], (B, H))
    for t in range(T):
        hn = cell(emb[:, t], h_f, p["wih_f"], p["whh_f"], p["bih_f"], p["bhh_f"])
        h_f = jnp.where(t < lens, hn, h_f)
    h_b = jnp.broadcast_to(p["hidden"][1], (B, H))
    for t in range(T - 1, -1, -1):
        hn = cell(emb[:, t], h_b, p["wih_b"], p["whh_b"], p["bih_b"], p["bhh_b"])
        h_b = jnp.where(t < lens, hn, h_b)

    gl = jnp.concatenate([h_f, h_b], axis=-1)
    y = gl @ p["w1"] + p["b1"]
    mean = y.mean(-1, keepdims=True)
    var = ((y - mean) ** 2).mean(-1, keepdims=True)
    y = (y - mean) / jnp.sqrt(var + 1e-5) * p["gamma"] + p["beta"]
    y = jnp.where(y > 0, y, 0.2 * y)
    return y @ p["w2"] + p["b2"]


if __name__ == "__main__":
    B, T, Din, H, Dout = 2, 8, 16, 32, 32

    key = jax.random.PRNGKey(0)
    k_param, k_in = jax.random.split(key)
    params = make_params(k_param, Din, H, Dout)

    inputs = jax.random.normal(k_in, (B, T, Din), dtype=jnp.float32)
    m_lens = jnp.array([8, 5], dtype=jnp.int32)   # sorted descending (pack_padded)

    out = motion_encoder_forward(inputs, m_lens, params)
    jax.block_until_ready(out)

    ref = reference_forward(inputs, m_lens, params)
    assert out.shape == (B, Dout)
    # bf16 MXU operands vs f32 reference -> loose-ish tolerance
    assert jnp.allclose(out, ref, atol=5e-2, rtol=5e-2), (out, ref)
    print("KERNEL_OK")
</pallas_src>

<mosaic_0001>
module attributes {stable_mosaic.version = 11 : i64} {
  func.func @motion_encoder_kernel(%arg0: i32, %arg1: i32, %arg2: memref<8x8x16xf32, #tpu.memory_space<vmem>>, %arg3: memref<8x8x16xf32, #tpu.memory_space<vmem>>, %arg4: memref<8x1xi32, #tpu.memory_space<vmem>>, %arg5: memref<16x96xbf16, #tpu.memory_space<vmem>>, %arg6: memref<1x96xf32, #tpu.memory_space<vmem>>, %arg7: memref<32x96xbf16, #tpu.memory_space<vmem>>, %arg8: memref<1x32xf32, #tpu.memory_space<vmem>>, %arg9: memref<1x32xf32, #tpu.memory_space<vmem>>, %arg10: memref<16x96xbf16, #tpu.memory_space<vmem>>, %arg11: memref<1x96xf32, #tpu.memory_space<vmem>>, %arg12: memref<32x96xbf16, #tpu.memory_space<vmem>>, %arg13: memref<1x32xf32, #tpu.memory_space<vmem>>, %arg14: memref<1x32xf32, #tpu.memory_space<vmem>>, %arg15: memref<32x32xf32, #tpu.memory_space<vmem>>, %arg16: memref<32x32xf32, #tpu.memory_space<vmem>>, %arg17: memref<1x32xf32, #tpu.memory_space<vmem>>, %arg18: memref<1x32xf32, #tpu.memory_space<vmem>>, %arg19: memref<1x32xf32, #tpu.memory_space<vmem>>, %arg20: memref<32x32xf32, #tpu.memory_space<vmem>>, %arg21: memref<1x32xf32, #tpu.memory_space<vmem>>, %arg22: memref<8x32xf32, #tpu.memory_space<vmem>>, %arg23: memref<8x8x96xf32, #tpu.memory_space<vmem>>, %arg24: memref<8x8x96xf32, #tpu.memory_space<vmem>>, %arg25: memref<8x32xf32, #tpu.memory_space<vmem>>, %arg26: memref<8x32xf32, #tpu.memory_space<vmem>>) attributes {dimension_semantics = [#tpu.dimension_semantics<parallel>, #tpu.dimension_semantics<arbitrary>], iteration_bounds = array<i64: 1, 1>, scalar_prefetch = 0 : i64, scratch_operands = 4 : i64, tpu.core_type = #tpu.core_type<tc>, window_params = [{transform_indices = @transform_0, window_bounds = array<i64: 8, 8, 16>}, {transform_indices = @transform_1, window_bounds = array<i64: 8, 8, 16>}, {transform_indices = @transform_2, window_bounds = array<i64: 8, 1>}, {pipeline_mode = #tpu.pipeline_mode<synchronous>, transform_indices = @transform_3, window_bounds = array<i64: 16, 96>}, {pipeline_mode = #tpu.pipeline_mode<synchronous>, transform_indices = @transform_4, window_bounds = array<i64: 1, 96>}, {pipeline_mode = #tpu.pipeline_mode<synchronous>, transform_indices = @transform_5, window_bounds = array<i64: 32, 96>}, {pipeline_mode = #tpu.pipeline_mode<synchronous>, transform_indices = @transform_6, window_bounds = array<i64: 1, 32>}, {pipeline_mode = #tpu.pipeline_mode<synchronous>, transform_indices = @transform_7, window_bounds = array<i64: 1, 32>}, {pipeline_mode = #tpu.pipeline_mode<synchronous>, transform_indices = @transform_8, window_bounds = array<i64: 16, 96>}, {pipeline_mode = #tpu.pipeline_mode<synchronous>, transform_indices = @transform_9, window_bounds = array<i64: 1, 96>}, {pipeline_mode = #tpu.pipeline_mode<synchronous>, transform_indices = @transform_10, window_bounds = array<i64: 32, 96>}, {pipeline_mode = #tpu.pipeline_mode<synchronous>, transform_indices = @transform_11, window_bounds = array<i64: 1, 32>}, {pipeline_mode = #tpu.pipeline_mode<synchronous>, transform_indices = @transform_12, window_bounds = array<i64: 1, 32>}, {pipeline_mode = #tpu.pipeline_mode<synchronous>, transform_indices = @transform_13, window_bounds = array<i64: 32, 32>}, {pipeline_mode = #tpu.pipeline_mode<synchronous>, transform_indices = @transform_14, window_bounds = array<i64: 32, 32>}, {pipeline_mode = #tpu.pipeline_mode<synchronous>, transform_indices = @transform_15, window_bounds = array<i64: 1, 32>}, {pipeline_mode = #tpu.pipeline_mode<synchronous>, transform_indices = @transform_16, window_bounds = array<i64: 1, 32>}, {pipeline_mode = #tpu.pipeline_mode<synchronous>, transform_indices = @transform_17, window_bounds = array<i64: 1, 32>}, {pipeline_mode = #tpu.pipeline_mode<synchronous>, transform_indices = @transform_18, window_bounds = array<i64: 32, 32>}, {pipeline_mode = #tpu.pipeline_mode<synchronous>, transform_indices = @transform_19, window_bounds = array<i64: 1, 32>}, {transform_indices = @transform_20, window_bounds = array<i64: 8, 32>}]} {
    %c0_i32 = arith.constant 0 : i32
    %0 = arith.cmpi eq, %arg1, %c0_i32 : i32
    %1 = arith.extui %0 : i1 to i32
    %c0_i32_0 = arith.constant 0 : i32
    %2 = arith.cmpi ne, %1, %c0_i32_0 : i32
    scf.if %2 {
      %c0_133 = arith.constant 0 : index
      %c0_134 = arith.constant 0 : index
      %574 = vector.load %arg9[%c0_133, %c0_134] : memref<1x32xf32, #tpu.memory_space<vmem>>, vector<1x32xf32>
      %575 = vector.shape_cast %574 : vector<1x32xf32> to vector<1x32xf32>
      %576 = vector.broadcast %575 : vector<1x32xf32> to vector<8x32xf32>
      %c0_135 = arith.constant 0 : index
      %c0_136 = arith.constant 0 : index
      %577 = vector.load %arg25[%c0_135, %c0_136] : memref<8x32xf32, #tpu.memory_space<vmem>>, vector<8x32xf32>
      tpu.vector_store %arg25[%c0_135, %c0_136], %576 {strides = array<i32>} : memref<8x32xf32, #tpu.memory_space<vmem>>, vector<8x32xf32>,
      %c0_137 = arith.constant 0 : index
      %c0_138 = arith.constant 0 : index
      %578 = vector.load %arg14[%c0_137, %c0_138] : memref<1x32xf32, #tpu.memory_space<vmem>>, vector<1x32xf32>
      %579 = vector.shape_cast %578 : vector<1x32xf32> to vector<1x32xf32>
      %580 = vector.broadcast %579 : vector<1x32xf32> to vector<8x32xf32>
      %c0_139 = arith.constant 0 : index
      %c0_140 = arith.constant 0 : index
      %581 = vector.load %arg26[%c0_139, %c0_140] : memref<8x32xf32, #tpu.memory_space<vmem>>, vector<8x32xf32>
      tpu.vector_store %arg26[%c0_139, %c0_140], %580 {strides = array<i32>} : memref<8x32xf32, #tpu.memory_space<vmem>>, vector<8x32xf32>,
    } else {
    }
    %c0 = arith.constant 0 : index
    %c0_1 = arith.constant 0 : index
    %c0_2 = arith.constant 0 : index
    %3 = vector.load %arg2[%c0, %c0_1, %c0_2] : memref<8x8x16xf32, #tpu.memory_space<vmem>>, vector<8x8x16xf32>
    %4 = vector.shape_cast %3 : vector<8x8x16xf32> to vector<64x16xf32>
    %5 = arith.truncf %4 : vector<64x16xf32> to vector<64x16xbf16>
    %c0_3 = arith.constant 0 : index
    %c0_4 = arith.constant 0 : index
    %c0_5 = arith.constant 0 : index
    %6 = vector.load %arg3[%c0_3, %c0_4, %c0_5] : memref<8x8x16xf32, #tpu.memory_space<vmem>>, vector<8x8x16xf32>
    %7 = vector.shape_cast %6 : vector<8x8x16xf32> to vector<64x16xf32>
    %8 = arith.truncf %7 : vector<64x16xf32> to vector<64x16xbf16>
    %c0_6 = arith.constant 0 : index
    %c0_7 = arith.constant 0 : index
    %9 = vector.load %arg5[%c0_6, %c0_7] : memref<16x96xbf16, #tpu.memory_space<vmem>>, vector<16x96xbf16>
    %cst = arith.constant dense<0.000000e+00> : vector<64x96xf32>
    %10 = tpu.matmul %5, %9, %cst {dimension_numbers = #tpu.dot_dimension_numbers<[1], [0], [0], [1], [0, 0, 1, 1], [], []>} : vector<64x16xbf16>, vector<16x96xbf16>, vector<64x96xf32> -> vector<64x96xf32>
    %c0_8 = arith.constant 0 : index
    %c0_9 = arith.constant 0 : index
    %11 = vector.load %arg6[%c0_8, %c0_9] : memref<1x96xf32, #tpu.memory_space<vmem>>, vector<1x96xf32>
    %12 = vector.broadcast %11 : vector<1x96xf32> to vector<64x96xf32>
    %13 = arith.addf %10, %12 : vector<64x96xf32>
    %c0_10 = arith.constant 0 : index
    %c0_11 = arith.constant 0 : index
    %14 = vector.load %arg10[%c0_10, %c0_11] : memref<16x96xbf16, #tpu.memory_space<vmem>>, vector<16x96xbf16>
    %cst_12 = arith.constant dense<0.000000e+00> : vector<64x96xf32>
    %15 = tpu.matmul %8, %14, %cst_12 {dimension_numbers = #tpu.dot_dimension_numbers<[1], [0], [0], [1], [0, 0, 1, 1], [], []>} : vector<64x16xbf16>, vector<16x96xbf16>, vector<64x96xf32> -> vector<64x96xf32>
    %c0_13 = arith.constant 0 : index
    %c0_14 = arith.constant 0 : index
    %16 = vector.load %arg11[%c0_13, %c0_14] : memref<1x96xf32, #tpu.memory_space<vmem>>, vector<1x96xf32>
    %17 = vector.broadcast %16 : vector<1x96xf32> to vector<64x96xf32>
    %18 = arith.addf %15, %17 : vector<64x96xf32>
    %19 = vector.shape_cast %13 : vector<64x96xf32> to vector<8x8x96xf32>
    %c0_15 = arith.constant 0 : index
    %c0_16 = arith.constant 0 : index
    %c0_17 = arith.constant 0 : index
    %20 = vector.load %arg23[%c0_15, %c0_16, %c0_17] : memref<8x8x96xf32, #tpu.memory_space<vmem>>, vector<8x8x96xf32>
    tpu.vector_store %arg23[%c0_15, %c0_16, %c0_17], %19 {strides = array<i32>} : memref<8x8x96xf32, #tpu.memory_space<vmem>>, vector<8x8x96xf32>,
    %21 = vector.shape_cast %18 : vector<64x96xf32> to vector<8x8x96xf32>
    %c0_18 = arith.constant 0 : index
    %c0_19 = arith.constant 0 : index
    %c0_20 = arith.constant 0 : index
    %22 = vector.load %arg24[%c0_18, %c0_19, %c0_20] : memref<8x8x96xf32, #tpu.memory_space<vmem>>, vector<8x8x96xf32>
    tpu.vector_store %arg24[%c0_18, %c0_19, %c0_20], %21 {strides = array<i32>} : memref<8x8x96xf32, #tpu.memory_space<vmem>>, vector<8x8x96xf32>,
    %c0_21 = arith.constant 0 : index
    %c0_22 = arith.constant 0 : index
    %23 = vector.load %arg4[%c0_21, %c0_22] : memref<8x1xi32, #tpu.memory_space<vmem>>, vector<8x1xi32>
    %c0_23 = arith.constant 0 : index
    %c0_24 = arith.constant 0 : index
    %24 = vector.load %arg7[%c0_23, %c0_24] : memref<32x96xbf16, #tpu.memory_space<vmem>>, vector<32x96xbf16>
    %c0_25 = arith.constant 0 : index
    %c0_26 = arith.constant 0 : index
    %25 = vector.load %arg12[%c0_25, %c0_26] : memref<32x96xbf16, #tpu.memory_space<vmem>>, vector<32x96xbf16>
    %c0_27 = arith.constant 0 : index
    %c0_28 = arith.constant 0 : index
    %26 = vector.load %arg8[%c0_27, %c0_28] : memref<1x32xf32, #tpu.memory_space<vmem>>, vector<1x32xf32>
    %c0_29 = arith.constant 0 : index
    %c0_30 = arith.constant 0 : index
    %27 = vector.load %arg13[%c0_29, %c0_30] : memref<1x32xf32, #tpu.memory_space<vmem>>, vector<1x32xf32>
    %c8_i32 = arith.constant 8 : i32
    %28 = arith.muli %arg1, %c8_i32 : i32
    %c0_i32_31 = arith.constant 0 : i32
    %29 = arith.subi %c0_i32_31, %arg1 : i32
    %c8_i32_32 = arith.constant 8 : i32
    %30 = arith.muli %29, %c8_i32_32 : i32
    %c0_33 = arith.constant 0 : index
    %c0_34 = arith.constant 0 : index
    %31 = vector.load %arg25[%c0_33, %c0_34] : memref<8x32xf32, #tpu.memory_space<vmem>>, vector<8x32xf32>
    %c0_35 = arith.constant 0 : index
    %c0_36 = arith.constant 0 : index
    %32 = vector.load %arg26[%c0_35, %c0_36] : memref<8x32xf32, #tpu.memory_space<vmem>>, vector<8x32xf32>
    %c0_i32_37 = arith.constant 0 : i32
    %33 = arith.addi %28, %c0_i32_37 : i32
    %c7_i32 = arith.constant 7 : i32
    %34 = arith.subi %c7_i32, %c0_i32_37 : i32
    %35 = arith.addi %30, %34 : i32
    %36 = arith.index_cast %c0_i32_37 : i32 to index
    %c0_38 = arith.constant 0 : index
    %c0_39 = arith.constant 0 : index
    %37 = vector.load %arg23[%36, %c0_38, %c0_39] : memref<8x8x96xf32, #tpu.memory_space<vmem>>, vector<1x8x96xf32>
    %38 = vector.shape_cast %37 : vector<1x8x96xf32> to vector<8x96xf32>
    %39 = arith.truncf %31 : vector<8x32xf32> to vector<8x32xbf16>
    %cst_40 = arith.constant dense<0.000000e+00> : vector<8x96xf32>
    %40 = tpu.matmul %39, %24, %cst_40 {dimension_numbers = #tpu.dot_dimension_numbers<[1], [0], [0], [1], [0, 0, 1, 1], [], []>} : vector<8x32xbf16>, vector<32x96xbf16>, vector<8x96xf32> -> vector<8x96xf32>
    %41 = vector.extract_strided_slice %38 {offsets = [0, 0], sizes = [8, 64], strides = [1, 1]} : vector<8x96xf32> to vector<8x64xf32>
    %42 = vector.extract_strided_slice %40 {offsets = [0, 0], sizes = [8, 64], strides = [1, 1]} : vector<8x96xf32> to vector<8x64xf32>
    %43 = arith.addf %41, %42 : vector<8x64xf32>
    %44 = arith.negf %43 : vector<8x64xf32>
    %45 = math.exp %44 : vector<8x64xf32>
    %cst_41 = arith.constant 1.000000e+00 : f32
    %46 = vector.broadcast %cst_41 : f32 to vector<8x64xf32>
    %47 = arith.addf %46, %45 : vector<8x64xf32>
    %48 = arith.divf %46, %47 : vector<8x64xf32>
    %49 = vector.extract_strided_slice %48 {offsets = [0, 0], sizes = [8, 32], strides = [1, 1]} : vector<8x64xf32> to vector<8x32xf32>
    %50 = vector.extract_strided_slice %48 {offsets = [0, 32], sizes = [8, 32], strides = [1, 1]} : vector<8x64xf32> to vector<8x32xf32>
    %51 = vector.extract_strided_slice %38 {offsets = [0, 64], sizes = [8, 32], strides = [1, 1]} : vector<8x96xf32> to vector<8x32xf32>
    %52 = vector.extract_strided_slice %40 {offsets = [0, 64], sizes = [8, 32], strides = [1, 1]} : vector<8x96xf32> to vector<8x32xf32>
    %53 = vector.broadcast %26 : vector<1x32xf32> to vector<8x32xf32>
    %54 = arith.addf %52, %53 : vector<8x32xf32>
    %55 = arith.mulf %49, %54 : vector<8x32xf32>
    %56 = arith.addf %51, %55 : vector<8x32xf32>
    %57 = math.tanh %56 : vector<8x32xf32>
    %cst_42 = arith.constant 1.000000e+00 : f32
    %58 = vector.broadcast %cst_42 : f32 to vector<8x32xf32>
    %59 = arith.subf %58, %50 : vector<8x32xf32>
    %60 = arith.mulf %59, %57 : vector<8x32xf32>
    %61 = arith.mulf %50, %31 : vector<8x32xf32>
    %62 = arith.addf %60, %61 : vector<8x32xf32>
    %63 = arith.index_cast %34 : i32 to index
    %c0_43 = arith.constant 0 : index
    %c0_44 = arith.constant 0 : index
    %64 = vector.load %arg24[%63, %c0_43, %c0_44] : memref<8x8x96xf32, #tpu.memory_space<vmem>>, vector<1x8x96xf32>
    %65 = vector.shape_cast %64 : vector<1x8x96xf32> to vector<8x96xf32>
    %66 = arith.truncf %32 : vector<8x32xf32> to vector<8x32xbf16>
    %cst_45 = arith.constant dense<0.000000e+00> : vector<8x96xf32>
    %67 = tpu.matmul %66, %25, %cst_45 {dimension_numbers = #tpu.dot_dimension_numbers<[1], [0], [0], [1], [0, 0, 1, 1], [], []>} : vector<8x32xbf16>, vector<32x96xbf16>, vector<8x96xf32> -> vector<8x96xf32>
    %68 = vector.extract_strided_slice %65 {offsets = [0, 0], sizes = [8, 64], strides = [1, 1]} : vector<8x96xf32> to vector<8x64xf32>
    %69 = vector.extract_strided_slice %67 {offsets = [0, 0], sizes = [8, 64], strides = [1, 1]} : vector<8x96xf32> to vector<8x64xf32>
    %70 = arith.addf %68, %69 : vector<8x64xf32>
    %71 = arith.negf %70 : vector<8x64xf32>
    %72 = math.exp %71 : vector<8x64xf32>
    %cst_46 = arith.constant 1.000000e+00 : f32
    %73 = vector.broadcast %cst_46 : f32 to vector<8x64xf32>
    %74 = arith.addf %73, %72 : vector<8x64xf32>
    %75 = arith.divf %73, %74 : vector<8x64xf32>
    %76 = vector.extract_strided_slice %75 {offsets = [0, 0], sizes = [8, 32], strides = [1, 1]} : vector<8x64xf32> to vector<8x32xf32>
    %77 = vector.extract_strided_slice %75 {offsets = [0, 32], sizes = [8, 32], strides = [1, 1]} : vector<8x64xf32> to vector<8x32xf32>
    %78 = vector.extract_strided_slice %65 {offsets = [0, 64], sizes = [8, 32], strides = [1, 1]} : vector<8x96xf32> to vector<8x32xf32>
    %79 = vector.extract_strided_slice %67 {offsets = [0, 64], sizes = [8, 32], strides = [1, 1]} : vector<8x96xf32> to vector<8x32xf32>
    %80 = vector.broadcast %27 : vector<1x32xf32> to vector<8x32xf32>
    %81 = arith.addf %79, %80 : vector<8x32xf32>
    %82 = arith.mulf %76, %81 : vector<8x32xf32>
    %83 = arith.addf %78, %82 : vector<8x32xf32>
    %84 = math.tanh %83 : vector<8x32xf32>
    %cst_47 = arith.constant 1.000000e+00 : f32
    %85 = vector.broadcast %cst_47 : f32 to vector<8x32xf32>
    %86 = arith.subf %85, %77 : vector<8x32xf32>
    %87 = arith.mulf %86, %84 : vector<8x32xf32>
    %88 = arith.mulf %77, %32 : vector<8x32xf32>
    %89 = arith.addf %87, %88 : vector<8x32xf32>
    %90 = vector.broadcast %33 : i32 to vector<8x1xi32>
    %91 = arith.cmpi slt, %90, %23 : vector<8x1xi32>
    %92 = vector.shape_cast %91 : vector<8x1xi1> to vector<8x1xi1>
    %93 = vector.broadcast %92 : vector<8x1xi1> to vector<8x32xi1>
    %94 = arith.select %93, %62, %31 : vector<8x32xi1>, vector<8x32xf32>
    %95 = vector.broadcast %35 : i32 to vector<8x1xi32>
    %96 = arith.cmpi slt, %95, %23 : vector<8x1xi32>
    %97 = vector.shape_cast %96 : vector<8x1xi1> to vector<8x1xi1>
    %98 = vector.broadcast %97 : vector<8x1xi1> to vector<8x32xi1>
    %99 = arith.select %98, %89, %32 : vector<8x32xi1>, vector<8x32xf32>
    %c1_i32 = arith.constant 1 : i32
    %100 = arith.addi %28, %c1_i32 : i32
    %c7_i32_48 = arith.constant 7 : i32
    %101 = arith.subi %c7_i32_48, %c1_i32 : i32
    %102 = arith.addi %30, %101 : i32
    %103 = arith.index_cast %c1_i32 : i32 to index
    %c0_49 = arith.constant 0 : index
    %c0_50 = arith.constant 0 : index
    %104 = vector.load %arg23[%103, %c0_49, %c0_50] : memref<8x8x96xf32, #tpu.memory_space<vmem>>, vector<1x8x96xf32>
    %105 = vector.shape_cast %104 : vector<1x8x96xf32> to vector<8x96xf32>
    %106 = arith.truncf %94 : vector<8x32xf32> to vector<8x32xbf16>
    %cst_51 = arith.constant dense<0.000000e+00> : vector<8x96xf32>
    %107 = tpu.matmul %106, %24, %cst_51 {dimension_numbers = #tpu.dot_dimension_numbers<[1], [0], [0], [1], [0, 0, 1, 1], [], []>} : vector<8x32xbf16>, vector<32x96xbf16>, vector<8x96xf32> -> vector<8x96xf32>
    %108 = vector.extract_strided_slice %105 {offsets = [0, 0], sizes = [8, 64], strides = [1, 1]} : vector<8x96xf32> to vector<8x64xf32>
    %109 = vector.extract_strided_slice %107 {offsets = [0, 0], sizes = [8, 64], strides = [1, 1]} : vector<8x96xf32> to vector<8x64xf32>
    %110 = arith.addf %108, %109 : vector<8x64xf32>
    %111 = arith.negf %110 : vector<8x64xf32>
    %112 = math.exp %111 : vector<8x64xf32>
    %cst_52 = arith.constant 1.000000e+00 : f32
    %113 = vector.broadcast %cst_52 : f32 to vector<8x64xf32>
    %114 = arith.addf %113, %112 : vector<8x64xf32>
    %115 = arith.divf %113, %114 : vector<8x64xf32>
    %116 = vector.extract_strided_slice %115 {offsets = [0, 0], sizes = [8, 32], strides = [1, 1]} : vector<8x64xf32> to vector<8x32xf32>
    %117 = vector.extract_strided_slice %115 {offsets = [0, 32], sizes = [8, 32], strides = [1, 1]} : vector<8x64xf32> to vector<8x32xf32>
    %118 = vector.extract_strided_slice %105 {offsets = [0, 64], sizes = [8, 32], strides = [1, 1]} : vector<8x96xf32> to vector<8x32xf32>
    %119 = vector.extract_strided_slice %107 {offsets = [0, 64], sizes = [8, 32], strides = [1, 1]} : vector<8x96xf32> to vector<8x32xf32>
    %120 = vector.broadcast %26 : vector<1x32xf32> to vector<8x32xf32>
    %121 = arith.addf %119, %120 : vector<8x32xf32>
    %122 = arith.mulf %116, %121 : vector<8x32xf32>
    %123 = arith.addf %118, %122 : vector<8x32xf32>
    %124 = math.tanh %123 : vector<8x32xf32>
    %cst_53 = arith.constant 1.000000e+00 : f32
    %125 = vector.broadcast %cst_53 : f32 to vector<8x32xf32>
    %126 = arith.subf %125, %117 : vector<8x32xf32>
    %127 = arith.mulf %126, %124 : vector<8x32xf32>
    %128 = arith.mulf %117, %94 : vector<8x32xf32>
    %129 = arith.addf %127, %128 : vector<8x32xf32>
    %130 = arith.index_cast %101 : i32 to index
    %c0_54 = arith.constant 0 : index
    %c0_55 = arith.constant 0 : index
    %131 = vector.load %arg24[%130, %c0_54, %c0_55] : memref<8x8x96xf32, #tpu.memory_space<vmem>>, vector<1x8x96xf32>
    %132 = vector.shape_cast %131 : vector<1x8x96xf32> to vector<8x96xf32>
    %133 = arith.truncf %99 : vector<8x32xf32> to vector<8x32xbf16>
    %cst_56 = arith.constant dense<0.000000e+00> : vector<8x96xf32>
    %134 = tpu.matmul %133, %25, %cst_56 {dimension_numbers = #tpu.dot_dimension_numbers<[1], [0], [0], [1], [0, 0, 1, 1], [], []>} : vector<8x32xbf16>, vector<32x96xbf16>, vector<8x96xf32> -> vector<8x96xf32>
    %135 = vector.extract_strided_slice %132 {offsets = [0, 0], sizes = [8, 64], strides = [1, 1]} : vector<8x96xf32> to vector<8x64xf32>
    %136 = vector.extract_strided_slice %134 {offsets = [0, 0], sizes = [8, 64], strides = [1, 1]} : vector<8x96xf32> to vector<8x64xf32>
    %137 = arith.addf %135, %136 : vector<8x64xf32>
    %138 = arith.negf %137 : vector<8x64xf32>
    %139 = math.exp %138 : vector<8x64xf32>
    %cst_57 = arith.constant 1.000000e+00 : f32
    %140 = vector.broadcast %cst_57 : f32 to vector<8x64xf32>
    %141 = arith.addf %140, %139 : vector<8x64xf32>
    %142 = arith.divf %140, %141 : vector<8x64xf32>
    %143 = vector.extract_strided_slice %142 {offsets = [0, 0], sizes = [8, 32], strides = [1, 1]} : vector<8x64xf32> to vector<8x32xf32>
    %144 = vector.extract_strided_slice %142 {offsets = [0, 32], sizes = [8, 32], strides = [1, 1]} : vector<8x64xf32> to vector<8x32xf32>
    %145 = vector.extract_strided_slice %132 {offsets = [0, 64], sizes = [8, 32], strides = [1, 1]} : vector<8x96xf32> to vector<8x32xf32>
    %146 = vector.extract_strided_slice %134 {offsets = [0, 64], sizes = [8, 32], strides = [1, 1]} : vector<8x96xf32> to vector<8x32xf32>
    %147 = vector.broadcast %27 : vector<1x32xf32> to vector<8x32xf32>
    %148 = arith.addf %146, %147 : vector<8x32xf32>
    %149 = arith.mulf %143, %148 : vector<8x32xf32>
    %150 = arith.addf %145, %149 : vector<8x32xf32>
    %151 = math.tanh %150 : vector<8x32xf32>
    %cst_58 = arith.constant 1.000000e+00 : f32
    %152 = vector.broadcast %cst_58 : f32 to vector<8x32xf32>
    %153 = arith.subf %152, %144 : vector<8x32xf32>
    %154 = arith.mulf %153, %151 : vector<8x32xf32>
    %155 = arith.mulf %144, %99 : vector<8x32xf32>
    %156 = arith.addf %154, %155 : vector<8x32xf32>
    %157 = vector.broadcast %100 : i32 to vector<8x1xi32>
    %158 = arith.cmpi slt, %157, %23 : vector<8x1xi32>
    %159 = vector.shape_cast %158 : vector<8x1xi1> to vector<8x1xi1>
    %160 = vector.broadcast %159 : vector<8x1xi1> to vector<8x32xi1>
    %161 = arith.select %160, %129, %94 : vector<8x32xi1>, vector<8x32xf32>
    %162 = vector.broadcast %102 : i32 to vector<8x1xi32>
    %163 = arith.cmpi slt, %162, %23 : vector<8x1xi32>
    %164 = vector.shape_cast %163 : vector<8x1xi1> to vector<8x1xi1>
    %165 = vector.broadcast %164 : vector<8x1xi1> to vector<8x32xi1>
    %166 = arith.select %165, %156, %99 : vector<8x32xi1>, vector<8x32xf32>
    %c2_i32 = arith.constant 2 : i32
    %167 = arith.addi %28, %c2_i32 : i32
    %c7_i32_59 = arith.constant 7 : i32
    %168 = arith.subi %c7_i32_59, %c2_i32 : i32
    %169 = arith.addi %30, %168 : i32
    %170 = arith.index_cast %c2_i32 : i32 to index
    %c0_60 = arith.constant 0 : index
    %c0_61 = arith.constant 0 : index
    %171 = vector.load %arg23[%170, %c0_60, %c0_61] : memref<8x8x96xf32, #tpu.memory_space<vmem>>, vector<1x8x96xf32>
    %172 = vector.shape_cast %171 : vector<1x8x96xf32> to vector<8x96xf32>
    %173 = arith.truncf %161 : vector<8x32xf32> to vector<8x32xbf16>
    %cst_62 = arith.constant dense<0.000000e+00> : vector<8x96xf32>
    %174 = tpu.matmul %173, %24, %cst_62 {dimension_numbers = #tpu.dot_dimension_numbers<[1], [0], [0], [1], [0, 0, 1, 1], [], []>} : vector<8x32xbf16>, vector<32x96xbf16>, vector<8x96xf32> -> vector<8x96xf32>
    %175 = vector.extract_strided_slice %172 {offsets = [0, 0], sizes = [8, 64], strides = [1, 1]} : vector<8x96xf32> to vector<8x64xf32>
    %176 = vector.extract_strided_slice %174 {offsets = [0, 0], sizes = [8, 64], strides = [1, 1]} : vector<8x96xf32> to vector<8x64xf32>
    %177 = arith.addf %175, %176 : vector<8x64xf32>
    %178 = arith.negf %177 : vector<8x64xf32>
    %179 = math.exp %178 : vector<8x64xf32>
    %cst_63 = arith.constant 1.000000e+00 : f32
    %180 = vector.broadcast %cst_63 : f32 to vector<8x64xf32>
    %181 = arith.addf %180, %179 : vector<8x64xf32>
    %182 = arith.divf %180, %181 : vector<8x64xf32>
    %183 = vector.extract_strided_slice %182 {offsets = [0, 0], sizes = [8, 32], strides = [1, 1]} : vector<8x64xf32> to vector<8x32xf32>
    %184 = vector.extract_strided_slice %182 {offsets = [0, 32], sizes = [8, 32], strides = [1, 1]} : vector<8x64xf32> to vector<8x32xf32>
    %185 = vector.extract_strided_slice %172 {offsets = [0, 64], sizes = [8, 32], strides = [1, 1]} : vector<8x96xf32> to vector<8x32xf32>
    %186 = vector.extract_strided_slice %174 {offsets = [0, 64], sizes = [8, 32], strides = [1, 1]} : vector<8x96xf32> to vector<8x32xf32>
    %187 = vector.broadcast %26 : vector<1x32xf32> to vector<8x32xf32>
    %188 = arith.addf %186, %187 : vector<8x32xf32>
    %189 = arith.mulf %183, %188 : vector<8x32xf32>
    %190 = arith.addf %185, %189 : vector<8x32xf32>
    %191 = math.tanh %190 : vector<8x32xf32>
    %cst_64 = arith.constant 1.000000e+00 : f32
    %192 = vector.broadcast %cst_64 : f32 to vector<8x32xf32>
    %193 = arith.subf %192, %184 : vector<8x32xf32>
    %194 = arith.mulf %193, %191 : vector<8x32xf32>
    %195 = arith.mulf %184, %161 : vector<8x32xf32>
    %196 = arith.addf %194, %195 : vector<8x32xf32>
    %197 = arith.index_cast %168 : i32 to index
    %c0_65 = arith.constant 0 : index
    %c0_66 = arith.constant 0 : index
    %198 = vector.load %arg24[%197, %c0_65, %c0_66] : memref<8x8x96xf32, #tpu.memory_space<vmem>>, vector<1x8x96xf32>
    %199 = vector.shape_cast %198 : vector<1x8x96xf32> to vector<8x96xf32>
    %200 = arith.truncf %166 : vector<8x32xf32> to vector<8x32xbf16>
    %cst_67 = arith.constant dense<0.000000e+00> : vector<8x96xf32>
    %201 = tpu.matmul %200, %25, %cst_67 {dimension_numbers = #tpu.dot_dimension_numbers<[1], [0], [0], [1], [0, 0, 1, 1], [], []>} : vector<8x32xbf16>, vector<32x96xbf16>, vector<8x96xf32> -> vector<8x96xf32>
    %202 = vector.extract_strided_slice %199 {offsets = [0, 0], sizes = [8, 64], strides = [1, 1]} : vector<8x96xf32> to vector<8x64xf32>
    %203 = vector.extract_strided_slice %201 {offsets = [0, 0], sizes = [8, 64], strides = [1, 1]} : vector<8x96xf32> to vector<8x64xf32>
    %204 = arith.addf %202, %203 : vector<8x64xf32>
    %205 = arith.negf %204 : vector<8x64xf32>
    %206 = math.exp %205 : vector<8x64xf32>
    %cst_68 = arith.constant 1.000000e+00 : f32
    %207 = vector.broadcast %cst_68 : f32 to vector<8x64xf32>
    %208 = arith.addf %207, %206 : vector<8x64xf32>
    %209 = arith.divf %207, %208 : vector<8x64xf32>
    %210 = vector.extract_strided_slice %209 {offsets = [0, 0], sizes = [8, 32], strides = [1, 1]} : vector<8x64xf32> to vector<8x32xf32>
    %211 = vector.extract_strided_slice %209 {offsets = [0, 32], sizes = [8, 32], strides = [1, 1]} : vector<8x64xf32> to vector<8x32xf32>
    %212 = vector.extract_strided_slice %199 {offsets = [0, 64], sizes = [8, 32], strides = [1, 1]} : vector<8x96xf32> to vector<8x32xf32>
    %213 = vector.extract_strided_slice %201 {offsets = [0, 64], sizes = [8, 32], strides = [1, 1]} : vector<8x96xf32> to vector<8x32xf32>
    %214 = vector.broadcast %27 : vector<1x32xf32> to vector<8x32xf32>
    %215 = arith.addf %213, %214 : vector<8x32xf32>
    %216 = arith.mulf %210, %215 : vector<8x32xf32>
    %217 = arith.addf %212, %216 : vector<8x32xf32>
    %218 = math.tanh %217 : vector<8x32xf32>
    %cst_69 = arith.constant 1.000000e+00 : f32
    %219 = vector.broadcast %cst_69 : f32 to vector<8x32xf32>
    %220 = arith.subf %219, %211 : vector<8x32xf32>
    %221 = arith.mulf %220, %218 : vector<8x32xf32>
    %222 = arith.mulf %211, %166 : vector<8x32xf32>
    %223 = arith.addf %221, %222 : vector<8x32xf32>
    %224 = vector.broadcast %167 : i32 to vector<8x1xi32>
    %225 = arith.cmpi slt, %224, %23 : vector<8x1xi32>
    %226 = vector.shape_cast %225 : vector<8x1xi1> to vector<8x1xi1>
    %227 = vector.broadcast %226 : vector<8x1xi1> to vector<8x32xi1>
    %228 = arith.select %227, %196, %161 : vector<8x32xi1>, vector<8x32xf32>
    %229 = vector.broadcast %169 : i32 to vector<8x1xi32>
    %230 = arith.cmpi slt, %229, %23 : vector<8x1xi32>
    %231 = vector.shape_cast %230 : vector<8x1xi1> to vector<8x1xi1>
    %232 = vector.broadcast %231 : vector<8x1xi1> to vector<8x32xi1>
    %233 = arith.select %232, %223, %166 : vector<8x32xi1>, vector<8x32xf32>
    %c3_i32 = arith.constant 3 : i32
    %234 = arith.addi %28, %c3_i32 : i32
    %c7_i32_70 = arith.constant 7 : i32
    %235 = arith.subi %c7_i32_70, %c3_i32 : i32
    %236 = arith.addi %30, %235 : i32
    %237 = arith.index_cast %c3_i32 : i32 to index
    %c0_71 = arith.constant 0 : index
    %c0_72 = arith.constant 0 : index
    %238 = vector.load %arg23[%237, %c0_71, %c0_72] : memref<8x8x96xf32, #tpu.memory_space<vmem>>, vector<1x8x96xf32>
    %239 = vector.shape_cast %238 : vector<1x8x96xf32> to vector<8x96xf32>
    %240 = arith.truncf %228 : vector<8x32xf32> to vector<8x32xbf16>
    %cst_73 = arith.constant dense<0.000000e+00> : vector<8x96xf32>
    %241 = tpu.matmul %240, %24, %cst_73 {dimension_numbers = #tpu.dot_dimension_numbers<[1], [0], [0], [1], [0, 0, 1, 1], [], []>} : vector<8x32xbf16>, vector<32x96xbf16>, vector<8x96xf32> -> vector<8x96xf32>
    %242 = vector.extract_strided_slice %239 {offsets = [0, 0], sizes = [8, 64], strides = [1, 1]} : vector<8x96xf32> to vector<8x64xf32>
    %243 = vector.extract_strided_slice %241 {offsets = [0, 0], sizes = [8, 64], strides = [1, 1]} : vector<8x96xf32> to vector<8x64xf32>
    %244 = arith.addf %242, %243 : vector<8x64xf32>
    %245 = arith.negf %244 : vector<8x64xf32>
    %246 = math.exp %245 : vector<8x64xf32>
    %cst_74 = arith.constant 1.000000e+00 : f32
    %247 = vector.broadcast %cst_74 : f32 to vector<8x64xf32>
    %248 = arith.addf %247, %246 : vector<8x64xf32>
    %249 = arith.divf %247, %248 : vector<8x64xf32>
    %250 = vector.extract_strided_slice %249 {offsets = [0, 0], sizes = [8, 32], strides = [1, 1]} : vector<8x64xf32> to vector<8x32xf32>
    %251 = vector.extract_strided_slice %249 {offsets = [0, 32], sizes = [8, 32], strides = [1, 1]} : vector<8x64xf32> to vector<8x32xf32>
    %252 = vector.extract_strided_slice %239 {offsets = [0, 64], sizes = [8, 32], strides = [1, 1]} : vector<8x96xf32> to vector<8x32xf32>
    %253 = vector.extract_strided_slice %241 {offsets = [0, 64], sizes = [8, 32], strides = [1, 1]} : vector<8x96xf32> to vector<8x32xf32>
    %254 = vector.broadcast %26 : vector<1x32xf32> to vector<8x32xf32>
    %255 = arith.addf %253, %254 : vector<8x32xf32>
    %256 = arith.mulf %250, %255 : vector<8x32xf32>
    %257 = arith.addf %252, %256 : vector<8x32xf32>
    %258 = math.tanh %257 : vector<8x32xf32>
    %cst_75 = arith.constant 1.000000e+00 : f32
    %259 = vector.broadcast %cst_75 : f32 to vector<8x32xf32>
    %260 = arith.subf %259, %251 : vector<8x32xf32>
    %261 = arith.mulf %260, %258 : vector<8x32xf32>
    %262 = arith.mulf %251, %228 : vector<8x32xf32>
    %263 = arith.addf %261, %262 : vector<8x32xf32>
    %264 = arith.index_cast %235 : i32 to index
    %c0_76 = arith.constant 0 : index
    %c0_77 = arith.constant 0 : index
    %265 = vector.load %arg24[%264, %c0_76, %c0_77] : memref<8x8x96xf32, #tpu.memory_space<vmem>>, vector<1x8x96xf32>
    %266 = vector.shape_cast %265 : vector<1x8x96xf32> to vector<8x96xf32>
    %267 = arith.truncf %233 : vector<8x32xf32> to vector<8x32xbf16>
    %cst_78 = arith.constant dense<0.000000e+00> : vector<8x96xf32>
    %268 = tpu.matmul %267, %25, %cst_78 {dimension_numbers = #tpu.dot_dimension_numbers<[1], [0], [0], [1], [0, 0, 1, 1], [], []>} : vector<8x32xbf16>, vector<32x96xbf16>, vector<8x96xf32> -> vector<8x96xf32>
    %269 = vector.extract_strided_slice %266 {offsets = [0, 0], sizes = [8, 64], strides = [1, 1]} : vector<8x96xf32> to vector<8x64xf32>
    %270 = vector.extract_strided_slice %268 {offsets = [0, 0], sizes = [8, 64], strides = [1, 1]} : vector<8x96xf32> to vector<8x64xf32>
    %271 = arith.addf %269, %270 : vector<8x64xf32>
    %272 = arith.negf %271 : vector<8x64xf32>
    %273 = math.exp %272 : vector<8x64xf32>
    %cst_79 = arith.constant 1.000000e+00 : f32
    %274 = vector.broadcast %cst_79 : f32 to vector<8x64xf32>
    %275 = arith.addf %274, %273 : vector<8x64xf32>
    %276 = arith.divf %274, %275 : vector<8x64xf32>
    %277 = vector.extract_strided_slice %276 {offsets = [0, 0], sizes = [8, 32], strides = [1, 1]} : vector<8x64xf32> to vector<8x32xf32>
    %278 = vector.extract_strided_slice %276 {offsets = [0, 32], sizes = [8, 32], strides = [1, 1]} : vector<8x64xf32> to vector<8x32xf32>
    %279 = vector.extract_strided_slice %266 {offsets = [0, 64], sizes = [8, 32], strides = [1, 1]} : vector<8x96xf32> to vector<8x32xf32>
    %280 = vector.extract_strided_slice %268 {offsets = [0, 64], sizes = [8, 32], strides = [1, 1]} : vector<8x96xf32> to vector<8x32xf32>
    %281 = vector.broadcast %27 : vector<1x32xf32> to vector<8x32xf32>
    %282 = arith.addf %280, %281 : vector<8x32xf32>
    %283 = arith.mulf %277, %282 : vector<8x32xf32>
    %284 = arith.addf %279, %283 : vector<8x32xf32>
    %285 = math.tanh %284 : vector<8x32xf32>
    %cst_80 = arith.constant 1.000000e+00 : f32
    %286 = vector.broadcast %cst_80 : f32 to vector<8x32xf32>
    %287 = arith.subf %286, %278 : vector<8x32xf32>
    %288 = arith.mulf %287, %285 : vector<8x32xf32>
    %289 = arith.mulf %278, %233 : vector<8x32xf32>
    %290 = arith.addf %288, %289 : vector<8x32xf32>
    %291 = vector.broadcast %234 : i32 to vector<8x1xi32>
    %292 = arith.cmpi slt, %291, %23 : vector<8x1xi32>
    %293 = vector.shape_cast %292 : vector<8x1xi1> to vector<8x1xi1>
    %294 = vector.broadcast %293 : vector<8x1xi1> to vector<8x32xi1>
    %295 = arith.select %294, %263, %228 : vector<8x32xi1>, vector<8x32xf32>
    %296 = vector.broadcast %236 : i32 to vector<8x1xi32>
    %297 = arith.cmpi slt, %296, %23 : vector<8x1xi32>
    %298 = vector.shape_cast %297 : vector<8x1xi1> to vector<8x1xi1>
    %299 = vector.broadcast %298 : vector<8x1xi1> to vector<8x32xi1>
    %300 = arith.select %299, %290, %233 : vector<8x32xi1>, vector<8x32xf32>
    %c4_i32 = arith.constant 4 : i32
    %301 = arith.addi %28, %c4_i32 : i32
    %c7_i32_81 = arith.constant 7 : i32
    %302 = arith.subi %c7_i32_81, %c4_i32 : i32
    %303 = arith.addi %30, %302 : i32
    %304 = arith.index_cast %c4_i32 : i32 to index
    %c0_82 = arith.constant 0 : index
    %c0_83 = arith.constant 0 : index
    %305 = vector.load %arg23[%304, %c0_82, %c0_83] : memref<8x8x96xf32, #tpu.memory_space<vmem>>, vector<1x8x96xf32>
    %306 = vector.shape_cast %305 : vector<1x8x96xf32> to vector<8x96xf32>
    %307 = arith.truncf %295 : vector<8x32xf32> to vector<8x32xbf16>
    %cst_84 = arith.constant dense<0.000000e+00> : vector<8x96xf32>
    %308 = tpu.matmul %307, %24, %cst_84 {dimension_numbers = #tpu.dot_dimension_numbers<[1], [0], [0], [1], [0, 0, 1, 1], [], []>} : vector<8x32xbf16>, vector<32x96xbf16>, vector<8x96xf32> -> vector<8x96xf32>
    %309 = vector.extract_strided_slice %306 {offsets = [0, 0], sizes = [8, 64], strides = [1, 1]} : vector<8x96xf32> to vector<8x64xf32>
    %310 = vector.extract_strided_slice %308 {offsets = [0, 0], sizes = [8, 64], strides = [1, 1]} : vector<8x96xf32> to vector<8x64xf32>
    %311 = arith.addf %309, %310 : vector<8x64xf32>
    %312 = arith.negf %311 : vector<8x64xf32>
    %313 = math.exp %312 : vector<8x64xf32>
    %cst_85 = arith.constant 1.000000e+00 : f32
    %314 = vector.broadcast %cst_85 : f32 to vector<8x64xf32>
    %315 = arith.addf %314, %313 : vector<8x64xf32>
    %316 = arith.divf %314, %315 : vector<8x64xf32>
    %317 = vector.extract_strided_slice %316 {offsets = [0, 0], sizes = [8, 32], strides = [1, 1]} : vector<8x64xf32> to vector<8x32xf32>
    %318 = vector.extract_strided_slice %316 {offsets = [0, 32], sizes = [8, 32], strides = [1, 1]} : vector<8x64xf32> to vector<8x32xf32>
    %319 = vector.extract_strided_slice %306 {offsets = [0, 64], sizes = [8, 32], strides = [1, 1]} : vector<8x96xf32> to vector<8x32xf32>
    %320 = vector.extract_strided_slice %308 {offsets = [0, 64], sizes = [8, 32], strides = [1, 1]} : vector<8x96xf32> to vector<8x32xf32>
    %321 = vector.broadcast %26 : vector<1x32xf32> to vector<8x32xf32>
    %322 = arith.addf %320, %321 : vector<8x32xf32>
    %323 = arith.mulf %317, %322 : vector<8x32xf32>
    %324 = arith.addf %319, %323 : vector<8x32xf32>
    %325 = math.tanh %324 : vector<8x32xf32>
    %cst_86 = arith.constant 1.000000e+00 : f32
    %326 = vector.broadcast %cst_86 : f32 to vector<8x32xf32>
    %327 = arith.subf %326, %318 : vector<8x32xf32>
    %328 = arith.mulf %327, %325 : vector<8x32xf32>
    %329 = arith.mulf %318, %295 : vector<8x32xf32>
    %330 = arith.addf %328, %329 : vector<8x32xf32>
    %331 = arith.index_cast %302 : i32 to index
    %c0_87 = arith.constant 0 : index
    %c0_88 = arith.constant 0 : index
    %332 = vector.load %arg24[%331, %c0_87, %c0_88] : memref<8x8x96xf32, #tpu.memory_space<vmem>>, vector<1x8x96xf32>
    %333 = vector.shape_cast %332 : vector<1x8x96xf32> to vector<8x96xf32>
    %334 = arith.truncf %300 : vector<8x32xf32> to vector<8x32xbf16>
    %cst_89 = arith.constant dense<0.000000e+00> : vector<8x96xf32>
    %335 = tpu.matmul %334, %25, %cst_89 {dimension_numbers = #tpu.dot_dimension_numbers<[1], [0], [0], [1], [0, 0, 1, 1], [], []>} : vector<8x32xbf16>, vector<32x96xbf16>, vector<8x96xf32> -> vector<8x96xf32>
    %336 = vector.extract_strided_slice %333 {offsets = [0, 0], sizes = [8, 64], strides = [1, 1]} : vector<8x96xf32> to vector<8x64xf32>
    %337 = vector.extract_strided_slice %335 {offsets = [0, 0], sizes = [8, 64], strides = [1, 1]} : vector<8x96xf32> to vector<8x64xf32>
    %338 = arith.addf %336, %337 : vector<8x64xf32>
    %339 = arith.negf %338 : vector<8x64xf32>
    %340 = math.exp %339 : vector<8x64xf32>
    %cst_90 = arith.constant 1.000000e+00 : f32
    %341 = vector.broadcast %cst_90 : f32 to vector<8x64xf32>
    %342 = arith.addf %341, %340 : vector<8x64xf32>
    %343 = arith.divf %341, %342 : vector<8x64xf32>
    %344 = vector.extract_strided_slice %343 {offsets = [0, 0], sizes = [8, 32], strides = [1, 1]} : vector<8x64xf32> to vector<8x32xf32>
    %345 = vector.extract_strided_slice %343 {offsets = [0, 32], sizes = [8, 32], strides = [1, 1]} : vector<8x64xf32> to vector<8x32xf32>
    %346 = vector.extract_strided_slice %333 {offsets = [0, 64], sizes = [8, 32], strides = [1, 1]} : vector<8x96xf32> to vector<8x32xf32>
    %347 = vector.extract_strided_slice %335 {offsets = [0, 64], sizes = [8, 32], strides = [1, 1]} : vector<8x96xf32> to vector<8x32xf32>
    %348 = vector.broadcast %27 : vector<1x32xf32> to vector<8x32xf32>
    %349 = arith.addf %347, %348 : vector<8x32xf32>
    %350 = arith.mulf %344, %349 : vector<8x32xf32>
    %351 = arith.addf %346, %350 : vector<8x32xf32>
    %352 = math.tanh %351 : vector<8x32xf32>
    %cst_91 = arith.constant 1.000000e+00 : f32
    %353 = vector.broadcast %cst_91 : f32 to vector<8x32xf32>
    %354 = arith.subf %353, %345 : vector<8x32xf32>
    %355 = arith.mulf %354, %352 : vector<8x32xf32>
    %356 = arith.mulf %345, %300 : vector<8x32xf32>
    %357 = arith.addf %355, %356 : vector<8x32xf32>
    %358 = vector.broadcast %301 : i32 to vector<8x1xi32>
    %359 = arith.cmpi slt, %358, %23 : vector<8x1xi32>
    %360 = vector.shape_cast %359 : vector<8x1xi1> to vector<8x1xi1>
    %361 = vector.broadcast %360 : vector<8x1xi1> to vector<8x32xi1>
    %362 = arith.select %361, %330, %295 : vector<8x32xi1>, vector<8x32xf32>
    %363 = vector.broadcast %303 : i32 to vector<8x1xi32>
    %364 = arith.cmpi slt, %363, %23 : vector<8x1xi32>
    %365 = vector.shape_cast %364 : vector<8x1xi1> to vector<8x1xi1>
    %366 = vector.broadcast %365 : vector<8x1xi1> to vector<8x32xi1>
    %367 = arith.select %366, %357, %300 : vector<8x32xi1>, vector<8x32xf32>
    %c5_i32 = arith.constant 5 : i32
    %368 = arith.addi %28, %c5_i32 : i32
    %c7_i32_92 = arith.constant 7 : i32
    %369 = arith.subi %c7_i32_92, %c5_i32 : i32
    %370 = arith.addi %30, %369 : i32
    %371 = arith.index_cast %c5_i32 : i32 to index
    %c0_93 = arith.constant 0 : index
    %c0_94 = arith.constant 0 : index
    %372 = vector.load %arg23[%371, %c0_93, %c0_94] : memref<8x8x96xf32, #tpu.memory_space<vmem>>, vector<1x8x96xf32>
    %373 = vector.shape_cast %372 : vector<1x8x96xf32> to vector<8x96xf32>
    %374 = arith.truncf %362 : vector<8x32xf32> to vector<8x32xbf16>
    %cst_95 = arith.constant dense<0.000000e+00> : vector<8x96xf32>
    %375 = tpu.matmul %374, %24, %cst_95 {dimension_numbers = #tpu.dot_dimension_numbers<[1], [0], [0], [1], [0, 0, 1, 1], [], []>} : vector<8x32xbf16>, vector<32x96xbf16>, vector<8x96xf32> -> vector<8x96xf32>
    %376 = vector.extract_strided_slice %373 {offsets = [0, 0], sizes = [8, 64], strides = [1, 1]} : vector<8x96xf32> to vector<8x64xf32>
    %377 = vector.extract_strided_slice %375 {offsets = [0, 0], sizes = [8, 64], strides = [1, 1]} : vector<8x96xf32> to vector<8x64xf32>
    %378 = arith.addf %376, %377 : vector<8x64xf32>
    %379 = arith.negf %378 : vector<8x64xf32>
    %380 = math.exp %379 : vector<8x64xf32>
    %cst_96 = arith.constant 1.000000e+00 : f32
    %381 = vector.broadcast %cst_96 : f32 to vector<8x64xf32>
    %382 = arith.addf %381, %380 : vector<8x64xf32>
    %383 = arith.divf %381, %382 : vector<8x64xf32>
    %384 = vector.extract_strided_slice %383 {offsets = [0, 0], sizes = [8, 32], strides = [1, 1]} : vector<8x64xf32> to vector<8x32xf32>
    %385 = vector.extract_strided_slice %383 {offsets = [0, 32], sizes = [8, 32], strides = [1, 1]} : vector<8x64xf32> to vector<8x32xf32>
    %386 = vector.extract_strided_slice %373 {offsets = [0, 64], sizes = [8, 32], strides = [1, 1]} : vector<8x96xf32> to vector<8x32xf32>
    %387 = vector.extract_strided_slice %375 {offsets = [0, 64], sizes = [8, 32], strides = [1, 1]} : vector<8x96xf32> to vector<8x32xf32>
    %388 = vector.broadcast %26 : vector<1x32xf32> to vector<8x32xf32>
    %389 = arith.addf %387, %388 : vector<8x32xf32>
    %390 = arith.mulf %384, %389 : vector<8x32xf32>
    %391 = arith.addf %386, %390 : vector<8x32xf32>
    %392 = math.tanh %391 : vector<8x32xf32>
    %cst_97 = arith.constant 1.000000e+00 : f32
    %393 = vector.broadcast %cst_97 : f32 to vector<8x32xf32>
    %394 = arith.subf %393, %385 : vector<8x32xf32>
    %395 = arith.mulf %394, %392 : vector<8x32xf32>
    %396 = arith.mulf %385, %362 : vector<8x32xf32>
    %397 = arith.addf %395, %396 : vector<8x32xf32>
    %398 = arith.index_cast %369 : i32 to index
    %c0_98 = arith.constant 0 : index
    %c0_99 = arith.constant 0 : index
    %399 = vector.load %arg24[%398, %c0_98, %c0_99] : memref<8x8x96xf32, #tpu.memory_space<vmem>>, vector<1x8x96xf32>
    %400 = vector.shape_cast %399 : vector<1x8x96xf32> to vector<8x96xf32>
    %401 = arith.truncf %367 : vector<8x32xf32> to vector<8x32xbf16>
    %cst_100 = arith.constant dense<0.000000e+00> : vector<8x96xf32>
    %402 = tpu.matmul %401, %25, %cst_100 {dimension_numbers = #tpu.dot_dimension_numbers<[1], [0], [0], [1], [0, 0, 1, 1], [], []>} : vector<8x32xbf16>, vector<32x96xbf16>, vector<8x96xf32> -> vector<8x96xf32>
    %403 = vector.extract_strided_slice %400 {offsets = [0, 0], sizes = [8, 64], strides = [1, 1]} : vector<8x96xf32> to vector<8x64xf32>
    %404 = vector.extract_strided_slice %402 {offsets = [0, 0], sizes = [8, 64], strides = [1, 1]} : vector<8x96xf32> to vector<8x64xf32>
    %405 = arith.addf %403, %404 : vector<8x64xf32>
    %406 = arith.negf %405 : vector<8x64xf32>
    %407 = math.exp %406 : vector<8x64xf32>
    %cst_101 = arith.constant 1.000000e+00 : f32
    %408 = vector.broadcast %cst_101 : f32 to vector<8x64xf32>
    %409 = arith.addf %408, %407 : vector<8x64xf32>
    %410 = arith.divf %408, %409 : vector<8x64xf32>
    %411 = vector.extract_strided_slice %410 {offsets = [0, 0], sizes = [8, 32], strides = [1, 1]} : vector<8x64xf32> to vector<8x32xf32>
    %412 = vector.extract_strided_slice %410 {offsets = [0, 32], sizes = [8, 32], strides = [1, 1]} : vector<8x64xf32> to vector<8x32xf32>
    %413 = vector.extract_strided_slice %400 {offsets = [0, 64], sizes = [8, 32], strides = [1, 1]} : vector<8x96xf32> to vector<8x32xf32>
    %414 = vector.extract_strided_slice %402 {offsets = [0, 64], sizes = [8, 32], strides = [1, 1]} : vector<8x96xf32> to vector<8x32xf32>
    %415 = vector.broadcast %27 : vector<1x32xf32> to vector<8x32xf32>
    %416 = arith.addf %414, %415 : vector<8x32xf32>
    %417 = arith.mulf %411, %416 : vector<8x32xf32>
    %418 = arith.addf %413, %417 : vector<8x32xf32>
    %419 = math.tanh %418 : vector<8x32xf32>
    %cst_102 = arith.constant 1.000000e+00 : f32
    %420 = vector.broadcast %cst_102 : f32 to vector<8x32xf32>
    %421 = arith.subf %420, %412 : vector<8x32xf32>
    %422 = arith.mulf %421, %419 : vector<8x32xf32>
    %423 = arith.mulf %412, %367 : vector<8x32xf32>
    %424 = arith.addf %422, %423 : vector<8x32xf32>
    %425 = vector.broadcast %368 : i32 to vector<8x1xi32>
    %426 = arith.cmpi slt, %425, %23 : vector<8x1xi32>
    %427 = vector.shape_cast %426 : vector<8x1xi1> to vector<8x1xi1>
    %428 = vector.broadcast %427 : vector<8x1xi1> to vector<8x32xi1>
    %429 = arith.select %428, %397, %362 : vector<8x32xi1>, vector<8x32xf32>
    %430 = vector.broadcast %370 : i32 to vector<8x1xi32>
    %431 = arith.cmpi slt, %430, %23 : vector<8x1xi32>
    %432 = vector.shape_cast %431 : vector<8x1xi1> to vector<8x1xi1>
    %433 = vector.broadcast %432 : vector<8x1xi1> to vector<8x32xi1>
    %434 = arith.select %433, %424, %367 : vector<8x32xi1>, vector<8x32xf32>
    %c6_i32 = arith.constant 6 : i32
    %435 = arith.addi %28, %c6_i32 : i32
    %c7_i32_103 = arith.constant 7 : i32
    %436 = arith.subi %c7_i32_103, %c6_i32 : i32
    %437 = arith.addi %30, %436 : i32
    %438 = arith.index_cast %c6_i32 : i32 to index
    %c0_104 = arith.constant 0 : index
    %c0_105 = arith.constant 0 : index
    %439 = vector.load %arg23[%438, %c0_104, %c0_105] : memref<8x8x96xf32, #tpu.memory_space<vmem>>, vector<1x8x96xf32>
    %440 = vector.shape_cast %439 : vector<1x8x96xf32> to vector<8x96xf32>
    %441 = arith.truncf %429 : vector<8x32xf32> to vector<8x32xbf16>
    %cst_106 = arith.constant dense<0.000000e+00> : vector<8x96xf32>
    %442 = tpu.matmul %441, %24, %cst_106 {dimension_numbers = #tpu.dot_dimension_numbers<[1], [0], [0], [1], [0, 0, 1, 1], [], []>} : vector<8x32xbf16>, vector<32x96xbf16>, vector<8x96xf32> -> vector<8x96xf32>
    %443 = vector.extract_strided_slice %440 {offsets = [0, 0], sizes = [8, 64], strides = [1, 1]} : vector<8x96xf32> to vector<8x64xf32>
    %444 = vector.extract_strided_slice %442 {offsets = [0, 0], sizes = [8, 64], strides = [1, 1]} : vector<8x96xf32> to vector<8x64xf32>
    %445 = arith.addf %443, %444 : vector<8x64xf32>
    %446 = arith.negf %445 : vector<8x64xf32>
    %447 = math.exp %446 : vector<8x64xf32>
    %cst_107 = arith.constant 1.000000e+00 : f32
    %448 = vector.broadcast %cst_107 : f32 to vector<8x64xf32>
    %449 = arith.addf %448, %447 : vector<8x64xf32>
    %450 = arith.divf %448, %449 : vector<8x64xf32>
    %451 = vector.extract_strided_slice %450 {offsets = [0, 0], sizes = [8, 32], strides = [1, 1]} : vector<8x64xf32> to vector<8x32xf32>
    %452 = vector.extract_strided_slice %450 {offsets = [0, 32], sizes = [8, 32], strides = [1, 1]} : vector<8x64xf32> to vector<8x32xf32>
    %453 = vector.extract_strided_slice %440 {offsets = [0, 64], sizes = [8, 32], strides = [1, 1]} : vector<8x96xf32> to vector<8x32xf32>
    %454 = vector.extract_strided_slice %442 {offsets = [0, 64], sizes = [8, 32], strides = [1, 1]} : vector<8x96xf32> to vector<8x32xf32>
    %455 = vector.broadcast %26 : vector<1x32xf32> to vector<8x32xf32>
    %456 = arith.addf %454, %455 : vector<8x32xf32>
    %457 = arith.mulf %451, %456 : vector<8x32xf32>
    %458 = arith.addf %453, %457 : vector<8x32xf32>
    %459 = math.tanh %458 : vector<8x32xf32>
    %cst_108 = arith.constant 1.000000e+00 : f32
    %460 = vector.broadcast %cst_108 : f32 to vector<8x32xf32>
    %461 = arith.subf %460, %452 : vector<8x32xf32>
    %462 = arith.mulf %461, %459 : vector<8x32xf32>
    %463 = arith.mulf %452, %429 : vector<8x32xf32>
    %464 = arith.addf %462, %463 : vector<8x32xf32>
    %465 = arith.index_cast %436 : i32 to index
    %c0_109 = arith.constant 0 : index
    %c0_110 = arith.constant 0 : index
    %466 = vector.load %arg24[%465, %c0_109, %c0_110] : memref<8x8x96xf32, #tpu.memory_space<vmem>>, vector<1x8x96xf32>
    %467 = vector.shape_cast %466 : vector<1x8x96xf32> to vector<8x96xf32>
    %468 = arith.truncf %434 : vector<8x32xf32> to vector<8x32xbf16>
    %cst_111 = arith.constant dense<0.000000e+00> : vector<8x96xf32>
    %469 = tpu.matmul %468, %25, %cst_111 {dimension_numbers = #tpu.dot_dimension_numbers<[1], [0], [0], [1], [0, 0, 1, 1], [], []>} : vector<8x32xbf16>, vector<32x96xbf16>, vector<8x96xf32> -> vector<8x96xf32>
    %470 = vector.extract_strided_slice %467 {offsets = [0, 0], sizes = [8, 64], strides = [1, 1]} : vector<8x96xf32> to vector<8x64xf32>
    %471 = vector.extract_strided_slice %469 {offsets = [0, 0], sizes = [8, 64], strides = [1, 1]} : vector<8x96xf32> to vector<8x64xf32>
    %472 = arith.addf %470, %471 : vector<8x64xf32>
    %473 = arith.negf %472 : vector<8x64xf32>
    %474 = math.exp %473 : vector<8x64xf32>
    %cst_112 = arith.constant 1.000000e+00 : f32
    %475 = vector.broadcast %cst_112 : f32 to vector<8x64xf32>
    %476 = arith.addf %475, %474 : vector<8x64xf32>
    %477 = arith.divf %475, %476 : vector<8x64xf32>
    %478 = vector.extract_strided_slice %477 {offsets = [0, 0], sizes = [8, 32], strides = [1, 1]} : vector<8x64xf32> to vector<8x32xf32>
    %479 = vector.extract_strided_slice %477 {offsets = [0, 32], sizes = [8, 32], strides = [1, 1]} : vector<8x64xf32> to vector<8x32xf32>
    %480 = vector.extract_strided_slice %467 {offsets = [0, 64], sizes = [8, 32], strides = [1, 1]} : vector<8x96xf32> to vector<8x32xf32>
    %481 = vector.extract_strided_slice %469 {offsets = [0, 64], sizes = [8, 32], strides = [1, 1]} : vector<8x96xf32> to vector<8x32xf32>
    %482 = vector.broadcast %27 : vector<1x32xf32> to vector<8x32xf32>
    %483 = arith.addf %481, %482 : vector<8x32xf32>
    %484 = arith.mulf %478, %483 : vector<8x32xf32>
    %485 = arith.addf %480, %484 : vector<8x32xf32>
    %486 = math.tanh %485 : vector<8x32xf32>
    %cst_113 = arith.constant 1.000000e+00 : f32
    %487 = vector.broadcast %cst_113 : f32 to vector<8x32xf32>
    %488 = arith.subf %487, %479 : vector<8x32xf32>
    %489 = arith.mulf %488, %486 : vector<8x32xf32>
    %490 = arith.mulf %479, %434 : vector<8x32xf32>
    %491 = arith.addf %489, %490 : vector<8x32xf32>
    %492 = vector.broadcast %435 : i32 to vector<8x1xi32>
    %493 = arith.cmpi slt, %492, %23 : vector<8x1xi32>
    %494 = vector.shape_cast %493 : vector<8x1xi1> to vector<8x1xi1>
    %495 = vector.broadcast %494 : vector<8x1xi1> to vector<8x32xi1>
    %496 = arith.select %495, %464, %429 : vector<8x32xi1>, vector<8x32xf32>
    %497 = vector.broadcast %437 : i32 to vector<8x1xi32>
    %498 = arith.cmpi slt, %497, %23 : vector<8x1xi32>
    %499 = vector.shape_cast %498 : vector<8x1xi1> to vector<8x1xi1>
    %500 = vector.broadcast %499 : vector<8x1xi1> to vector<8x32xi1>
    %501 = arith.select %500, %491, %434 : vector<8x32xi1>, vector<8x32xf32>
    %c7_i32_114 = arith.constant 7 : i32
    %502 = arith.addi %28, %c7_i32_114 : i32
    %c7_i32_115 = arith.constant 7 : i32
    %503 = arith.subi %c7_i32_115, %c7_i32_114 : i32
    %504 = arith.addi %30, %503 : i32
    %505 = arith.index_cast %c7_i32_114 : i32 to index
    %c0_116 = arith.constant 0 : index
    %c0_117 = arith.constant 0 : index
    %506 = vector.load %arg23[%505, %c0_116, %c0_117] : memref<8x8x96xf32, #tpu.memory_space<vmem>>, vector<1x8x96xf32>
    %507 = vector.shape_cast %506 : vector<1x8x96xf32> to vector<8x96xf32>
    %508 = arith.truncf %496 : vector<8x32xf32> to vector<8x32xbf16>
    %cst_118 = arith.constant dense<0.000000e+00> : vector<8x96xf32>
    %509 = tpu.matmul %508, %24, %cst_118 {dimension_numbers = #tpu.dot_dimension_numbers<[1], [0], [0], [1], [0, 0, 1, 1], [], []>} : vector<8x32xbf16>, vector<32x96xbf16>, vector<8x96xf32> -> vector<8x96xf32>
    %510 = vector.extract_strided_slice %507 {offsets = [0, 0], sizes = [8, 64], strides = [1, 1]} : vector<8x96xf32> to vector<8x64xf32>
    %511 = vector.extract_strided_slice %509 {offsets = [0, 0], sizes = [8, 64], strides = [1, 1]} : vector<8x96xf32> to vector<8x64xf32>
    %512 = arith.addf %510, %511 : vector<8x64xf32>
    %513 = arith.negf %512 : vector<8x64xf32>
    %514 = math.exp %513 : vector<8x64xf32>
    %cst_119 = arith.constant 1.000000e+00 : f32
    %515 = vector.broadcast %cst_119 : f32 to vector<8x64xf32>
    %516 = arith.addf %515, %514 : vector<8x64xf32>
    %517 = arith.divf %515, %516 : vector<8x64xf32>
    %518 = vector.extract_strided_slice %517 {offsets = [0, 0], sizes = [8, 32], strides = [1, 1]} : vector<8x64xf32> to vector<8x32xf32>
    %519 = vector.extract_strided_slice %517 {offsets = [0, 32], sizes = [8, 32], strides = [1, 1]} : vector<8x64xf32> to vector<8x32xf32>
    %520 = vector.extract_strided_slice %507 {offsets = [0, 64], sizes = [8, 32], strides = [1, 1]} : vector<8x96xf32> to vector<8x32xf32>
    %521 = vector.extract_strided_slice %509 {offsets = [0, 64], sizes = [8, 32], strides = [1, 1]} : vector<8x96xf32> to vector<8x32xf32>
    %522 = vector.broadcast %26 : vector<1x32xf32> to vector<8x32xf32>
    %523 = arith.addf %521, %522 : vector<8x32xf32>
    %524 = arith.mulf %518, %523 : vector<8x32xf32>
    %525 = arith.addf %520, %524 : vector<8x32xf32>
    %526 = math.tanh %525 : vector<8x32xf32>
    %cst_120 = arith.constant 1.000000e+00 : f32
    %527 = vector.broadcast %cst_120 : f32 to vector<8x32xf32>
    %528 = arith.subf %527, %519 : vector<8x32xf32>
    %529 = arith.mulf %528, %526 : vector<8x32xf32>
    %530 = arith.mulf %519, %496 : vector<8x32xf32>
    %531 = arith.addf %529, %530 : vector<8x32xf32>
    %532 = arith.index_cast %503 : i32 to index
    %c0_121 = arith.constant 0 : index
    %c0_122 = arith.constant 0 : index
    %533 = vector.load %arg24[%532, %c0_121, %c0_122] : memref<8x8x96xf32, #tpu.memory_space<vmem>>, vector<1x8x96xf32>
    %534 = vector.shape_cast %533 : vector<1x8x96xf32> to vector<8x96xf32>
    %535 = arith.truncf %501 : vector<8x32xf32> to vector<8x32xbf16>
    %cst_123 = arith.constant dense<0.000000e+00> : vector<8x96xf32>
    %536 = tpu.matmul %535, %25, %cst_123 {dimension_numbers = #tpu.dot_dimension_numbers<[1], [0], [0], [1], [0, 0, 1, 1], [], []>} : vector<8x32xbf16>, vector<32x96xbf16>, vector<8x96xf32> -> vector<8x96xf32>
    %537 = vector.extract_strided_slice %534 {offsets = [0, 0], sizes = [8, 64], strides = [1, 1]} : vector<8x96xf32> to vector<8x64xf32>
    %538 = vector.extract_strided_slice %536 {offsets = [0, 0], sizes = [8, 64], strides = [1, 1]} : vector<8x96xf32> to vector<8x64xf32>
    %539 = arith.addf %537, %538 : vector<8x64xf32>
    %540 = arith.negf %539 : vector<8x64xf32>
    %541 = math.exp %540 : vector<8x64xf32>
    %cst_124 = arith.constant 1.000000e+00 : f32
    %542 = vector.broadcast %cst_124 : f32 to vector<8x64xf32>
    %543 = arith.addf %542, %541 : vector<8x64xf32>
    %544 = arith.divf %542, %543 : vector<8x64xf32>
    %545 = vector.extract_strided_slice %544 {offsets = [0, 0], sizes = [8, 32], strides = [1, 1]} : vector<8x64xf32> to vector<8x32xf32>
    %546 = vector.extract_strided_slice %544 {offsets = [0, 32], sizes = [8, 32], strides = [1, 1]} : vector<8x64xf32> to vector<8x32xf32>
    %547 = vector.extract_strided_slice %534 {offsets = [0, 64], sizes = [8, 32], strides = [1, 1]} : vector<8x96xf32> to vector<8x32xf32>
    %548 = vector.extract_strided_slice %536 {offsets = [0, 64], sizes = [8, 32], strides = [1, 1]} : vector<8x96xf32> to vector<8x32xf32>
    %549 = vector.broadcast %27 : vector<1x32xf32> to vector<8x32xf32>
    %550 = arith.addf %548, %549 : vector<8x32xf32>
    %551 = arith.mulf %545, %550 : vector<8x32xf32>
    %552 = arith.addf %547, %551 : vector<8x32xf32>
    %553 = math.tanh %552 : vector<8x32xf32>
    %cst_125 = arith.constant 1.000000e+00 : f32
    %554 = vector.broadcast %cst_125 : f32 to vector<8x32xf32>
    %555 = arith.subf %554, %546 : vector<8x32xf32>
    %556 = arith.mulf %555, %553 : vector<8x32xf32>
    %557 = arith.mulf %546, %501 : vector<8x32xf32>
    %558 = arith.addf %556, %557 : vector<8x32xf32>
    %559 = vector.broadcast %502 : i32 to vector<8x1xi32>
    %560 = arith.cmpi slt, %559, %23 : vector<8x1xi32>
    %561 = vector.shape_cast %560 : vector<8x1xi1> to vector<8x1xi1>
    %562 = vector.broadcast %561 : vector<8x1xi1> to vector<8x32xi1>
    %563 = arith.select %562, %531, %496 : vector<8x32xi1>, vector<8x32xf32>
    %564 = vector.broadcast %504 : i32 to vector<8x1xi32>
    %565 = arith.cmpi slt, %564, %23 : vector<8x1xi32>
    %566 = vector.shape_cast %565 : vector<8x1xi1> to vector<8x1xi1>
    %567 = vector.broadcast %566 : vector<8x1xi1> to vector<8x32xi1>
    %568 = arith.select %567, %558, %501 : vector<8x32xi1>, vector<8x32xf32>
    %c8_i32_126 = arith.constant 8 : i32
    %c0_127 = arith.constant 0 : index
    %c0_128 = arith.constant 0 : index
    %569 = vector.load %arg25[%c0_127, %c0_128] : memref<8x32xf32, #tpu.memory_space<vmem>>, vector<8x32xf32>
    tpu.vector_store %arg25[%c0_127, %c0_128], %563 {strides = array<i32>} : memref<8x32xf32, #tpu.memory_space<vmem>>, vector<8x32xf32>,
    %c0_129 = arith.constant 0 : index
    %c0_130 = arith.constant 0 : index
    %570 = vector.load %arg26[%c0_129, %c0_130] : memref<8x32xf32, #tpu.memory_space<vmem>>, vector<8x32xf32>
    tpu.vector_store %arg26[%c0_129, %c0_130], %568 {strides = array<i32>} : memref<8x32xf32, #tpu.memory_space<vmem>>, vector<8x32xf32>,
    %c0_i32_131 = arith.constant 0 : i32
    %571 = arith.cmpi eq, %arg1, %c0_i32_131 : i32
    %572 = arith.extui %571 : i1 to i32
    %c0_i32_132 = arith.constant 0 : i32
    %573 = arith.cmpi ne, %572, %c0_i32_132 : i32
    scf.if %573 {
      %c0_133 = arith.constant 0 : index
      %c0_134 = arith.constant 0 : index
      %574 = vector.load %arg15[%c0_133, %c0_134] : memref<32x32xf32, #tpu.memory_space<vmem>>, vector<32x32xf32>
      %cst_135 = arith.constant dense<0.000000e+00> : vector<8x32xf32>
      %575 = tpu.matmul %563, %574, %cst_135 {dimension_numbers = #tpu.dot_dimension_numbers<[1], [0], [0], [1], [0, 0, 1, 1], [], []>} : vector<8x32xf32>, vector<32x32xf32>, vector<8x32xf32> -> vector<8x32xf32>
      %c0_136 = arith.constant 0 : index
      %c0_137 = arith.constant 0 : index
      %576 = vector.load %arg16[%c0_136, %c0_137] : memref<32x32xf32, #tpu.memory_space<vmem>>, vector<32x32xf32>
      %cst_138 = arith.constant dense<0.000000e+00> : vector<8x32xf32>
      %577 = tpu.matmul %568, %576, %cst_138 {dimension_numbers = #tpu.dot_dimension_numbers<[1], [0], [0], [1], [0, 0, 1, 1], [], []>} : vector<8x32xf32>, vector<32x32xf32>, vector<8x32xf32> -> vector<8x32xf32>
      %578 = arith.addf %575, %577 : vector<8x32xf32>
      %c0_139 = arith.constant 0 : index
      %c0_140 = arith.constant 0 : index
      %579 = vector.load %arg17[%c0_139, %c0_140] : memref<1x32xf32, #tpu.memory_space<vmem>>, vector<1x32xf32>
      %580 = vector.broadcast %579 : vector<1x32xf32> to vector<8x32xf32>
      %581 = arith.addf %578, %580 : vector<8x32xf32>
      %cst_141 = arith.constant dense<0.000000e+00> : vector<8xf32>
      %582 = vector.multi_reduction <add>, %581, %cst_141 [1] : vector<8x32xf32> to vector<8xf32>
      %583 = vector.shape_cast %582 : vector<8xf32> to vector<8x1xf32>
      %cst_142 = arith.constant 3.200000e+01 : f32
      %584 = vector.broadcast %cst_142 : f32 to vector<8x1xf32>
      %585 = arith.divf %583, %584 : vector<8x1xf32>
      %586 = vector.broadcast %585 : vector<8x1xf32> to vector<8x32xf32>
      %587 = arith.subf %581, %586 : vector<8x32xf32>
      %588 = arith.mulf %587, %587 : vector<8x32xf32>
      %cst_143 = arith.constant dense<0.000000e+00> : vector<8xf32>
      %589 = vector.multi_reduction <add>, %588, %cst_143 [1] : vector<8x32xf32> to vector<8xf32>
      %590 = vector.shape_cast %589 : vector<8xf32> to vector<8x1xf32>
      %cst_144 = arith.constant 3.200000e+01 : f32
      %591 = vector.broadcast %cst_144 : f32 to vector<8x1xf32>
      %592 = arith.divf %590, %591 : vector<8x1xf32>
      %593 = vector.broadcast %585 : vector<8x1xf32> to vector<8x32xf32>
      %594 = arith.subf %581, %593 : vector<8x32xf32>
      %cst_145 = arith.constant 9.99999974E-6 : f32
      %595 = vector.broadcast %cst_145 : f32 to vector<8x1xf32>
      %596 = arith.addf %592, %595 : vector<8x1xf32>
      %597 = math.rsqrt %596 : vector<8x1xf32>
      %598 = vector.broadcast %597 : vector<8x1xf32> to vector<8x32xf32>
      %599 = arith.mulf %594, %598 : vector<8x32xf32>
      %c0_146 = arith.constant 0 : index
      %c0_147 = arith.constant 0 : index
      %600 = vector.load %arg18[%c0_146, %c0_147] : memref<1x32xf32, #tpu.memory_space<vmem>>, vector<1x32xf32>
      %601 = vector.broadcast %600 : vector<1x32xf32> to vector<8x32xf32>
      %602 = arith.mulf %599, %601 : vector<8x32xf32>
      %c0_148 = arith.constant 0 : index
      %c0_149 = arith.constant 0 : index
      %603 = vector.load %arg19[%c0_148, %c0_149] : memref<1x32xf32, #tpu.memory_space<vmem>>, vector<1x32xf32>
      %604 = vector.broadcast %603 : vector<1x32xf32> to vector<8x32xf32>
      %605 = arith.addf %602, %604 : vector<8x32xf32>
      %cst_150 = arith.constant 0.000000e+00 : f32
      %606 = vector.broadcast %cst_150 : f32 to vector<8x32xf32>
      %607 = arith.cmpf ogt, %605, %606 : vector<8x32xf32>
      %cst_151 = arith.constant 2.000000e-01 : f32
      %608 = vector.broadcast %cst_151 : f32 to vector<8x32xf32>
      %609 = arith.mulf %608, %605 : vector<8x32xf32>
      %610 = arith.select %607, %605, %609 : vector<8x32xi1>, vector<8x32xf32>
      %c0_152 = arith.constant 0 : index
      %c0_153 = arith.constant 0 : index
      %611 = vector.load %arg20[%c0_152, %c0_153] : memref<32x32xf32, #tpu.memory_space<vmem>>, vector<32x32xf32>
      %cst_154 = arith.constant dense<0.000000e+00> : vector<8x32xf32>
      %612 = tpu.matmul %610, %611, %cst_154 {dimension_numbers = #tpu.dot_dimension_numbers<[1], [0], [0], [1], [0, 0, 1, 1], [], []>} : vector<8x32xf32>, vector<32x32xf32>, vector<8x32xf32> -> vector<8x32xf32>
      %c0_155 = arith.constant 0 : index
      %c0_156 = arith.constant 0 : index
      %613 = vector.load %arg21[%c0_155, %c0_156] : memref<1x32xf32, #tpu.memory_space<vmem>>, vector<1x32xf32>
      %614 = vector.broadcast %613 : vector<1x32xf32> to vector<8x32xf32>
      %615 = arith.addf %612, %614 : vector<8x32xf32>
      %c0_157 = arith.constant 0 : index
      %c0_158 = arith.constant 0 : index
      %616 = vector.load %arg22[%c0_157, %c0_158] : memref<8x32xf32, #tpu.memory_space<vmem>>, vector<8x32xf32>
      tpu.vector_store %arg22[%c0_157, %c0_158], %615 {strides = array<i32>} : memref<8x32xf32, #tpu.memory_space<vmem>>, vector<8x32xf32>,
    } else {
    }
    return
  }
  func.func @transform_0(%arg0: i32, %arg1: i32) -> (i32, i32, i32) {
    %c0_i32 = arith.constant 0 : i32
    %c0_i32_0 = arith.constant 0 : i32
    return %arg1, %arg0, %c0_i32 : i32, i32, i32
  }
  func.func @transform_1(%arg0: i32, %arg1: i32) -> (i32, i32, i32) {
    %c0_i32 = arith.constant 0 : i32
    %0 = arith.subi %c0_i32, %arg1 : i32
    %c0_i32_0 = arith.constant 0 : i32
    %c0_i32_1 = arith.constant 0 : i32
    return %0, %arg0, %c0_i32_0 : i32, i32, i32
  }
  func.func @transform_2(%arg0: i32, %arg1: i32) -> (i32, i32) {
    %c0_i32 = arith.constant 0 : i32
    %c0_i32_0 = arith.constant 0 : i32
    return %arg0, %c0_i32 : i32, i32
  }
  func.func @transform_3(%arg0: i32, %arg1: i32) -> (i32, i32) {
    %c0_i32 = arith.constant 0 : i32
    %c0_i32_0 = arith.constant 0 : i32
    %c0_i32_1 = arith.constant 0 : i32
    return %c0_i32, %c0_i32_0 : i32, i32
  }
  func.func @transform_4(%arg0: i32, %arg1: i32) -> (i32, i32) {
    %c0_i32 = arith.constant 0 : i32
    %c0_i32_0 = arith.constant 0 : i32
    %c0_i32_1 = arith.constant 0 : i32
    return %c0_i32, %c0_i32_0 : i32, i32
  }
  func.func @transform_5(%arg0: i32, %arg1: i32) -> (i32, i32) {
    %c0_i32 = arith.constant 0 : i32
    %c0_i32_0 = arith.constant 0 : i32
    %c0_i32_1 = arith.constant 0 : i32
    return %c0_i32, %c0_i32_0 : i32, i32
  }
  func.func @transform_6(%arg0: i32, %arg1: i32) -> (i32, i32) {
    %c0_i32 = arith.constant 0 : i32
    %c0_i32_0 = arith.constant 0 : i32
    %c0_i32_1 = arith.constant 0 : i32
    return %c0_i32, %c0_i32_0 : i32, i32
  }
  func.func @transform_7(%arg0: i32, %arg1: i32) -> (i32, i32) {
    %c0_i32 = arith.constant 0 : i32
    %c0_i32_0 = arith.constant 0 : i32
    %c0_i32_1 = arith.constant 0 : i32
    return %c0_i32, %c0_i32_0 : i32, i32
  }
  func.func @transform_8(%arg0: i32, %arg1: i32) -> (i32, i32) {
    %c0_i32 = arith.constant 0 : i32
    %c0_i32_0 = arith.constant 0 : i32
    %c0_i32_1 = arith.constant 0 : i32
    return %c0_i32, %c0_i32_0 : i32, i32
  }
  func.func @transform_9(%arg0: i32, %arg1: i32) -> (i32, i32) {
    %c0_i32 = arith.constant 0 : i32
    %c0_i32_0 = arith.constant 0 : i32
    %c0_i32_1 = arith.constant 0 : i32
    return %c0_i32, %c0_i32_0 : i32, i32
  }
  func.func @transform_10(%arg0: i32, %arg1: i32) -> (i32, i32) {
    %c0_i32 = arith.constant 0 : i32
    %c0_i32_0 = arith.constant 0 : i32
    %c0_i32_1 = arith.constant 0 : i32
    return %c0_i32, %c0_i32_0 : i32, i32
  }
  func.func @transform_11(%arg0: i32, %arg1: i32) -> (i32, i32) {
    %c0_i32 = arith.constant 0 : i32
    %c0_i32_0 = arith.constant 0 : i32
    %c0_i32_1 = arith.constant 0 : i32
    return %c0_i32, %c0_i32_0 : i32, i32
  }
  func.func @transform_12(%arg0: i32, %arg1: i32) -> (i32, i32) {
    %c0_i32 = arith.constant 0 : i32
    %c0_i32_0 = arith.constant 0 : i32
    %c0_i32_1 = arith.constant 0 : i32
    return %c0_i32, %c0_i32_0 : i32, i32
  }
  func.func @transform_13(%arg0: i32, %arg1: i32) -> (i32, i32) {
    %c0_i32 = arith.constant 0 : i32
    %c0_i32_0 = arith.constant 0 : i32
    %c0_i32_1 = arith.constant 0 : i32
    return %c0_i32, %c0_i32_0 : i32, i32
  }
  func.func @transform_14(%arg0: i32, %arg1: i32) -> (i32, i32) {
    %c0_i32 = arith.constant 0 : i32
    %c0_i32_0 = arith.constant 0 : i32
    %c0_i32_1 = arith.constant 0 : i32
    return %c0_i32, %c0_i32_0 : i32, i32
  }
  func.func @transform_15(%arg0: i32, %arg1: i32) -> (i32, i32) {
    %c0_i32 = arith.constant 0 : i32
    %c0_i32_0 = arith.constant 0 : i32
    %c0_i32_1 = arith.constant 0 : i32
    return %c0_i32, %c0_i32_0 : i32, i32
  }
  func.func @transform_16(%arg0: i32, %arg1: i32) -> (i32, i32) {
    %c0_i32 = arith.constant 0 : i32
    %c0_i32_0 = arith.constant 0 : i32
    %c0_i32_1 = arith.constant 0 : i32
    return %c0_i32, %c0_i32_0 : i32, i32
  }
  func.func @transform_17(%arg0: i32, %arg1: i32) -> (i32, i32) {
    %c0_i32 = arith.constant 0 : i32
    %c0_i32_0 = arith.constant 0 : i32
    %c0_i32_1 = arith.constant 0 : i32
    return %c0_i32, %c0_i32_0 : i32, i32
  }
  func.func @transform_18(%arg0: i32, %arg1: i32) -> (i32, i32) {
    %c0_i32 = arith.constant 0 : i32
    %c0_i32_0 = arith.constant 0 : i32
    %c0_i32_1 = arith.constant 0 : i32
    return %c0_i32, %c0_i32_0 : i32, i32
  }
  func.func @transform_19(%arg0: i32, %arg1: i32) -> (i32, i32) {
    %c0_i32 = arith.constant 0 : i32
    %c0_i32_0 = arith.constant 0 : i32
    %c0_i32_1 = arith.constant 0 : i32
    return %c0_i32, %c0_i32_0 : i32, i32
  }
  func.func @transform_20(%arg0: i32, %arg1: i32) -> (i32, i32) {
    %c0_i32 = arith.constant 0 : i32
    %c0_i32_0 = arith.constant 0 : i32
    return %arg0, %c0_i32 : i32, i32
  }
}

</mosaic_0001>

<llo_original>
// kernel: tpu_custom_call.1
$region0: #{tpu_custom_call.1}
  #allocation0 [shape = 'u32[]', space=smem, size = 0x4, offset = 0x4, fixed_abs, tag = 'smem constant byte address 0x4 - core index']
  #allocation1 [shape = 'u32[144,128]{1,0:T(1,128)}', space=vmem, size = 0x12000, scoped, tag = 'internal scratch']
  #allocation2 [shape = 'f32[8,8,96]{2,1,0:T(8,128)}', space=vmem, size = 0x8000, scoped, tag = 'scratch operand']
  #allocation3 [shape = 'f32[8,8,96]{2,1,0:T(8,128)}', space=vmem, size = 0x8000, scoped, tag = 'scratch operand']
  #allocation4 [shape = 'f32[8,32]{1,0:T(8,128)}', space=vmem, size = 0x1000, scoped, tag = 'scratch operand']
  #allocation5 [shape = 'f32[8,32]{1,0:T(8,128)}', space=vmem, size = 0x1000, scoped, tag = 'scratch operand']
  %s0 = inlined_call_operand.hbm [shape: f32[8,8,16], index: 0, kind: input, shape index: {}]
  %s1 = inlined_call_operand.hbm [shape: f32[8,8,16], index: 1, kind: input, shape index: {}]
  %s2 = inlined_call_operand.vmem [shape: s32[8,1], index: 2, kind: input, shape index: {}]
  %s3 = inlined_call_operand.hbm [shape: bf16[16,96], index: 3, kind: input, shape index: {}]
  %s4 = inlined_call_operand.vmem [shape: f32[1,96], index: 4, kind: input, shape index: {}]
  %s5 = inlined_call_operand.hbm [shape: bf16[32,96], index: 5, kind: input, shape index: {}]
  %s6 = inlined_call_operand.hbm [shape: f32[1,32], index: 6, kind: input, shape index: {}]
  %s7 = inlined_call_operand.hbm [shape: f32[1,32], index: 7, kind: input, shape index: {}]
  %s8 = inlined_call_operand.hbm [shape: bf16[16,96], index: 8, kind: input, shape index: {}]
  %s9 = inlined_call_operand.hbm [shape: f32[1,96], index: 9, kind: input, shape index: {}]
  %s10 = inlined_call_operand.hbm [shape: bf16[32,96], index: 10, kind: input, shape index: {}]
  %s11 = inlined_call_operand.hbm [shape: f32[1,32], index: 11, kind: input, shape index: {}]
  %s12 = inlined_call_operand.hbm [shape: f32[1,32], index: 12, kind: input, shape index: {}]
  %s13 = inlined_call_operand.vmem [shape: f32[32,32], index: 13, kind: input, shape index: {}]
  %s14 = inlined_call_operand.hbm [shape: f32[32,32], index: 14, kind: input, shape index: {}]
  %s15 = inlined_call_operand.hbm [shape: f32[1,32], index: 15, kind: input, shape index: {}]
  %s16 = inlined_call_operand.vmem [shape: f32[1,32], index: 16, kind: input, shape index: {}]
  %s17 = inlined_call_operand.vmem [shape: f32[1,32], index: 17, kind: input, shape index: {}]
  %s18 = inlined_call_operand.vmem [shape: f32[32,32], index: 18, kind: input, shape index: {}]
  %s19 = inlined_call_operand.vmem [shape: f32[1,32], index: 19, kind: input, shape index: {}]
  %s20 = inlined_call_operand.hbm [shape: f32[8,32], index: 20, kind: output, shape index: {}]
  %s21 = sld [smem:[#allocation0]]
  $region150: #{tpu_custom_call.1} parent=0
    _
  %s23 = ssub.s32 1, %s21
  %s24 = scalar_select 0, %s23, %s21
  $region1: #{tpu_custom_call.1} parent=0
    #allocation6 [shape = 'u8[32768]{0}', space=vmem, size = 0x8000, scoped, tag = 'input window, operand 0, single buffered']
    #allocation7 [shape = 's32[1]{0}', space=sflag, size = 0x4, scoped, tag = 'scoped memory for tpu_custom_call.1']
    #allocation8 [shape = 's32[1]{0}', space=sflag, size = 0x4, scoped, tag = 'scoped memory for tpu_custom_call.1']
    #allocation9 [shape = 'u8[32768]{0}', space=vmem, size = 0x8000, scoped, tag = 'input window, operand 1, single buffered']
    #allocation10 [shape = 's32[1]{0}', space=sflag, size = 0x4, scoped, tag = 'scoped memory for tpu_custom_call.1']
    #allocation11 [shape = 'u8[4096]{0}', space=vmem, size = 0x1000, scoped, tag = 'input window, operand 3, single buffered']
    #allocation12 [shape = 'u8[8192]{0}', space=vmem, size = 0x2000, scoped, tag = 'input window, operand 5, single buffered']
    #allocation13 [shape = 's32[1]{0}', space=sflag, size = 0x4, scoped, tag = 'scoped memory for tpu_custom_call.1']
    #allocation14 [shape = 'u8[512]{0}', space=vmem, size = 0x400, scoped, tag = 'input window, operand 6, single buffered']
    #allocation15 [shape = 'u8[512]{0}', space=vmem, size = 0x400, scoped, tag = 'input window, operand 7, single buffered']
    #allocation16 [shape = 's32[1]{0}', space=sflag, size = 0x4, scoped, tag = 'scoped memory for tpu_custom_call.1']
    #allocation17 [shape = 'u8[4096]{0}', space=vmem, size = 0x1000, scoped, tag = 'input window, operand 8, single buffered']
    #allocation18 [shape = 'u8[512]{0}', space=vmem, size = 0x400, scoped, tag = 'input window, operand 9, single buffered']
    #allocation19 [shape = 's32[1]{0}', space=sflag, size = 0x4, scoped, tag = 'scoped memory for tpu_custom_call.1']
    #allocation20 [shape = 'u8[8192]{0}', space=vmem, size = 0x2000, scoped, tag = 'input window, operand 10, single buffered']
    #allocation21 [shape = 'u8[512]{0}', space=vmem, size = 0x400, scoped, tag = 'input window, operand 11, single buffered']
    #allocation22 [shape = 's32[1]{0}', space=sflag, size = 0x4, scoped, tag = 'scoped memory for tpu_custom_call.1']
    #allocation23 [shape = 'u8[512]{0}', space=vmem, size = 0x400, scoped, tag = 'input window, operand 12, single buffered']
    #allocation24 [shape = 'u8[16384]{0}', space=vmem, size = 0x4000, scoped, tag = 'input window, operand 14, single buffered']
    #allocation25 [shape = 's32[1]{0}', space=sflag, size = 0x4, scoped, tag = 'scoped memory for tpu_custom_call.1']
    #allocation26 [shape = 'u8[512]{0}', space=vmem, size = 0x400, scoped, tag = 'input window, operand 15, single buffered']
    #allocation27 [shape = 'u8[4096]{0}', space=vmem, size = 0x1000, scoped, tag = 'output window, operand 0, single buffered']
    %25 = vsyncpa [#allocation7], 0
    %26 = vsyncpa [#allocation10], 0
    %27 = vsyncpa [#allocation13], 0
    %28 = vsyncpa [#allocation16], 0
    %29 = vsyncpa [#allocation19], 0
    %30 = vsyncpa [#allocation22], 0
    %31 = vsyncpa [#allocation25], 0
    %32 = vsyncpa [#allocation8], 0
    // Predicated region
    $region2: #{tpu_custom_call.1} parent=1 // pred_check
      _
    $region3: #{tpu_custom_call.1} parent=1 // pred_check_branch
      %34 = sbr.rel (0) target = $region5
    $region4: #{tpu_custom_call.1} parent=1 // pred_region
      %s36 = ssub.s32 1024, 1024
      %37 = vsyncadd [#allocation7], %s36
      %s38 = sshll.u32 [#allocation6], 4
      %s39 = int_to_ptr.vmem [resolvable:$true] %s38
      %44 = dma.hbm_to_vmem [thread:$0]  %s0, 1024, %s39, [#allocation7], 128, 128, 8
    $region5: #{tpu_custom_call.1} parent=1 // pred_fallthru
      _
    // Predicated region
    $region6: #{tpu_custom_call.1} parent=1 // pred_check
      _
    $region7: #{tpu_custom_call.1} parent=1 // pred_check_branch
      %46 = sbr.rel (0) target = $region9
    $region8: #{tpu_custom_call.1} parent=1 // pred_region
      %s47 = ssub.s32 0, 0
      %s48 = smul.u32 8, %s47
      %s50 = ssub.s32 1024, 1024
      %51 = vsyncadd [#allocation10], %s50
      %s52 = smul.addr %s48, 128
      %s53 = scalar_lea.hbm %s1, %s52
      %s54 = sshll.u32 [#allocation9], 4
      %s55 = int_to_ptr.vmem [resolvable:$true] %s54
      %60 = dma.hbm_to_vmem [thread:$0]  %s53, 1024, %s55, [#allocation10], 128, 128, 8
    $region9: #{tpu_custom_call.1} parent=1 // pred_fallthru
      _
    // Predicated region
    $region10: #{tpu_custom_call.1} parent=1 // pred_check
      _
    $region11: #{tpu_custom_call.1} parent=1 // pred_check_branch
      %62 = sbr.rel (0) target = $region13
    $region12: #{tpu_custom_call.1} parent=1 // pred_region
      _
    $region13: #{tpu_custom_call.1} parent=1 // pred_fallthru
      _
    // Predicated region
    $region14: #{tpu_custom_call.1} parent=1 // pred_check
      _
    $region15: #{tpu_custom_call.1} parent=1 // pred_check_branch
      %64 = sbr.rel (0) target = $region17
    $region16: #{tpu_custom_call.1} parent=1 // pred_region
      %s66 = ssub.s32 128, 128
      %67 = vsyncadd [#allocation10], %s66
      %s68 = sshll.u32 [#allocation11], 4
      %s69 = int_to_ptr.vmem [resolvable:$true] %s68
      %74 = dma.hbm_to_vmem [thread:$0]  %s3, 128, %s69, [#allocation10], 64, 64, 4
    $region17: #{tpu_custom_call.1} parent=1 // pred_fallthru
      _
    // Predicated region
    $region18: #{tpu_custom_call.1} parent=1 // pred_check
      _
    $region19: #{tpu_custom_call.1} parent=1 // pred_check_branch
      %76 = sbr.rel (0) target = $region21
    $region20: #{tpu_custom_call.1} parent=1 // pred_region
      _
    $region21: #{tpu_custom_call.1} parent=1 // pred_fallthru
      _
    // Predicated region
    $region22: #{tpu_custom_call.1} parent=1 // pred_check
      _
    $region23: #{tpu_custom_call.1} parent=1 // pred_check_branch
      %78 = sbr.rel (0) target = $region25
    $region24: #{tpu_custom_call.1} parent=1 // pred_region
      %s80 = ssub.s32 256, 256
      %81 = vsyncadd [#allocation13], %s80
      %s82 = sshll.u32 [#allocation12], 4
      %s83 = int_to_ptr.vmem [resolvable:$true] %s82
      %88 = dma.hbm_to_vmem [thread:$0]  %s5, 256, %s83, [#allocation13], 64, 64, 4
    $region25: #{tpu_custom_call.1} parent=1 // pred_fallthru
      _
    // Predicated region
    $region26: #{tpu_custom_call.1} parent=1 // pred_check
      _
    $region27: #{tpu_custom_call.1} parent=1 // pred_check_branch
      %90 = sbr.rel (0) target = $region29
    $region28: #{tpu_custom_call.1} parent=1 // pred_region
      %s92 = ssub.s32 16, 16
      %93 = vsyncadd [#allocation13], %s92
      %s95 = sshll.u32 [#allocation14], 4
      %s96 = int_to_ptr.vmem [resolvable:$true] %s95
      %98 = dma.hbm_to_vmem [thread:$0]  %s6, 16, %s96, [#allocation13]
    $region29: #{tpu_custom_call.1} parent=1 // pred_fallthru
      _
    // Predicated region
    $region30: #{tpu_custom_call.1} parent=1 // pred_check
      _
    $region31: #{tpu_custom_call.1} parent=1 // pred_check_branch
      %100 = sbr.rel (0) target = $region33
    $region32: #{tpu_custom_call.1} parent=1 // pred_region
      %s102 = ssub.s32 16, 16
      %103 = vsyncadd [#allocation16], %s102
      %s105 = sshll.u32 [#allocation15], 4
      %s106 = int_to_ptr.vmem [resolvable:$true] %s105
      %108 = dma.hbm_to_vmem [thread:$0]  %s7, 16, %s106, [#allocation16]
    $region33: #{tpu_custom_call.1} parent=1 // pred_fallthru
      _
    // Predicated region
    $region34: #{tpu_custom_call.1} parent=1 // pred_check
      _
    $region35: #{tpu_custom_call.1} parent=1 // pred_check_branch
      %110 = sbr.rel (0) target = $region37
    $region36: #{tpu_custom_call.1} parent=1 // pred_region
      %s112 = ssub.s32 128, 128
      %113 = vsyncadd [#allocation16], %s112
      %s114 = sshll.u32 [#allocation17], 4
      %s115 = int_to_ptr.vmem [resolvable:$true] %s114
      %120 = dma.hbm_to_vmem [thread:$0]  %s8, 128, %s115, [#allocation16], 64, 64, 4
    $region37: #{tpu_custom_call.1} parent=1 // pred_fallthru
      _
    // Predicated region
    $region38: #{tpu_custom_call.1} parent=1 // pred_check
      _
    $region39: #{tpu_custom_call.1} parent=1 // pred_check_branch
      %122 = sbr.rel (0) target = $region41
    $region40: #{tpu_custom_call.1} parent=1 // pred_region
      %s124 = ssub.s32 16, 16
      %125 = vsyncadd [#allocation19], %s124
      %s127 = sshll.u32 [#allocation18], 4
      %s128 = int_to_ptr.vmem [resolvable:$true] %s127
      %130 = dma.hbm_to_vmem [thread:$0]  %s9, 16, %s128, [#allocation19]
    $region41: #{tpu_custom_call.1} parent=1 // pred_fallthru
      _
    // Predicated region
    $region42: #{tpu_custom_call.1} parent=1 // pred_check
      _
    $region43: #{tpu_custom_call.1} parent=1 // pred_check_branch
      %132 = sbr.rel (0) target = $region45
    $region44: #{tpu_custom_call.1} parent=1 // pred_region
      %s134 = ssub.s32 256, 256
      %135 = vsyncadd [#allocation19], %s134
      %s136 = sshll.u32 [#allocation20], 4
      %s137 = int_to_ptr.vmem [resolvable:$true] %s136
      %142 = dma.hbm_to_vmem [thread:$0]  %s10, 256, %s137, [#allocation19], 64, 64, 4
    $region45: #{tpu_custom_call.1} parent=1 // pred_fallthru
      _
    // Predicated region
    $region46: #{tpu_custom_call.1} parent=1 // pred_check
      _
    $region47: #{tpu_custom_call.1} parent=1 // pred_check_branch
      %144 = sbr.rel (0) target = $region49
    $region48: #{tpu_custom_call.1} parent=1 // pred_region
      %s146 = ssub.s32 16, 16
      %147 = vsyncadd [#allocation22], %s146
      %s149 = sshll.u32 [#allocation21], 4
      %s150 = int_to_ptr.vmem [resolvable:$true] %s149
      %152 = dma.hbm_to_vmem [thread:$0]  %s11, 16, %s150, [#allocation22]
    $region49: #{tpu_custom_call.1} parent=1 // pred_fallthru
      _
    // Predicated region
    $region50: #{tpu_custom_call.1} parent=1 // pred_check
      _
    $region51: #{tpu_custom_call.1} parent=1 // pred_check_branch
      %154 = sbr.rel (0) target = $region53
    $region52: #{tpu_custom_call.1} parent=1 // pred_region
      %s156 = ssub.s32 16, 16
      %157 = vsyncadd [#allocation22], %s156
      %s159 = sshll.u32 [#allocation23], 4
      %s160 = int_to_ptr.vmem [resolvable:$true] %s159
      %162 = dma.hbm_to_vmem [thread:$0]  %s12, 16, %s160, [#allocation22]
    $region53: #{tpu_custom_call.1} parent=1 // pred_fallthru
      _
    // Predicated region
    $region54: #{tpu_custom_call.1} parent=1 // pred_check
      _
    $region55: #{tpu_custom_call.1} parent=1 // pred_check_branch
      %164 = sbr.rel (0) target = $region57
    $region56: #{tpu_custom_call.1} parent=1 // pred_region
      _
    $region57: #{tpu_custom_call.1} parent=1 // pred_fallthru
      _
    // Predicated region
    $region58: #{tpu_custom_call.1} parent=1 // pred_check
      _
    $region59: #{tpu_custom_call.1} parent=1 // pred_check_branch
      %166 = sbr.rel (0) target = $region61
    $region60: #{tpu_custom_call.1} parent=1 // pred_region
      %s168 = ssub.s32 512, 512
      %169 = vsyncadd [#allocation25], %s168
      %s170 = sshll.u32 [#allocation24], 4
      %s171 = int_to_ptr.vmem [resolvable:$true] %s170
      %176 = dma.hbm_to_vmem [thread:$0]  %s14, 512, %s171, [#allocation25], 128, 128, 8
    $region61: #{tpu_custom_call.1} parent=1 // pred_fallthru
      _
    // Predicated region
    $region62: #{tpu_custom_call.1} parent=1 // pred_check
      _
    $region63: #{tpu_custom_call.1} parent=1 // pred_check_branch
      %178 = sbr.rel (0) target = $region65
    $region64: #{tpu_custom_call.1} parent=1 // pred_region
      %s180 = ssub.s32 16, 16
      %181 = vsyncadd [#allocation25], %s180
      %s183 = sshll.u32 [#allocation26], 4
      %s184 = int_to_ptr.vmem [resolvable:$true] %s183
      %186 = dma.hbm_to_vmem [thread:$0]  %s15, 16, %s184, [#allocation25]
    $region65: #{tpu_custom_call.1} parent=1 // pred_fallthru
      _
    // Predicated region
    $region66: #{tpu_custom_call.1} parent=1 // pred_check
      _
    $region67: #{tpu_custom_call.1} parent=1 // pred_check_branch
      %188 = sbr.rel (0) target = $region69
    $region68: #{tpu_custom_call.1} parent=1 // pred_region
      _
    $region69: #{tpu_custom_call.1} parent=1 // pred_fallthru
      _
    // Predicated region
    $region70: #{tpu_custom_call.1} parent=1 // pred_check
      _
    $region71: #{tpu_custom_call.1} parent=1 // pred_check_branch
      %190 = sbr.rel (0) target = $region73
    $region72: #{tpu_custom_call.1} parent=1 // pred_region
      _
    $region73: #{tpu_custom_call.1} parent=1 // pred_fallthru
      _
    // Predicated region
    $region74: #{tpu_custom_call.1} parent=1 // pred_check
      _
    $region75: #{tpu_custom_call.1} parent=1 // pred_check_branch
      %192 = sbr.rel (0) target = $region77
    $region76: #{tpu_custom_call.1} parent=1 // pred_region
      _
    $region77: #{tpu_custom_call.1} parent=1 // pred_fallthru
      _
    // Predicated region
    $region78: #{tpu_custom_call.1} parent=1 // pred_check
      _
    $region79: #{tpu_custom_call.1} parent=1 // pred_check_branch
      %194 = sbr.rel (0) target = $region81
    $region80: #{tpu_custom_call.1} parent=1 // pred_region
      _
    $region81: #{tpu_custom_call.1} parent=1 // pred_fallthru
      _
    // Predicated region
    $region82: #{tpu_custom_call.1} parent=1 // pred_check
      _
    $region83: #{tpu_custom_call.1} parent=1 // pred_check_branch
      %196 = sbr.rel (0) target = $region85
    $region84: #{tpu_custom_call.1} parent=1 // pred_region
      %197 = dma.done [#allocation7], 1024
    $region85: #{tpu_custom_call.1} parent=1 // pred_fallthru
      _
    // Predicated region
    $region86: #{tpu_custom_call.1} parent=1 // pred_check
      _
    $region87: #{tpu_custom_call.1} parent=1 // pred_check_branch
      %199 = sbr.rel (0) target = $region89
    $region88: #{tpu_custom_call.1} parent=1 // pred_region
      %200 = dma.done [#allocation10], 1024
    $region89: #{tpu_custom_call.1} parent=1 // pred_fallthru
      _
    // Predicated region
    $region90: #{tpu_custom_call.1} parent=1 // pred_check
      _
    $region91: #{tpu_custom_call.1} parent=1 // pred_check_branch
      %202 = sbr.rel (0) target = $region93
    $region92: #{tpu_custom_call.1} parent=1 // pred_region
      %203 = dma.done [#allocation10], 128
    $region93: #{tpu_custom_call.1} parent=1 // pred_fallthru
      _
    // Predicated region
    $region94: #{tpu_custom_call.1} parent=1 // pred_check
      _
    $region95: #{tpu_custom_call.1} parent=1 // pred_check_branch
      %205 = sbr.rel (0) target = $region97
    $region96: #{tpu_custom_call.1} parent=1 // pred_region
      %206 = dma.done [#allocation13], 256
    $region97: #{tpu_custom_call.1} parent=1 // pred_fallthru
      _
    // Predicated region
    $region98: #{tpu_custom_call.1} parent=1 // pred_check
      _
    $region99: #{tpu_custom_call.1} parent=1 // pred_check_branch
      %208 = sbr.rel (0) target = $region101
    $region100: #{tpu_custom_call.1} parent=1 // pred_region
      %209 = dma.done [#allocation13], 16
    $region101: #{tpu_custom_call.1} parent=1 // pred_fallthru
      _
    // Predicated region
    $region102: #{tpu_custom_call.1} parent=1 // pred_check
      _
    $region103: #{tpu_custom_call.1} parent=1 // pred_check_branch
      %211 = sbr.rel (0) target = $region105
    $region104: #{tpu_custom_call.1} parent=1 // pred_region
      %212 = dma.done [#allocation16], 16
    $region105: #{tpu_custom_call.1} parent=1 // pred_fallthru
      _
    // Predicated region
    $region106: #{tpu_custom_call.1} parent=1 // pred_check
      _
    $region107: #{tpu_custom_call.1} parent=1 // pred_check_branch
      %214 = sbr.rel (0) target = $region109
    $region108: #{tpu_custom_call.1} parent=1 // pred_region
      %215 = dma.done [#allocation16], 128
    $region109: #{tpu_custom_call.1} parent=1 // pred_fallthru
      _
    // Predicated region
    $region110: #{tpu_custom_call.1} parent=1 // pred_check
      _
    $region111: #{tpu_custom_call.1} parent=1 // pred_check_branch
      %217 = sbr.rel (0) target = $region113
    $region112: #{tpu_custom_call.1} parent=1 // pred_region
      %218 = dma.done [#allocation19], 16
    $region113: #{tpu_custom_call.1} parent=1 // pred_fallthru
      _
    // Predicated region
    $region114: #{tpu_custom_call.1} parent=1 // pred_check
      _
    $region115: #{tpu_custom_call.1} parent=1 // pred_check_branch
      %220 = sbr.rel (0) target = $region117
    $region116: #{tpu_custom_call.1} parent=1 // pred_region
      %221 = dma.done [#allocation19], 256
    $region117: #{tpu_custom_call.1} parent=1 // pred_fallthru
      _
    // Predicated region
    $region118: #{tpu_custom_call.1} parent=1 // pred_check
      _
    $region119: #{tpu_custom_call.1} parent=1 // pred_check_branch
      %223 = sbr.rel (0) target = $region121
    $region120: #{tpu_custom_call.1} parent=1 // pred_region
      %224 = dma.done [#allocation22], 16
    $region121: #{tpu_custom_call.1} parent=1 // pred_fallthru
      _
    // Predicated region
    $region122: #{tpu_custom_call.1} parent=1 // pred_check
      _
    $region123: #{tpu_custom_call.1} parent=1 // pred_check_branch
      %226 = sbr.rel (0) target = $region125
    $region124: #{tpu_custom_call.1} parent=1 // pred_region
      %227 = dma.done [#allocation22], 16
    $region125: #{tpu_custom_call.1} parent=1 // pred_fallthru
      _
    // Predicated region
    $region126: #{tpu_custom_call.1} parent=1 // pred_check
      _
    $region127: #{tpu_custom_call.1} parent=1 // pred_check_branch
      %229 = sbr.rel (0) target = $region129
    $region128: #{tpu_custom_call.1} parent=1 // pred_region
      %230 = dma.done [#allocation25], 512
    $region129: #{tpu_custom_call.1} parent=1 // pred_fallthru
      _
    // Predicated region
    $region130: #{tpu_custom_call.1} parent=1 // pred_check
      _
    $region131: #{tpu_custom_call.1} parent=1 // pred_check_branch
      %232 = sbr.rel (0) target = $region133
    $region132: #{tpu_custom_call.1} parent=1 // pred_region
      %233 = dma.done [#allocation25], 16
    $region133: #{tpu_custom_call.1} parent=1 // pred_fallthru
      _
    %s234 = ssub.s32 0, 0
    %s235 = smul.u32 8, %s234
    %p237 = scmp.eq.s32.totalorder 0, 0
    // Predicated region
    $region134: #{tpu_custom_call.1} parent=1 // pred_check
      %p238 = pneg %p237
    $region135: #{tpu_custom_call.1} parent=1 // pred_check_branch
      %240 = sbr.rel (%p238) target = $region137
    $region136: #{tpu_custom_call.1} parent=1 // pred_region
      %v241 = vld [vmem:[#allocation15] sm:$0x1]
      %v243 = vlaneseq
      %v244 = vshrl.u32 %v243, 7
      %v245 = vsub.s32 0, %v244
      %v246 = vrot.slane %v241, %v245
      %vm248 = vcmask 261120
      %249 = vst.msk [vmem:[#allocation4] sm:$0xff] %vm248, %v246
      %v250 = vld [vmem:[#allocation23] sm:$0x1]
      %v252 = vlaneseq
      %v253 = vshrl.u32 %v252, 7
      %v254 = vsub.s32 0, %v253
      %v255 = vrot.slane %v250, %v254
      %257 = vst.msk [vmem:[#allocation5] sm:$0xff] %vm248, %v255
    $region137: #{tpu_custom_call.1} parent=1 // pred_fallthru
      _
    %v258 = vld [vmem:[#allocation6] sm:$0xff]
    %v259 = vld [vmem:[#allocation6 + $0x8] sm:$0xff]
    %v260 = vld [vmem:[#allocation6 + $0x10] sm:$0xff]
    %v261 = vld [vmem:[#allocation6 + $0x18] sm:$0xff]
    %v262 = vld [vmem:[#allocation6 + $0x20] sm:$0xff]
    %v263 = vld [vmem:[#allocation6 + $0x28] sm:$0xff]
    %v264 = vld [vmem:[#allocation6 + $0x30] sm:$0xff]
    %v265 = vld [vmem:[#allocation6 + $0x38] sm:$0xff]
    %v266 = vpack.c.bf16 %v259, %v258
    %v267 = vpack.c.bf16 %v261, %v260
    %v268 = vpack.c.bf16 %v263, %v262
    %v269 = vpack.c.bf16 %v265, %v264
    %v270 = vld [vmem:[#allocation9] sm:$0xff]
    %v271 = vld [vmem:[#allocation9 + $0x8] sm:$0xff]
    %v272 = vld [vmem:[#allocation9 + $0x10] sm:$0xff]
    %v273 = vld [vmem:[#allocation9 + $0x18] sm:$0xff]
    %v274 = vld [vmem:[#allocation9 + $0x20] sm:$0xff]
    %v275 = vld [vmem:[#allocation9 + $0x28] sm:$0xff]
    %v276 = vld [vmem:[#allocation9 + $0x30] sm:$0xff]
    %v277 = vld [vmem:[#allocation9 + $0x38] sm:$0xff]
    %v278 = vpack.c.bf16 %v271, %v270
    %v279 = vpack.c.bf16 %v273, %v272
    %v280 = vpack.c.bf16 %v275, %v274
    %v281 = vpack.c.bf16 %v277, %v276
    %v282 = vld [vmem:[#allocation11] sm:$0xf]
    %v283 = vld [vmem:[#allocation11 + $0x4] sm:$0xf]
    %v284 = vld [vmem:[%s4] sm:$0x1]
    %v286 = vlaneseq
    %v287 = vshrl.u32 %v286, 7
    %v288 = vsub.s32 0, %v287
    %v289 = vrot.slane %v284, %v288
    %v293 = vunpack.c.l.b16 %v282
    %v294 = vunpack.c.l.b16 %v283
    %v295 = vpack.c.b16 %v294, %v293
    %vm297 = vcmask 130048
    %v299 = vsel %vm297, %v266, 0
    %v302 = vsel %vm297, %v267, 0
    %v305 = vsel %vm297, %v268, 0
    %v308 = vsel %vm297, %v269, 0
    %310 = vmatprep.subr.bf16.mxu0 0
    %311 = vmatpush1.bf16.msra.mxu0 %v295
    %312 = vmatprep.subr.bf16.mxu0 0
    %313 = vmatpush1.bf16.msra.mxu0 0
    %314 = vmatprep.subr.bf16.mxu0 0
    %315 = vmatpush1.bf16.msra.mxu0 0
    %316 = vmatprep.subr.bf16.mxu0 0
    %317 = vmatpush1.bf16.msra.mxu0 0
    %318 = vmatprep.subr.bf16.mxu0 0
    %319 = vmatpush1.bf16.msra.mxu0 0
    %320 = vmatprep.subr.bf16.mxu0 0
    %321 = vmatpush1.bf16.msra.mxu0 0
    %322 = vmatprep.subr.bf16.mxu0 0
    %323 = vmatpush1.bf16.msra.mxu0 0
    %324 = vmatprep.subr.bf16.mxu0 0
    %325 = vmatpush1.bf16.msra.mxu0 0
    %326 = vmatprep.subr.bf16.mxu0 0
    %327 = vmatpush1.bf16.msra.mxu0 0
    %328 = vmatprep.subr.bf16.mxu0 0
    %329 = vmatpush1.bf16.msra.mxu0 0
    %330 = vmatprep.subr.bf16.mxu0 0
    %331 = vmatpush1.bf16.msra.mxu0 0
    %332 = vmatprep.subr.bf16.mxu0 0
    %333 = vmatpush1.bf16.msra.mxu0 0
    %334 = vmatprep.subr.bf16.mxu0 0
    %335 = vmatpush1.bf16.msra.mxu0 0
    %336 = vmatprep.subr.bf16.mxu0 0
    %337 = vmatpush1.bf16.msra.mxu0 0
    %338 = vmatprep.subr.bf16.mxu0 0
    %339 = vmatpush1.bf16.msra.mxu0 0
    %340 = vmatprep.subr.bf16.mxu0 0
    %341 = vmatpush1.bf16.msra.mxu0 0
    %342 = vmatprep.mubr.bf16.mxu0 0
    %343 = vmatmul.mubr.bf16.gmra.mrb[0].mxu0 %v299
    %v344 = vpop.f32.mrb[0].mxu0
    %v345 = vadd.f32 %v289, %v344
    %v346 = vpop.f32.mrb[0].mxu0
    %v347 = vpop.f32.mrb[0].mxu0
    %v348 = vadd.f32 %v289, %v347
    %v349 = vpop.f32.mrb[0].mxu0
    %350 = vmatprep.mubr.bf16.mxu0 0
    %351 = vmatmul.mubr.bf16.gmra.mrb[0].mxu0 %v302
    %v352 = vpop.f32.mrb[0].mxu0
    %v353 = vadd.f32 %v289, %v352
    %v354 = vpop.f32.mrb[0].mxu0
    %v355 = vpop.f32.mrb[0].mxu0
    %v356 = vadd.f32 %v289, %v355
    %v357 = vpop.f32.mrb[0].mxu0
    %358 = vmatprep.mubr.bf16.mxu0 0
    %359 = vmatmul.mubr.bf16.gmra.mrb[0].mxu0 %v305
    %v360 = vpop.f32.mrb[0].mxu0
    %v361 = vadd.f32 %v289, %v360
    %v362 = vpop.f32.mrb[0].mxu0
    %v363 = vpop.f32.mrb[0].mxu0
    %v364 = vadd.f32 %v289, %v363
    %v365 = vpop.f32.mrb[0].mxu0
    %366 = vmatprep.mubr.bf16.mxu0 0
    %367 = vmatmul.mubr.bf16.gmra.mrb[0].mxu0 %v308
    %v368 = vpop.f32.mrb[0].mxu0
    %v369 = vadd.f32 %v289, %v368
    %v370 = vpop.f32.mrb[0].mxu0
    %v371 = vpop.f32.mrb[0].mxu0
    %v372 = vadd.f32 %v289, %v371
    %v373 = vpop.f32.mrb[0].mxu0
    %374 = vdwg.mxu0
    %v375 = vld [vmem:[#allocation17] sm:$0xf]
    %v376 = vld [vmem:[#allocation17 + $0x4] sm:$0xf]
    %v377 = vld [vmem:[#allocation18] sm:$0x1]
    %v379 = vlaneseq
    %v380 = vshrl.u32 %v379, 7
    %v381 = vsub.s32 0, %v380
    %v382 = vrot.slane %v377, %v381
    %v386 = vunpack.c.l.b16 %v375
    %v387 = vunpack.c.l.b16 %v376
    %v388 = vpack.c.b16 %v387, %v386
    %v391 = vsel %vm297, %v278, 0
    %v394 = vsel %vm297, %v279, 0
    %v397 = vsel %vm297, %v280, 0
    %v400 = vsel %vm297, %v281, 0
    %402 = vmatprep.subr.bf16.mxu0 0
    %403 = vmatpush1.bf16.msra.mxu0 %v388
    %404 = vmatprep.subr.bf16.mxu0 0
    %405 = vmatpush1.bf16.msra.mxu0 0
    %406 = vmatprep.subr.bf16.mxu0 0
    %407 = vmatpush1.bf16.msra.mxu0 0
    %408 = vmatprep.subr.bf16.mxu0 0
    %409 = vmatpush1.bf16.msra.mxu0 0
    %410 = vmatprep.subr.bf16.mxu0 0
    %411 = vmatpush1.bf16.msra.mxu0 0
    %412 = vmatprep.subr.bf16.mxu0 0
    %413 = vmatpush1.bf16.msra.mxu0 0
    %414 = vmatprep.subr.bf16.mxu0 0
    %415 = vmatpush1.bf16.msra.mxu0 0
    %416 = vmatprep.subr.bf16.mxu0 0
    %417 = vmatpush1.bf16.msra.mxu0 0
    %418 = vmatprep.subr.bf16.mxu0 0
    %419 = vmatpush1.bf16.msra.mxu0 0
    %420 = vmatprep.subr.bf16.mxu0 0
    %421 = vmatpush1.bf16.msra.mxu0 0
    %422 = vmatprep.subr.bf16.mxu0 0
    %423 = vmatpush1.bf16.msra.mxu0 0
    %424 = vmatprep.subr.bf16.mxu0 0
    %425 = vmatpush1.bf16.msra.mxu0 0
    %426 = vmatprep.subr.bf16.mxu0 0
    %427 = vmatpush1.bf16.msra.mxu0 0
    %428 = vmatprep.subr.bf16.mxu0 0
    %429 = vmatpush1.bf16.msra.mxu0 0
    %430 = vmatprep.subr.bf16.mxu0 0
    %431 = vmatpush1.bf16.msra.mxu0 0
    %432 = vmatprep.subr.bf16.mxu0 0
    %433 = vmatpush1.bf16.msra.mxu0 0
    %434 = vmatprep.mubr.bf16.mxu0 0
    %435 = vmatmul.mubr.bf16.gmra.mrb[0].mxu0 %v391
    %v436 = vpop.f32.mrb[0].mxu0
    %v437 = vadd.f32 %v382, %v436
    %v438 = vpop.f32.mrb[0].mxu0
    %v439 = vpop.f32.mrb[0].mxu0
    %v440 = vadd.f32 %v382, %v439
    %v441 = vpop.f32.mrb[0].mxu0
    %442 = vmatprep.mubr.bf16.mxu0 0
    %443 = vmatmul.mubr.bf16.gmra.mrb[0].mxu0 %v394
    %v444 = vpop.f32.mrb[0].mxu0
    %v445 = vadd.f32 %v382, %v444
    %v446 = vpop.f32.mrb[0].mxu0
    %v447 = vpop.f32.mrb[0].mxu0
    %v448 = vadd.f32 %v382, %v447
    %v449 = vpop.f32.mrb[0].mxu0
    %450 = vmatprep.mubr.bf16.mxu0 0
    %451 = vmatmul.mubr.bf16.gmra.mrb[0].mxu0 %v397
    %v452 = vpop.f32.mrb[0].mxu0
    %v453 = vadd.f32 %v382, %v452
    %v454 = vpop.f32.mrb[0].mxu0
    %v455 = vpop.f32.mrb[0].mxu0
    %v456 = vadd.f32 %v382, %v455
    %v457 = vpop.f32.mrb[0].mxu0
    %458 = vmatprep.mubr.bf16.mxu0 0
    %459 = vmatmul.mubr.bf16.gmra.mrb[0].mxu0 %v400
    %v460 = vpop.f32.mrb[0].mxu0
    %v461 = vadd.f32 %v382, %v460
    %v462 = vpop.f32.mrb[0].mxu0
    %v463 = vpop.f32.mrb[0].mxu0
    %v464 = vadd.f32 %v382, %v463
    %v465 = vpop.f32.mrb[0].mxu0
    %466 = vdwg.mxu0
    %vm467 = vcmask 785408
    %468 = vst.msk [vmem:[#allocation2] sm:$0xff] %vm467, %v345
    %469 = vst.msk [vmem:[#allocation2 + $0x8] sm:$0xff] %vm467, %v348
    %470 = vst.msk [vmem:[#allocation2 + $0x10] sm:$0xff] %vm467, %v353
    %471 = vst.msk [vmem:[#allocation2 + $0x18] sm:$0xff] %vm467, %v356
    %472 = vst.msk [vmem:[#allocation2 + $0x20] sm:$0xff] %vm467, %v361
    %473 = vst.msk [vmem:[#allocation2 + $0x28] sm:$0xff] %vm467, %v364
    %474 = vst.msk [vmem:[#allocation2 + $0x30] sm:$0xff] %vm467, %v369
    %475 = vst.msk [vmem:[#allocation2 + $0x38] sm:$0xff] %vm467, %v372
    %476 = vst.msk [vmem:[#allocation3] sm:$0xff] %vm467, %v437
    %477 = vst.msk [vmem:[#allocation3 + $0x8] sm:$0xff] %vm467, %v440
    %478 = vst.msk [vmem:[#allocation3 + $0x10] sm:$0xff] %vm467, %v445
    %479 = vst.msk [vmem:[#allocation3 + $0x18] sm:$0xff] %vm467, %v448
    %480 = vst.msk [vmem:[#allocation3 + $0x20] sm:$0xff] %vm467, %v453
    %481 = vst.msk [vmem:[#allocation3 + $0x28] sm:$0xff] %vm467, %v456
    %482 = vst.msk [vmem:[#allocation3 + $0x30] sm:$0xff] %vm467, %v461
    %483 = vst.msk [vmem:[#allocation3 + $0x38] sm:$0xff] %vm467, %v464
    %v484 = vld [vmem:[%s2] sm:$0xff]
    %v485 = vld [vmem:[#allocation12] sm:$0xf]
    %v486 = vld [vmem:[#allocation12 + $0x4] sm:$0xf]
    %v487 = vld [vmem:[#allocation12 + $0x8] sm:$0xf]
    %v488 = vld [vmem:[#allocation12 + $0xc] sm:$0xf]
    %v489 = vld [vmem:[#allocation20] sm:$0xf]
    %v490 = vld [vmem:[#allocation20 + $0x4] sm:$0xf]
    %v491 = vld [vmem:[#allocation20 + $0x8] sm:$0xf]
    %v492 = vld [vmem:[#allocation20 + $0xc] sm:$0xf]
    %v493 = vld [vmem:[#allocation14] sm:$0x1]
    %v494 = vld [vmem:[#allocation21] sm:$0x1]
    %s495 = smul.u32 0, 8
    %s496 = ssub.s32 0, 0
    %s497 = smul.u32 %s496, 8
    %v498 = vld [vmem:[#allocation4] sm:$0xff]
    %v499 = vld [vmem:[#allocation5] sm:$0xff]
    %s500 = sadd.s32 %s497, 7
    %v501 = vld [vmem:[#allocation2] sm:$0xff]
    %v502 = vpack.c.bf16 %v498, %v498
    %v507 = vunpack.c.l.b16 %v485
    %v508 = vunpack.c.l.b16 %v486
    %v509 = vunpack.c.l.b16 %v487
    %v510 = vunpack.c.l.b16 %v488
    %v511 = vpack.c.b16 %v508, %v507
    %v512 = vpack.c.b16 %v510, %v509
    %vm515 = vcmask 261120
    %v517 = vsel %vm515, %v502, 0
    %519 = vmatprep.subr.bf16.mxu0 0
    %520 = vmatpush1.bf16.msra.mxu0 %v511
    %521 = vmatprep.subr.bf16.mxu0 0
    %522 = vmatpush1.bf16.msra.mxu0 %v512
    %523 = vmatprep.subr.bf16.mxu0 0
    %524 = vmatpush1.bf16.msra.mxu0 0
    %525 = vmatprep.subr.bf16.mxu0 0
    %526 = vmatpush1.bf16.msra.mxu0 0
    %527 = vmatprep.subr.bf16.mxu0 0
    %528 = vmatpush1.bf16.msra.mxu0 0
    %529 = vmatprep.subr.bf16.mxu0 0
    %530 = vmatpush1.bf16.msra.mxu0 0
    %531 = vmatprep.subr.bf16.mxu0 0
    %532 = vmatpush1.bf16.msra.mxu0 0
    %533 = vmatprep.subr.bf16.mxu0 0
    %534 = vmatpush1.bf16.msra.mxu0 0
    %535 = vmatprep.subr.bf16.mxu0 0
    %536 = vmatpush1.bf16.msra.mxu0 0
    %537 = vmatprep.subr.bf16.mxu0 0
    %538 = vmatpush1.bf16.msra.mxu0 0
    %539 = vmatprep.subr.bf16.mxu0 0
    %540 = vmatpush1.bf16.msra.mxu0 0
    %541 = vmatprep.subr.bf16.mxu0 0
    %542 = vmatpush1.bf16.msra.mxu0 0
    %543 = vmatprep.subr.bf16.mxu0 0
    %544 = vmatpush1.bf16.msra.mxu0 0
    %545 = vmatprep.subr.bf16.mxu0 0
    %546 = vmatpush1.bf16.msra.mxu0 0
    %547 = vmatprep.subr.bf16.mxu0 0
    %548 = vmatpush1.bf16.msra.mxu0 0
    %549 = vmatprep.subr.bf16.mxu0 0
    %550 = vmatpush1.bf16.msra.mxu0 0
    %551 = vmatprep.mubr.bf16.mxu0 0
    %552 = vmatmul.mubr.bf16.gmra.mrb[0].mxu0 %v517
    %v553 = vpop.f32.mrb[0].mxu0
    %v554 = vadd.f32 0.0, %v553
    %v555 = vpop.f32.mrb[0].mxu0
    %v556 = vpop.f32.mrb[0].mxu0
    %v557 = vpop.f32.mrb[0].mxu0
    %558 = vdwg.mxu0
    %v559 = vadd.f32 %v501, %v554
    %v560 = vxor.u32 %v559, 2147483648
    %v561 = vmul.f32 %v560, 1.442695
    %v562 = vpow.pop %v561
    %v563 = vadd.f32 %v562, 1.0
    %v564 = vrcp.pop %v563
    %v565 = vmul.f32 1.0, %v564
    %v567 = vlaneseq
    %v568 = vshrl.u32 %v567, 7
    %v569 = vsub.s32 0, %v568
    %v570 = vrot.slane %v493, %v569
    %571 = vrot.lane.b32.xlu0 %v570, 64
    %v572 = vpop.permute.xlu0 %571
    %v574 = vadd.f32 %v554, %v572
    %576 = vrot.lane.b32.xlu0 %v574, 64
    %v577 = vpop.permute.xlu0 %576
    %v579 = vmul.f32 %v565, %v577
    %581 = vrot.lane.b32.xlu0 %v579, 64
    %v582 = vpop.permute.xlu0 %581
    %v584 = vadd.f32 %v501, %v582
    %v585 = vtanh.pop %v584
    %v586 = vsub.f32 1.0, %v565
    %588 = vrot.lane.b32.xlu0 %v585, 96
    %v589 = vpop.permute.xlu0 %588
    %v591 = vmul.f32 %v586, %v589
    %593 = vrot.lane.b32.xlu0 %v498, 32
    %v594 = vpop.permute.xlu0 %593
    %v596 = vmul.f32 %v565, %v594
    %v597 = vadd.f32 %v591, %v596
    %s598 = scalar_lea.vmem [#allocation3], 56
    %v599 = vld [vmem:[%s598] sm:$0xff]
    %v600 = vpack.c.bf16 %v499, %v499
    %v605 = vunpack.c.l.b16 %v489
    %v606 = vunpack.c.l.b16 %v490
    %v607 = vunpack.c.l.b16 %v491
    %v608 = vunpack.c.l.b16 %v492
    %v609 = vpack.c.b16 %v606, %v605
    %v610 = vpack.c.b16 %v608, %v607
    %v614 = vsel %vm515, %v600, 0
    %616 = vmatprep.subr.bf16.mxu0 0
    %617 = vmatpush1.bf16.msra.mxu0 %v609
    %618 = vmatprep.subr.bf16.mxu0 0
    %619 = vmatpush1.bf16.msra.mxu0 %v610
    %620 = vmatprep.subr.bf16.mxu0 0
    %621 = vmatpush1.bf16.msra.mxu0 0
    %622 = vmatprep.subr.bf16.mxu0 0
    %623 = vmatpush1.bf16.msra.mxu0 0
    %624 = vmatprep.subr.bf16.mxu0 0
    %625 = vmatpush1.bf16.msra.mxu0 0
    %626 = vmatprep.subr.bf16.mxu0 0
    %627 = vmatpush1.bf16.msra.mxu0 0
    %628 = vmatprep.subr.bf16.mxu0 0
    %629 = vmatpush1.bf16.msra.mxu0 0
    %630 = vmatprep.subr.bf16.mxu0 0
    %631 = vmatpush1.bf16.msra.mxu0 0
    %632 = vmatprep.subr.bf16.mxu0 0
    %633 = vmatpush1.bf16.msra.mxu0 0
    %634 = vmatprep.subr.bf16.mxu0 0
    %635 = vmatpush1.bf16.msra.mxu0 0
    %636 = vmatprep.subr.bf16.mxu0 0
    %637 = vmatpush1.bf16.msra.mxu0 0
    %638 = vmatprep.subr.bf16.mxu0 0
    %639 = vmatpush1.bf16.msra.mxu0 0
    %640 = vmatprep.subr.bf16.mxu0 0
    %641 = vmatpush1.bf16.msra.mxu0 0
    %642 = vmatprep.subr.bf16.mxu0 0
    %643 = vmatpush1.bf16.msra.mxu0 0
    %644 = vmatprep.subr.bf16.mxu0 0
    %645 = vmatpush1.bf16.msra.mxu0 0
    %646 = vmatprep.subr.bf16.mxu0 0
    %647 = vmatpush1.bf16.msra.mxu0 0
    %648 = vmatprep.mubr.bf16.mxu0 0
    %649 = vmatmul.mubr.bf16.gmra.mrb[0].mxu0 %v614
    %v650 = vpop.f32.mrb[0].mxu0
    %v651 = vadd.f32 0.0, %v650
    %v652 = vpop.f32.mrb[0].mxu0
    %v653 = vpop.f32.mrb[0].mxu0
    %v654 = vpop.f32.mrb[0].mxu0
    %655 = vdwg.mxu0
    %v656 = vadd.f32 %v599, %v651
    %v657 = vxor.u32 %v656, 2147483648
    %v658 = vmul.f32 %v657, 1.442695
    %v659 = vpow.pop %v658
    %v660 = vadd.f32 %v659, 1.0
    %v661 = vrcp.pop %v660
    %v662 = vmul.f32 1.0, %v661
    %v664 = vlaneseq
    %v665 = vshrl.u32 %v664, 7
    %v666 = vsub.s32 0, %v665
    %v667 = vrot.slane %v494, %v666
    %668 = vrot.lane.b32.xlu0 %v667, 64
    %v669 = vpop.permute.xlu0 %668
    %v671 = vadd.f32 %v651, %v669
    %673 = vrot.lane.b32.xlu0 %v671, 64
    %v674 = vpop.permute.xlu0 %673
    %v676 = vmul.f32 %v662, %v674
    %678 = vrot.lane.b32.xlu0 %v676, 64
    %v679 = vpop.permute.xlu0 %678
    %v681 = vadd.f32 %v599, %v679
    %v682 = vtanh.pop %v681
    %v683 = vsub.f32 1.0, %v662
    %685 = vrot.lane.b32.xlu0 %v682, 96
    %v686 = vpop.permute.xlu0 %685
    %v688 = vmul.f32 %v683, %v686
    %690 = vrot.lane.b32.xlu0 %v499, 32
    %v691 = vpop.permute.xlu0 %690
    %v693 = vmul.f32 %v662, %v691
    %v694 = vadd.f32 %v688, %v693
    %v695 = vstv %s495
    %vm696 = vcmp.lt.s32.totalorder %v695, %v484
    %v697 = vsel %vm696, 1, 0
    %698 = vset.pattern.permute.xlu0 0
    %699 = vperm.xlu0 %698, %v697
    %v700 = vpop.permute.xlu0 %699
    %vm701 = vcmp.eq.s32.totalorder %v700, 1
    %v702 = vsel %vm701, %v597, %v594
    %v703 = vstv %s500
    %vm704 = vcmp.lt.s32.totalorder %v703, %v484
    %v705 = vsel %vm704, 1, 0
    %706 = vset.pattern.permute.xlu0 0
    %707 = vperm.xlu0 %706, %v705
    %v708 = vpop.permute.xlu0 %707
    %vm709 = vcmp.eq.s32.totalorder %v708, 1
    %v710 = vsel %vm709, %v694, %v691
    %s711 = sadd.s32 %s495, 1
    %s712 = sadd.s32 %s497, 6
    %s713 = scalar_lea.vmem [#allocation2], 8
    %v714 = vld [vmem:[%s713] sm:$0xff]
    %v715 = vpack.c.bf16 %v702, %v702
    %717 = vrot.lane.b32.xlu0 %v715, 96
    %v718 = vpop.permute.xlu0 %717
    %v720 = vsel %vm515, %v718, 0
    %722 = vmatprep.subr.bf16.mxu0 0
    %723 = vmatpush1.bf16.msra.mxu0 %v511
    %724 = vmatprep.subr.bf16.mxu0 0
    %725 = vmatpush1.bf16.msra.mxu0 %v512
    %726 = vmatprep.subr.bf16.mxu0 0
    %727 = vmatpush1.bf16.msra.mxu0 0
    %728 = vmatprep.subr.bf16.mxu0 0
    %729 = vmatpush1.bf16.msra.mxu0 0
    %730 = vmatprep.subr.bf16.mxu0 0
    %731 = vmatpush1.bf16.msra.mxu0 0
    %732 = vmatprep.subr.bf16.mxu0 0
    %733 = vmatpush1.bf16.msra.mxu0 0
    %734 = vmatprep.subr.bf16.mxu0 0
    %735 = vmatpush1.bf16.msra.mxu0 0
    %736 = vmatprep.subr.bf16.mxu0 0
    %737 = vmatpush1.bf16.msra.mxu0 0
    %738 = vmatprep.subr.bf16.mxu0 0
    %739 = vmatpush1.bf16.msra.mxu0 0
    %740 = vmatprep.subr.bf16.mxu0 0
    %741 = vmatpush1.bf16.msra.mxu0 0
    %742 = vmatprep.subr.bf16.mxu0 0
    %743 = vmatpush1.bf16.msra.mxu0 0
    %744 = vmatprep.subr.bf16.mxu0 0
    %745 = vmatpush1.bf16.msra.mxu0 0
    %746 = vmatprep.subr.bf16.mxu0 0
    %747 = vmatpush1.bf16.msra.mxu0 0
    %748 = vmatprep.subr.bf16.mxu0 0
    %749 = vmatpush1.bf16.msra.mxu0 0
    %750 = vmatprep.subr.bf16.mxu0 0
    %751 = vmatpush1.bf16.msra.mxu0 0
    %752 = vmatprep.subr.bf16.mxu0 0
    %753 = vmatpush1.bf16.msra.mxu0 0
    %754 = vmatprep.mubr.bf16.mxu0 0
    %755 = vmatmul.mubr.bf16.gmra.mrb[0].mxu0 %v720
    %v756 = vpop.f32.mrb[0].mxu0
    %v757 = vadd.f32 0.0, %v756
    %v758 = vpop.f32.mrb[0].mxu0
    %v759 = vpop.f32.mrb[0].mxu0
    %v760 = vpop.f32.mrb[0].mxu0
    %761 = vdwg.mxu0
    %v762 = vadd.f32 %v714, %v757
    %v763 = vxor.u32 %v762, 2147483648
    %v764 = vmul.f32 %v763, 1.442695
    %v765 = vpow.pop %v764
    %v766 = vadd.f32 %v765, 1.0
    %v767 = vrcp.pop %v766
    %v768 = vmul.f32 1.0, %v767
    %v769 = vadd.f32 %v757, %v572
    %771 = vrot.lane.b32.xlu0 %v769, 64
    %v772 = vpop.permute.xlu0 %771
    %v774 = vmul.f32 %v768, %v772
    %776 = vrot.lane.b32.xlu0 %v774, 64
    %v777 = vpop.permute.xlu0 %776
    %v779 = vadd.f32 %v714, %v777
    %v780 = vtanh.pop %v779
    %v781 = vsub.f32 1.0, %v768
    %783 = vrot.lane.b32.xlu0 %v780, 96
    %v784 = vpop.permute.xlu0 %783
    %v786 = vmul.f32 %v781, %v784
    %v787 = vmul.f32 %v768, %v702
    %v788 = vadd.f32 %v786, %v787
    %s789 = scalar_lea.vmem [#allocation3], 48
    %v790 = vld [vmem:[%s789] sm:$0xff]
    %v791 = vpack.c.bf16 %v710, %v710
    %793 = vrot.lane.b32.xlu0 %v791, 96
    %v794 = vpop.permute.xlu0 %793
    %v796 = vsel %vm515, %v794, 0
    %798 = vmatprep.subr.bf16.mxu0 0
    %799 = vmatpush1.bf16.msra.mxu0 %v609
    %800 = vmatprep.subr.bf16.mxu0 0
    %801 = vmatpush1.bf16.msra.mxu0 %v610
    %802 = vmatprep.subr.bf16.mxu0 0
    %803 = vmatpush1.bf16.msra.mxu0 0
    %804 = vmatprep.subr.bf16.mxu0 0
    %805 = vmatpush1.bf16.msra.mxu0 0
    %806 = vmatprep.subr.bf16.mxu0 0
    %807 = vmatpush1.bf16.msra.mxu0 0
    %808 = vmatprep.subr.bf16.mxu0 0
    %809 = vmatpush1.bf16.msra.mxu0 0
    %810 = vmatprep.subr.bf16.mxu0 0
    %811 = vmatpush1.bf16.msra.mxu0 0
    %812 = vmatprep.subr.bf16.mxu0 0
    %813 = vmatpush1.bf16.msra.mxu0 0
    %814 = vmatprep.subr.bf16.mxu0 0
    %815 = vmatpush1.bf16.msra.mxu0 0
    %816 = vmatprep.subr.bf16.mxu0 0
    %817 = vmatpush1.bf16.msra.mxu0 0
    %818 = vmatprep.subr.bf16.mxu0 0
    %819 = vmatpush1.bf16.msra.mxu0 0
    %820 = vmatprep.subr.bf16.mxu0 0
    %821 = vmatpush1.bf16.msra.mxu0 0
    %822 = vmatprep.subr.bf16.mxu0 0
    %823 = vmatpush1.bf16.msra.mxu0 0
    %824 = vmatprep.subr.bf16.mxu0 0
    %825 = vmatpush1.bf16.msra.mxu0 0
    %826 = vmatprep.subr.bf16.mxu0 0
    %827 = vmatpush1.bf16.msra.mxu0 0
    %828 = vmatprep.subr.bf16.mxu0 0
    %829 = vmatpush1.bf16.msra.mxu0 0
    %830 = vmatprep.mubr.bf16.mxu0 0
    %831 = vmatmul.mubr.bf16.gmra.mrb[0].mxu0 %v796
    %v832 = vpop.f32.mrb[0].mxu0
    %v833 = vadd.f32 0.0, %v832
    %v834 = vpop.f32.mrb[0].mxu0
    %v835 = vpop.f32.mrb[0].mxu0
    %v836 = vpop.f32.mrb[0].mxu0
    %837 = vdwg.mxu0
    %v838 = vadd.f32 %v790, %v833
    %v839 = vxor.u32 %v838, 2147483648
    %v840 = vmul.f32 %v839, 1.442695
    %v841 = vpow.pop %v840
    %v842 = vadd.f32 %v841, 1.0
    %v843 = vrcp.pop %v842
    %v844 = vmul.f32 1.0, %v843
    %v845 = vadd.f32 %v833, %v669
    %847 = vrot.lane.b32.xlu0 %v845, 64
    %v848 = vpop.permute.xlu0 %847
    %v850 = vmul.f32 %v844, %v848
    %852 = vrot.lane.b32.xlu0 %v850, 64
    %v853 = vpop.permute.xlu0 %852
    %v855 = vadd.f32 %v790, %v853
    %v856 = vtanh.pop %v855
    %v857 = vsub.f32 1.0, %v844
    %859 = vrot.lane.b32.xlu0 %v856, 96
    %v860 = vpop.permute.xlu0 %859
    %v862 = vmul.f32 %v857, %v860
    %v863 = vmul.f32 %v844, %v710
    %v864 = vadd.f32 %v862, %v863
    %v865 = vstv %s711
    %vm866 = vcmp.lt.s32.totalorder %v865, %v484
    %v867 = vsel %vm866, 1, 0
    %868 = vset.pattern.permute.xlu0 0
    %869 = vperm.xlu0 %868, %v867
    %v870 = vpop.permute.xlu0 %869
    %vm871 = vcmp.eq.s32.totalorder %v870, 1
    %v872 = vsel %vm871, %v788, %v702
    %v873 = vstv %s712
    %vm874 = vcmp.lt.s32.totalorder %v873, %v484
    %v875 = vsel %vm874, 1, 0
    %876 = vset.pattern.permute.xlu0 0
    %877 = vperm.xlu0 %876, %v875
    %v878 = vpop.permute.xlu0 %877
    %vm879 = vcmp.eq.s32.totalorder %v878, 1
    %v880 = vsel %vm879, %v864, %v710
    %s881 = sadd.s32 %s495, 2
    %s882 = sadd.s32 %s497, 5
    %s883 = scalar_lea.vmem [#allocation2], 16
    %v884 = vld [vmem:[%s883] sm:$0xff]
    %v885 = vpack.c.bf16 %v872, %v872
    %887 = vrot.lane.b32.xlu0 %v885, 96
    %v888 = vpop.permute.xlu0 %887
    %v890 = vsel %vm515, %v888, 0
    %892 = vmatprep.subr.bf16.mxu0 0
    %893 = vmatpush1.bf16.msra.mxu0 %v511
    %894 = vmatprep.subr.bf16.mxu0 0
    %895 = vmatpush1.bf16.msra.mxu0 %v512
    %896 = vmatprep.subr.bf16.mxu0 0
    %897 = vmatpush1.bf16.msra.mxu0 0
    %898 = vmatprep.subr.bf16.mxu0 0
    %899 = vmatpush1.bf16.msra.mxu0 0
    %900 = vmatprep.subr.bf16.mxu0 0
    %901 = vmatpush1.bf16.msra.mxu0 0
    %902 = vmatprep.subr.bf16.mxu0 0
    %903 = vmatpush1.bf16.msra.mxu0 0
    %904 = vmatprep.subr.bf16.mxu0 0
    %905 = vmatpush1.bf16.msra.mxu0 0
    %906 = vmatprep.subr.bf16.mxu0 0
    %907 = vmatpush1.bf16.msra.mxu0 0
    %908 = vmatprep.subr.bf16.mxu0 0
    %909 = vmatpush1.bf16.msra.mxu0 0
    %910 = vmatprep.subr.bf16.mxu0 0
    %911 = vmatpush1.bf16.msra.mxu0 0
    %912 = vmatprep.subr.bf16.mxu0 0
    %913 = vmatpush1.bf16.msra.mxu0 0
    %914 = vmatprep.subr.bf16.mxu0 0
    %915 = vmatpush1.bf16.msra.mxu0 0
    %916 = vmatprep.subr.bf16.mxu0 0
    %917 = vmatpush1.bf16.msra.mxu0 0
    %918 = vmatprep.subr.bf16.mxu0 0
    %919 = vmatpush1.bf16.msra.mxu0 0
    %920 = vmatprep.subr.bf16.mxu0 0
    %921 = vmatpush1.bf16.msra.mxu0 0
    %922 = vmatprep.subr.bf16.mxu0 0
    %923 = vmatpush1.bf16.msra.mxu0 0
    %924 = vmatprep.mubr.bf16.mxu0 0
    %925 = vmatmul.mubr.bf16.gmra.mrb[0].mxu0 %v890
    %v926 = vpop.f32.mrb[0].mxu0
    %v927 = vadd.f32 0.0, %v926
    %v928 = vpop.f32.mrb[0].mxu0
    %v929 = vpop.f32.mrb[0].mxu0
    %v930 = vpop.f32.mrb[0].mxu0
    %931 = vdwg.mxu0
    %v932 = vadd.f32 %v884, %v927
    %v933 = vxor.u32 %v932, 2147483648
    %v934 = vmul.f32 %v933, 1.442695
    %v935 = vpow.pop %v934
    %v936 = vadd.f32 %v935, 1.0
    %v937 = vrcp.pop %v936
    %v938 = vmul.f32 1.0, %v937
    %v939 = vadd.f32 %v927, %v572
    %941 = vrot.lane.b32.xlu0 %v939, 64
    %v942 = vpop.permute.xlu0 %941
    %v944 = vmul.f32 %v938, %v942
    %946 = vrot.lane.b32.xlu0 %v944, 64
    %v947 = vpop.permute.xlu0 %946
    %v949 = vadd.f32 %v884, %v947
    %v950 = vtanh.pop %v949
    %v951 = vsub.f32 1.0, %v938
    %953 = vrot.lane.b32.xlu0 %v950, 96
    %v954 = vpop.permute.xlu0 %953
    %v956 = vmul.f32 %v951, %v954
    %v957 = vmul.f32 %v938, %v872
    %v958 = vadd.f32 %v956, %v957
    %s959 = scalar_lea.vmem [#allocation3], 40
    %v960 = vld [vmem:[%s959] sm:$0xff]
    %v961 = vpack.c.bf16 %v880, %v880
    %963 = vrot.lane.b32.xlu0 %v961, 96
    %v964 = vpop.permute.xlu0 %963
    %v966 = vsel %vm515, %v964, 0
    %968 = vmatprep.subr.bf16.mxu0 0
    %969 = vmatpush1.bf16.msra.mxu0 %v609
    %970 = vmatprep.subr.bf16.mxu0 0
    %971 = vmatpush1.bf16.msra.mxu0 %v610
    %972 = vmatprep.subr.bf16.mxu0 0
    %973 = vmatpush1.bf16.msra.mxu0 0
    %974 = vmatprep.subr.bf16.mxu0 0
    %975 = vmatpush1.bf16.msra.mxu0 0
    %976 = vmatprep.subr.bf16.mxu0 0
    %977 = vmatpush1.bf16.msra.mxu0 0
    %978 = vmatprep.subr.bf16.mxu0 0
    %979 = vmatpush1.bf16.msra.mxu0 0
    %980 = vmatprep.subr.bf16.mxu0 0
    %981 = vmatpush1.bf16.msra.mxu0 0
    %982 = vmatprep.subr.bf16.mxu0 0
    %983 = vmatpush1.bf16.msra.mxu0 0
    %984 = vmatprep.subr.bf16.mxu0 0
    %985 = vmatpush1.bf16.msra.mxu0 0
    %986 = vmatprep.subr.bf16.mxu0 0
    %987 = vmatpush1.bf16.msra.mxu0 0
    %988 = vmatprep.subr.bf16.mxu0 0
    %989 = vmatpush1.bf16.msra.mxu0 0
    %990 = vmatprep.subr.bf16.mxu0 0
    %991 = vmatpush1.bf16.msra.mxu0 0
    %992 = vmatprep.subr.bf16.mxu0 0
    %993 = vmatpush1.bf16.msra.mxu0 0
    %994 = vmatprep.subr.bf16.mxu0 0
    %995 = vmatpush1.bf16.msra.mxu0 0
    %996 = vmatprep.subr.bf16.mxu0 0
    %997 = vmatpush1.bf16.msra.mxu0 0
    %998 = vmatprep.subr.bf16.mxu0 0
    %999 = vmatpush1.bf16.msra.mxu0 0
    %1000 = vmatprep.mubr.bf16.mxu0 0
    %1001 = vmatmul.mubr.bf16.gmra.mrb[0].mxu0 %v966
    %v1002 = vpop.f32.mrb[0].mxu0
    %v1003 = vadd.f32 0.0, %v1002
    %v1004 = vpop.f32.mrb[0].mxu0
    %v1005 = vpop.f32.mrb[0].mxu0
    %v1006 = vpop.f32.mrb[0].mxu0
    %1007 = vdwg.mxu0
    %v1008 = vadd.f32 %v960, %v1003
    %v1009 = vxor.u32 %v1008, 2147483648
    %v1010 = vmul.f32 %v1009, 1.442695
    %v1011 = vpow.pop %v1010
    %v1012 = vadd.f32 %v1011, 1.0
    %v1013 = vrcp.pop %v1012
    %v1014 = vmul.f32 1.0, %v1013
    %v1015 = vadd.f32 %v1003, %v669
    %1017 = vrot.lane.b32.xlu0 %v1015, 64
    %v1018 = vpop.permute.xlu0 %1017
    %v1020 = vmul.f32 %v1014, %v1018
    %1022 = vrot.lane.b32.xlu0 %v1020, 64
    %v1023 = vpop.permute.xlu0 %1022
    %v1025 = vadd.f32 %v960, %v1023
    %v1026 = vtanh.pop %v1025
    %v1027 = vsub.f32 1.0, %v1014
    %1029 = vrot.lane.b32.xlu0 %v1026, 96
    %v1030 = vpop.permute.xlu0 %1029
    %v1032 = vmul.f32 %v1027, %v1030
    %v1033 = vmul.f32 %v1014, %v880
    %v1034 = vadd.f32 %v1032, %v1033
    %v1035 = vstv %s881
    %vm1036 = vcmp.lt.s32.totalorder %v1035, %v484
    %v1037 = vsel %vm1036, 1, 0
    %1038 = vset.pattern.permute.xlu0 0
    %1039 = vperm.xlu0 %1038, %v1037
    %v1040 = vpop.permute.xlu0 %1039
    %vm1041 = vcmp.eq.s32.totalorder %v1040, 1
    %v1042 = vsel %vm1041, %v958, %v872
    %v1043 = vstv %s882
    %vm1044 = vcmp.lt.s32.totalorder %v1043, %v484
    %v1045 = vsel %vm1044, 1, 0
    %1046 = vset.pattern.permute.xlu0 0
    %1047 = vperm.xlu0 %1046, %v1045
    %v1048 = vpop.permute.xlu0 %1047
    %vm1049 = vcmp.eq.s32.totalorder %v1048, 1
    %v1050 = vsel %vm1049, %v1034, %v880
    %s1051 = sadd.s32 %s495, 3
    %s1052 = sadd.s32 %s497, 4
    %s1053 = scalar_lea.vmem [#allocation2], 24
    %v1054 = vld [vmem:[%s1053] sm:$0xff]
    %v1055 = vpack.c.bf16 %v1042, %v1042
    %1057 = vrot.lane.b32.xlu0 %v1055, 96
    %v1058 = vpop.permute.xlu0 %1057
    %v1060 = vsel %vm515, %v1058, 0
    %1062 = vmatprep.subr.bf16.mxu0 0
    %1063 = vmatpush1.bf16.msra.mxu0 %v511
    %1064 = vmatprep.subr.bf16.mxu0 0
    %1065 = vmatpush1.bf16.msra.mxu0 %v512
    %1066 = vmatprep.subr.bf16.mxu0 0
    %1067 = vmatpush1.bf16.msra.mxu0 0
    %1068 = vmatprep.subr.bf16.mxu0 0
    %1069 = vmatpush1.bf16.msra.mxu0 0
    %1070 = vmatprep.subr.bf16.mxu0 0
    %1071 = vmatpush1.bf16.msra.mxu0 0
    %1072 = vmatprep.subr.bf16.mxu0 0
    %1073 = vmatpush1.bf16.msra.mxu0 0
    %1074 = vmatprep.subr.bf16.mxu0 0
    %1075 = vmatpush1.bf16.msra.mxu0 0
    %1076 = vmatprep.subr.bf16.mxu0 0
    %1077 = vmatpush1.bf16.msra.mxu0 0
    %1078 = vmatprep.subr.bf16.mxu0 0
    %1079 = vmatpush1.bf16.msra.mxu0 0
    %1080 = vmatprep.subr.bf16.mxu0 0
    %1081 = vmatpush1.bf16.msra.mxu0 0
    %1082 = vmatprep.subr.bf16.mxu0 0
    %1083 = vmatpush1.bf16.msra.mxu0 0
    %1084 = vmatprep.subr.bf16.mxu0 0
    %1085 = vmatpush1.bf16.msra.mxu0 0
    %1086 = vmatprep.subr.bf16.mxu0 0
    %1087 = vmatpush1.bf16.msra.mxu0 0
    %1088 = vmatprep.subr.bf16.mxu0 0
    %1089 = vmatpush1.bf16.msra.mxu0 0
    %1090 = vmatprep.subr.bf16.mxu0 0
    %1091 = vmatpush1.bf16.msra.mxu0 0
    %1092 = vmatprep.subr.bf16.mxu0 0
    %1093 = vmatpush1.bf16.msra.mxu0 0
    %1094 = vmatprep.mubr.bf16.mxu0 0
    %1095 = vmatmul.mubr.bf16.gmra.mrb[0].mxu0 %v1060
    %v1096 = vpop.f32.mrb[0].mxu0
    %v1097 = vadd.f32 0.0, %v1096
    %v1098 = vpop.f32.mrb[0].mxu0
    %v1099 = vpop.f32.mrb[0].mxu0
    %v1100 = vpop.f32.mrb[0].mxu0
    %1101 = vdwg.mxu0
    %v1102 = vadd.f32 %v1054, %v1097
    %v1103 = vxor.u32 %v1102, 2147483648
    %v1104 = vmul.f32 %v1103, 1.442695
    %v1105 = vpow.pop %v1104
    %v1106 = vadd.f32 %v1105, 1.0
    %v1107 = vrcp.pop %v1106
    %v1108 = vmul.f32 1.0, %v1107
    %v1109 = vadd.f32 %v1097, %v572
    %1111 = vrot.lane.b32.xlu0 %v1109, 64
    %v1112 = vpop.permute.xlu0 %1111
    %v1114 = vmul.f32 %v1108, %v1112
    %1116 = vrot.lane.b32.xlu0 %v1114, 64
    %v1117 = vpop.permute.xlu0 %1116
    %v1119 = vadd.f32 %v1054, %v1117
    %v1120 = vtanh.pop %v1119
    %v1121 = vsub.f32 1.0, %v1108
    %1123 = vrot.lane.b32.xlu0 %v1120, 96
    %v1124 = vpop.permute.xlu0 %1123
    %v1126 = vmul.f32 %v1121, %v1124
    %v1127 = vmul.f32 %v1108, %v1042
    %v1128 = vadd.f32 %v1126, %v1127
    %s1129 = scalar_lea.vmem [#allocation3], 32
    %v1130 = vld [vmem:[%s1129] sm:$0xff]
    %v1131 = vpack.c.bf16 %v1050, %v1050
    %1133 = vrot.lane.b32.xlu0 %v1131, 96
    %v1134 = vpop.permute.xlu0 %1133
    %v1136 = vsel %vm515, %v1134, 0
    %1138 = vmatprep.subr.bf16.mxu0 0
    %1139 = vmatpush1.bf16.msra.mxu0 %v609
    %1140 = vmatprep.subr.bf16.mxu0 0
    %1141 = vmatpush1.bf16.msra.mxu0 %v610
    %1142 = vmatprep.subr.bf16.mxu0 0
    %1143 = vmatpush1.bf16.msra.mxu0 0
    %1144 = vmatprep.subr.bf16.mxu0 0
    %1145 = vmatpush1.bf16.msra.mxu0 0
    %1146 = vmatprep.subr.bf16.mxu0 0
    %1147 = vmatpush1.bf16.msra.mxu0 0
    %1148 = vmatprep.subr.bf16.mxu0 0
    %1149 = vmatpush1.bf16.msra.mxu0 0
    %1150 = vmatprep.subr.bf16.mxu0 0
    %1151 = vmatpush1.bf16.msra.mxu0 0
    %1152 = vmatprep.subr.bf16.mxu0 0
    %1153 = vmatpush1.bf16.msra.mxu0 0
    %1154 = vmatprep.subr.bf16.mxu0 0
    %1155 = vmatpush1.bf16.msra.mxu0 0
    %1156 = vmatprep.subr.bf16.mxu0 0
    %1157 = vmatpush1.bf16.msra.mxu0 0
    %1158 = vmatprep.subr.bf16.mxu0 0
    %1159 = vmatpush1.bf16.msra.mxu0 0
    %1160 = vmatprep.subr.bf16.mxu0 0
    %1161 = vmatpush1.bf16.msra.mxu0 0
    %1162 = vmatprep.subr.bf16.mxu0 0
    %1163 = vmatpush1.bf16.msra.mxu0 0
    %1164 = vmatprep.subr.bf16.mxu0 0
    %1165 = vmatpush1.bf16.msra.mxu0 0
    %1166 = vmatprep.subr.bf16.mxu0 0
    %1167 = vmatpush1.bf16.msra.mxu0 0
    %1168 = vmatprep.subr.bf16.mxu0 0
    %1169 = vmatpush1.bf16.msra.mxu0 0
    %1170 = vmatprep.mubr.bf16.mxu0 0
    %1171 = vmatmul.mubr.bf16.gmra.mrb[0].mxu0 %v1136
    %v1172 = vpop.f32.mrb[0].mxu0
    %v1173 = vadd.f32 0.0, %v1172
    %v1174 = vpop.f32.mrb[0].mxu0
    %v1175 = vpop.f32.mrb[0].mxu0
    %v1176 = vpop.f32.mrb[0].mxu0
    %1177 = vdwg.mxu0
    %v1178 = vadd.f32 %v1130, %v1173
    %v1179 = vxor.u32 %v1178, 2147483648
    %v1180 = vmul.f32 %v1179, 1.442695
    %v1181 = vpow.pop %v1180
    %v1182 = vadd.f32 %v1181, 1.0
    %v1183 = vrcp.pop %v1182
    %v1184 = vmul.f32 1.0, %v1183
    %v1185 = vadd.f32 %v1173, %v669
    %1187 = vrot.lane.b32.xlu0 %v1185, 64
    %v1188 = vpop.permute.xlu0 %1187
    %v1190 = vmul.f32 %v1184, %v1188
    %1192 = vrot.lane.b32.xlu0 %v1190, 64
    %v1193 = vpop.permute.xlu0 %1192
    %v1195 = vadd.f32 %v1130, %v1193
    %v1196 = vtanh.pop %v1195
    %v1197 = vsub.f32 1.0, %v1184
    %1199 = vrot.lane.b32.xlu0 %v1196, 96
    %v1200 = vpop.permute.xlu0 %1199
    %v1202 = vmul.f32 %v1197, %v1200
    %v1203 = vmul.f32 %v1184, %v1050
    %v1204 = vadd.f32 %v1202, %v1203
    %v1205 = vstv %s1051
    %vm1206 = vcmp.lt.s32.totalorder %v1205, %v484
    %v1207 = vsel %vm1206, 1, 0
    %1208 = vset.pattern.permute.xlu0 0
    %1209 = vperm.xlu0 %1208, %v1207
    %v1210 = vpop.permute.xlu0 %1209
    %vm1211 = vcmp.eq.s32.totalorder %v1210, 1
    %v1212 = vsel %vm1211, %v1128, %v1042
    %v1213 = vstv %s1052
    %vm1214 = vcmp.lt.s32.totalorder %v1213, %v484
    %v1215 = vsel %vm1214, 1, 0
    %1216 = vset.pattern.permute.xlu0 0
    %1217 = vperm.xlu0 %1216, %v1215
    %v1218 = vpop.permute.xlu0 %1217
    %vm1219 = vcmp.eq.s32.totalorder %v1218, 1
    %v1220 = vsel %vm1219, %v1204, %v1050
    %s1221 = sadd.s32 %s495, 4
    %s1222 = sadd.s32 %s497, 3
    %s1223 = scalar_lea.vmem [#allocation2], 32
    %v1224 = vld [vmem:[%s1223] sm:$0xff]
    %v1225 = vpack.c.bf16 %v1212, %v1212
    %1227 = vrot.lane.b32.xlu0 %v1225, 96
    %v1228 = vpop.permute.xlu0 %1227
    %v1230 = vsel %vm515, %v1228, 0
    %1232 = vmatprep.subr.bf16.mxu0 0
    %1233 = vmatpush1.bf16.msra.mxu0 %v511
    %1234 = vmatprep.subr.bf16.mxu0 0
    %1235 = vmatpush1.bf16.msra.mxu0 %v512
    %1236 = vmatprep.subr.bf16.mxu0 0
    %1237 = vmatpush1.bf16.msra.mxu0 0
    %1238 = vmatprep.subr.bf16.mxu0 0
    %1239 = vmatpush1.bf16.msra.mxu0 0
    %1240 = vmatprep.subr.bf16.mxu0 0
    %1241 = vmatpush1.bf16.msra.mxu0 0
    %1242 = vmatprep.subr.bf16.mxu0 0
    %1243 = vmatpush1.bf16.msra.mxu0 0
    %1244 = vmatprep.subr.bf16.mxu0 0
    %1245 = vmatpush1.bf16.msra.mxu0 0
    %1246 = vmatprep.subr.bf16.mxu0 0
    %1247 = vmatpush1.bf16.msra.mxu0 0
    %1248 = vmatprep.subr.bf16.mxu0 0
    %1249 = vmatpush1.bf16.msra.mxu0 0
    %1250 = vmatprep.subr.bf16.mxu0 0
    %1251 = vmatpush1.bf16.msra.mxu0 0
    %1252 = vmatprep.subr.bf16.mxu0 0
    %1253 = vmatpush1.bf16.msra.mxu0 0
    %1254 = vmatprep.subr.bf16.mxu0 0
    %1255 = vmatpush1.bf16.msra.mxu0 0
    %1256 = vmatprep.subr.bf16.mxu0 0
    %1257 = vmatpush1.bf16.msra.mxu0 0
    %1258 = vmatprep.subr.bf16.mxu0 0
    %1259 = vmatpush1.bf16.msra.mxu0 0
    %1260 = vmatprep.subr.bf16.mxu0 0
    %1261 = vmatpush1.bf16.msra.mxu0 0
    %1262 = vmatprep.subr.bf16.mxu0 0
    %1263 = vmatpush1.bf16.msra.mxu0 0
    %1264 = vmatprep.mubr.bf16.mxu0 0
    %1265 = vmatmul.mubr.bf16.gmra.mrb[0].mxu0 %v1230
    %v1266 = vpop.f32.mrb[0].mxu0
    %v1267 = vadd.f32 0.0, %v1266
    %v1268 = vpop.f32.mrb[0].mxu0
    %v1269 = vpop.f32.mrb[0].mxu0
    %v1270 = vpop.f32.mrb[0].mxu0
    %1271 = vdwg.mxu0
    %v1272 = vadd.f32 %v1224, %v1267
    %v1273 = vxor.u32 %v1272, 2147483648
    %v1274 = vmul.f32 %v1273, 1.442695
    %v1275 = vpow.pop %v1274
    %v1276 = vadd.f32 %v1275, 1.0
    %v1277 = vrcp.pop %v1276
    %v1278 = vmul.f32 1.0, %v1277
    %v1279 = vadd.f32 %v1267, %v572
    %1281 = vrot.lane.b32.xlu0 %v1279, 64
    %v1282 = vpop.permute.xlu0 %1281
    %v1284 = vmul.f32 %v1278, %v1282
    %1286 = vrot.lane.b32.xlu0 %v1284, 64
    %v1287 = vpop.permute.xlu0 %1286
    %v1289 = vadd.f32 %v1224, %v1287
    %v1290 = vtanh.pop %v1289
    %v1291 = vsub.f32 1.0, %v1278
    %1293 = vrot.lane.b32.xlu0 %v1290, 96
    %v1294 = vpop.permute.xlu0 %1293
    %v1296 = vmul.f32 %v1291, %v1294
    %v1297 = vmul.f32 %v1278, %v1212
    %v1298 = vadd.f32 %v1296, %v1297
    %s1299 = scalar_lea.vmem [#allocation3], 24
    %v1300 = vld [vmem:[%s1299] sm:$0xff]
    %v1301 = vpack.c.bf16 %v1220, %v1220
    %1303 = vrot.lane.b32.xlu0 %v1301, 96
    %v1304 = vpop.permute.xlu0 %1303
    %v1306 = vsel %vm515, %v1304, 0
    %1308 = vmatprep.subr.bf16.mxu0 0
    %1309 = vmatpush1.bf16.msra.mxu0 %v609
    %1310 = vmatprep.subr.bf16.mxu0 0
    %1311 = vmatpush1.bf16.msra.mxu0 %v610
    %1312 = vmatprep.subr.bf16.mxu0 0
    %1313 = vmatpush1.bf16.msra.mxu0 0
    %1314 = vmatprep.subr.bf16.mxu0 0
    %1315 = vmatpush1.bf16.msra.mxu0 0
    %1316 = vmatprep.subr.bf16.mxu0 0
    %1317 = vmatpush1.bf16.msra.mxu0 0
    %1318 = vmatprep.subr.bf16.mxu0 0
    %1319 = vmatpush1.bf16.msra.mxu0 0
    %1320 = vmatprep.subr.bf16.mxu0 0
    %1321 = vmatpush1.bf16.msra.mxu0 0
    %1322 = vmatprep.subr.bf16.mxu0 0
    %1323 = vmatpush1.bf16.msra.mxu0 0
    %1324 = vmatprep.subr.bf16.mxu0 0
    %1325 = vmatpush1.bf16.msra.mxu0 0
    %1326 = vmatprep.subr.bf16.mxu0 0
    %1327 = vmatpush1.bf16.msra.mxu0 0
    %1328 = vmatprep.subr.bf16.mxu0 0
    %1329 = vmatpush1.bf16.msra.mxu0 0
    %1330 = vmatprep.subr.bf16.mxu0 0
    %1331 = vmatpush1.bf16.msra.mxu0 0
    %1332 = vmatprep.subr.bf16.mxu0 0
    %1333 = vmatpush1.bf16.msra.mxu0 0
    %1334 = vmatprep.subr.bf16.mxu0 0
    %1335 = vmatpush1.bf16.msra.mxu0 0
    %1336 = vmatprep.subr.bf16.mxu0 0
    %1337 = vmatpush1.bf16.msra.mxu0 0
    %1338 = vmatprep.subr.bf16.mxu0 0
    %1339 = vmatpush1.bf16.msra.mxu0 0
    %1340 = vmatprep.mubr.bf16.mxu0 0
    %1341 = vmatmul.mubr.bf16.gmra.mrb[0].mxu0 %v1306
    %v1342 = vpop.f32.mrb[0].mxu0
    %v1343 = vadd.f32 0.0, %v1342
    %v1344 = vpop.f32.mrb[0].mxu0
    %v1345 = vpop.f32.mrb[0].mxu0
    %v1346 = vpop.f32.mrb[0].mxu0
    %1347 = vdwg.mxu0
    %v1348 = vadd.f32 %v1300, %v1343
    %v1349 = vxor.u32 %v1348, 2147483648
    %v1350 = vmul.f32 %v1349, 1.442695
    %v1351 = vpow.pop %v1350
    %v1352 = vadd.f32 %v1351, 1.0
    %v1353 = vrcp.pop %v1352
    %v1354 = vmul.f32 1.0, %v1353
    %v1355 = vadd.f32 %v1343, %v669
    %1357 = vrot.lane.b32.xlu0 %v1355, 64
    %v1358 = vpop.permute.xlu0 %1357
    %v1360 = vmul.f32 %v1354, %v1358
    %1362 = vrot.lane.b32.xlu0 %v1360, 64
    %v1363 = vpop.permute.xlu0 %1362
    %v1365 = vadd.f32 %v1300, %v1363
    %v1366 = vtanh.pop %v1365
    %v1367 = vsub.f32 1.0, %v1354
    %1369 = vrot.lane.b32.xlu0 %v1366, 96
    %v1370 = vpop.permute.xlu0 %1369
    %v1372 = vmul.f32 %v1367, %v1370
    %v1373 = vmul.f32 %v1354, %v1220
    %v1374 = vadd.f32 %v1372, %v1373
    %v1375 = vstv %s1221
    %vm1376 = vcmp.lt.s32.totalorder %v1375, %v484
    %v1377 = vsel %vm1376, 1, 0
    %1378 = vset.pattern.permute.xlu0 0
    %1379 = vperm.xlu0 %1378, %v1377
    %v1380 = vpop.permute.xlu0 %1379
    %vm1381 = vcmp.eq.s32.totalorder %v1380, 1
    %v1382 = vsel %vm1381, %v1298, %v1212
    %v1383 = vstv %s1222
    %vm1384 = vcmp.lt.s32.totalorder %v1383, %v484
    %v1385 = vsel %vm1384, 1, 0
    %1386 = vset.pattern.permute.xlu0 0
    %1387 = vperm.xlu0 %1386, %v1385
    %v1388 = vpop.permute.xlu0 %1387
    %vm1389 = vcmp.eq.s32.totalorder %v1388, 1
    %v1390 = vsel %vm1389, %v1374, %v1220
    %s1391 = sadd.s32 %s495, 5
    %s1392 = sadd.s32 %s497, 2
    %s1393 = scalar_lea.vmem [#allocation2], 40
    %v1394 = vld [vmem:[%s1393] sm:$0xff]
    %v1395 = vpack.c.bf16 %v1382, %v1382
    %1397 = vrot.lane.b32.xlu0 %v1395, 96
    %v1398 = vpop.permute.xlu0 %1397
    %v1400 = vsel %vm515, %v1398, 0
    %1402 = vmatprep.subr.bf16.mxu0 0
    %1403 = vmatpush1.bf16.msra.mxu0 %v511
    %1404 = vmatprep.subr.bf16.mxu0 0
    %1405 = vmatpush1.bf16.msra.mxu0 %v512
    %1406 = vmatprep.subr.bf16.mxu0 0
    %1407 = vmatpush1.bf16.msra.mxu0 0
    %1408 = vmatprep.subr.bf16.mxu0 0
    %1409 = vmatpush1.bf16.msra.mxu0 0
    %1410 = vmatprep.subr.bf16.mxu0 0
    %1411 = vmatpush1.bf16.msra.mxu0 0
    %1412 = vmatprep.subr.bf16.mxu0 0
    %1413 = vmatpush1.bf16.msra.mxu0 0
    %1414 = vmatprep.subr.bf16.mxu0 0
    %1415 = vmatpush1.bf16.msra.mxu0 0
    %1416 = vmatprep.subr.bf16.mxu0 0
    %1417 = vmatpush1.bf16.msra.mxu0 0
    %1418 = vmatprep.subr.bf16.mxu0 0
    %1419 = vmatpush1.bf16.msra.mxu0 0
    %1420 = vmatprep.subr.bf16.mxu0 0
    %1421 = vmatpush1.bf16.msra.mxu0 0
    %1422 = vmatprep.subr.bf16.mxu0 0
    %1423 = vmatpush1.bf16.msra.mxu0 0
    %1424 = vmatprep.subr.bf16.mxu0 0
    %1425 = vmatpush1.bf16.msra.mxu0 0
    %1426 = vmatprep.subr.bf16.mxu0 0
    %1427 = vmatpush1.bf16.msra.mxu0 0
    %1428 = vmatprep.subr.bf16.mxu0 0
    %1429 = vmatpush1.bf16.msra.mxu0 0
    %1430 = vmatprep.subr.bf16.mxu0 0
    %1431 = vmatpush1.bf16.msra.mxu0 0
    %1432 = vmatprep.subr.bf16.mxu0 0
    %1433 = vmatpush1.bf16.msra.mxu0 0
    %1434 = vmatprep.mubr.bf16.mxu0 0
    %1435 = vmatmul.mubr.bf16.gmra.mrb[0].mxu0 %v1400
    %v1436 = vpop.f32.mrb[0].mxu0
    %v1437 = vadd.f32 0.0, %v1436
    %v1438 = vpop.f32.mrb[0].mxu0
    %v1439 = vpop.f32.mrb[0].mxu0
    %v1440 = vpop.f32.mrb[0].mxu0
    %1441 = vdwg.mxu0
    %v1442 = vadd.f32 %v1394, %v1437
    %v1443 = vxor.u32 %v1442, 2147483648
    %v1444 = vmul.f32 %v1443, 1.442695
    %v1445 = vpow.pop %v1444
    %v1446 = vadd.f32 %v1445, 1.0
    %v1447 = vrcp.pop %v1446
    %v1448 = vmul.f32 1.0, %v1447
    %v1449 = vadd.f32 %v1437, %v572
    %1451 = vrot.lane.b32.xlu0 %v1449, 64
    %v1452 = vpop.permute.xlu0 %1451
    %v1454 = vmul.f32 %v1448, %v1452
    %1456 = vrot.lane.b32.xlu0 %v1454, 64
    %v1457 = vpop.permute.xlu0 %1456
    %v1459 = vadd.f32 %v1394, %v1457
    %v1460 = vtanh.pop %v1459
    %v1461 = vsub.f32 1.0, %v1448
    %1463 = vrot.lane.b32.xlu0 %v1460, 96
    %v1464 = vpop.permute.xlu0 %1463
    %v1466 = vmul.f32 %v1461, %v1464
    %v1467 = vmul.f32 %v1448, %v1382
    %v1468 = vadd.f32 %v1466, %v1467
    %s1469 = scalar_lea.vmem [#allocation3], 16
    %v1470 = vld [vmem:[%s1469] sm:$0xff]
    %v1471 = vpack.c.bf16 %v1390, %v1390
    %1473 = vrot.lane.b32.xlu0 %v1471, 96
    %v1474 = vpop.permute.xlu0 %1473
    %v1476 = vsel %vm515, %v1474, 0
    %1478 = vmatprep.subr.bf16.mxu0 0
    %1479 = vmatpush1.bf16.msra.mxu0 %v609
    %1480 = vmatprep.subr.bf16.mxu0 0
    %1481 = vmatpush1.bf16.msra.mxu0 %v610
    %1482 = vmatprep.subr.bf16.mxu0 0
    %1483 = vmatpush1.bf16.msra.mxu0 0
    %1484 = vmatprep.subr.bf16.mxu0 0
    %1485 = vmatpush1.bf16.msra.mxu0 0
    %1486 = vmatprep.subr.bf16.mxu0 0
    %1487 = vmatpush1.bf16.msra.mxu0 0
    %1488 = vmatprep.subr.bf16.mxu0 0
    %1489 = vmatpush1.bf16.msra.mxu0 0
    %1490 = vmatprep.subr.bf16.mxu0 0
    %1491 = vmatpush1.bf16.msra.mxu0 0
    %1492 = vmatprep.subr.bf16.mxu0 0
    %1493 = vmatpush1.bf16.msra.mxu0 0
    %1494 = vmatprep.subr.bf16.mxu0 0
    %1495 = vmatpush1.bf16.msra.mxu0 0
    %1496 = vmatprep.subr.bf16.mxu0 0
    %1497 = vmatpush1.bf16.msra.mxu0 0
    %1498 = vmatprep.subr.bf16.mxu0 0
    %1499 = vmatpush1.bf16.msra.mxu0 0
    %1500 = vmatprep.subr.bf16.mxu0 0
    %1501 = vmatpush1.bf16.msra.mxu0 0
    %1502 = vmatprep.subr.bf16.mxu0 0
    %1503 = vmatpush1.bf16.msra.mxu0 0
    %1504 = vmatprep.subr.bf16.mxu0 0
    %1505 = vmatpush1.bf16.msra.mxu0 0
    %1506 = vmatprep.subr.bf16.mxu0 0
    %1507 = vmatpush1.bf16.msra.mxu0 0
    %1508 = vmatprep.subr.bf16.mxu0 0
    %1509 = vmatpush1.bf16.msra.mxu0 0
    %1510 = vmatprep.mubr.bf16.mxu0 0
    %1511 = vmatmul.mubr.bf16.gmra.mrb[0].mxu0 %v1476
    %v1512 = vpop.f32.mrb[0].mxu0
    %v1513 = vadd.f32 0.0, %v1512
    %v1514 = vpop.f32.mrb[0].mxu0
    %v1515 = vpop.f32.mrb[0].mxu0
    %v1516 = vpop.f32.mrb[0].mxu0
    %1517 = vdwg.mxu0
    %v1518 = vadd.f32 %v1470, %v1513
    %v1519 = vxor.u32 %v1518, 2147483648
    %v1520 = vmul.f32 %v1519, 1.442695
    %v1521 = vpow.pop %v1520
    %v1522 = vadd.f32 %v1521, 1.0
    %v1523 = vrcp.pop %v1522
    %v1524 = vmul.f32 1.0, %v1523
    %v1525 = vadd.f32 %v1513, %v669
    %1527 = vrot.lane.b32.xlu0 %v1525, 64
    %v1528 = vpop.permute.xlu0 %1527
    %v1530 = vmul.f32 %v1524, %v1528
    %1532 = vrot.lane.b32.xlu0 %v1530, 64
    %v1533 = vpop.permute.xlu0 %1532
    %v1535 = vadd.f32 %v1470, %v1533
    %v1536 = vtanh.pop %v1535
    %v1537 = vsub.f32 1.0, %v1524
    %1539 = vrot.lane.b32.xlu0 %v1536, 96
    %v1540 = vpop.permute.xlu0 %1539
    %v1542 = vmul.f32 %v1537, %v1540
    %v1543 = vmul.f32 %v1524, %v1390
    %v1544 = vadd.f32 %v1542, %v1543
    %v1545 = vstv %s1391
    %vm1546 = vcmp.lt.s32.totalorder %v1545, %v484
    %v1547 = vsel %vm1546, 1, 0
    %1548 = vset.pattern.permute.xlu0 0
    %1549 = vperm.xlu0 %1548, %v1547
    %v1550 = vpop.permute.xlu0 %1549
    %vm1551 = vcmp.eq.s32.totalorder %v1550, 1
    %v1552 = vsel %vm1551, %v1468, %v1382
    %v1553 = vstv %s1392
    %vm1554 = vcmp.lt.s32.totalorder %v1553, %v484
    %v1555 = vsel %vm1554, 1, 0
    %1556 = vset.pattern.permute.xlu0 0
    %1557 = vperm.xlu0 %1556, %v1555
    %v1558 = vpop.permute.xlu0 %1557
    %vm1559 = vcmp.eq.s32.totalorder %v1558, 1
    %v1560 = vsel %vm1559, %v1544, %v1390
    %s1561 = sadd.s32 %s495, 6
    %s1562 = sadd.s32 %s497, 1
    %s1563 = scalar_lea.vmem [#allocation2], 48
    %v1564 = vld [vmem:[%s1563] sm:$0xff]
    %v1565 = vpack.c.bf16 %v1552, %v1552
    %1567 = vrot.lane.b32.xlu0 %v1565, 96
    %v1568 = vpop.permute.xlu0 %1567
    %v1570 = vsel %vm515, %v1568, 0
    %1572 = vmatprep.subr.bf16.mxu0 0
    %1573 = vmatpush1.bf16.msra.mxu0 %v511
    %1574 = vmatprep.subr.bf16.mxu0 0
    %1575 = vmatpush1.bf16.msra.mxu0 %v512
    %1576 = vmatprep.subr.bf16.mxu0 0
    %1577 = vmatpush1.bf16.msra.mxu0 0
    %1578 = vmatprep.subr.bf16.mxu0 0
    %1579 = vmatpush1.bf16.msra.mxu0 0
    %1580 = vmatprep.subr.bf16.mxu0 0
    %1581 = vmatpush1.bf16.msra.mxu0 0
    %1582 = vmatprep.subr.bf16.mxu0 0
    %1583 = vmatpush1.bf16.msra.mxu0 0
    %1584 = vmatprep.subr.bf16.mxu0 0
    %1585 = vmatpush1.bf16.msra.mxu0 0
    %1586 = vmatprep.subr.bf16.mxu0 0
    %1587 = vmatpush1.bf16.msra.mxu0 0
    %1588 = vmatprep.subr.bf16.mxu0 0
    %1589 = vmatpush1.bf16.msra.mxu0 0
    %1590 = vmatprep.subr.bf16.mxu0 0
    %1591 = vmatpush1.bf16.msra.mxu0 0
    %1592 = vmatprep.subr.bf16.mxu0 0
    %1593 = vmatpush1.bf16.msra.mxu0 0
    %1594 = vmatprep.subr.bf16.mxu0 0
    %1595 = vmatpush1.bf16.msra.mxu0 0
    %1596 = vmatprep.subr.bf16.mxu0 0
    %1597 = vmatpush1.bf16.msra.mxu0 0
    %1598 = vmatprep.subr.bf16.mxu0 0
    %1599 = vmatpush1.bf16.msra.mxu0 0
    %1600 = vmatprep.subr.bf16.mxu0 0
    %1601 = vmatpush1.bf16.msra.mxu0 0
    %1602 = vmatprep.subr.bf16.mxu0 0
    %1603 = vmatpush1.bf16.msra.mxu0 0
    %1604 = vmatprep.mubr.bf16.mxu0 0
    %1605 = vmatmul.mubr.bf16.gmra.mrb[0].mxu0 %v1570
    %v1606 = vpop.f32.mrb[0].mxu0
    %v1607 = vadd.f32 0.0, %v1606
    %v1608 = vpop.f32.mrb[0].mxu0
    %v1609 = vpop.f32.mrb[0].mxu0
    %v1610 = vpop.f32.mrb[0].mxu0
    %1611 = vdwg.mxu0
    %v1612 = vadd.f32 %v1564, %v1607
    %v1613 = vxor.u32 %v1612, 2147483648
    %v1614 = vmul.f32 %v1613, 1.442695
    %v1615 = vpow.pop %v1614
    %v1616 = vadd.f32 %v1615, 1.0
    %v1617 = vrcp.pop %v1616
    %v1618 = vmul.f32 1.0, %v1617
    %v1619 = vadd.f32 %v1607, %v572
    %1621 = vrot.lane.b32.xlu0 %v1619, 64
    %v1622 = vpop.permute.xlu0 %1621
    %v1624 = vmul.f32 %v1618, %v1622
    %1626 = vrot.lane.b32.xlu0 %v1624, 64
    %v1627 = vpop.permute.xlu0 %1626
    %v1629 = vadd.f32 %v1564, %v1627
    %v1630 = vtanh.pop %v1629
    %v1631 = vsub.f32 1.0, %v1618
    %1633 = vrot.lane.b32.xlu0 %v1630, 96
    %v1634 = vpop.permute.xlu0 %1633
    %v1636 = vmul.f32 %v1631, %v1634
    %v1637 = vmul.f32 %v1618, %v1552
    %v1638 = vadd.f32 %v1636, %v1637
    %s1639 = scalar_lea.vmem [#allocation3], 8
    %v1640 = vld [vmem:[%s1639] sm:$0xff]
    %v1641 = vpack.c.bf16 %v1560, %v1560
    %1643 = vrot.lane.b32.xlu0 %v1641, 96
    %v1644 = vpop.permute.xlu0 %1643
    %v1646 = vsel %vm515, %v1644, 0
    %1648 = vmatprep.subr.bf16.mxu0 0
    %1649 = vmatpush1.bf16.msra.mxu0 %v609
    %1650 = vmatprep.subr.bf16.mxu0 0
    %1651 = vmatpush1.bf16.msra.mxu0 %v610
    %1652 = vmatprep.subr.bf16.mxu0 0
    %1653 = vmatpush1.bf16.msra.mxu0 0
    %1654 = vmatprep.subr.bf16.mxu0 0
    %1655 = vmatpush1.bf16.msra.mxu0 0
    %1656 = vmatprep.subr.bf16.mxu0 0
    %1657 = vmatpush1.bf16.msra.mxu0 0
    %1658 = vmatprep.subr.bf16.mxu0 0
    %1659 = vmatpush1.bf16.msra.mxu0 0
    %1660 = vmatprep.subr.bf16.mxu0 0
    %1661 = vmatpush1.bf16.msra.mxu0 0
    %1662 = vmatprep.subr.bf16.mxu0 0
    %1663 = vmatpush1.bf16.msra.mxu0 0
    %1664 = vmatprep.subr.bf16.mxu0 0
    %1665 = vmatpush1.bf16.msra.mxu0 0
    %1666 = vmatprep.subr.bf16.mxu0 0
    %1667 = vmatpush1.bf16.msra.mxu0 0
    %1668 = vmatprep.subr.bf16.mxu0 0
    %1669 = vmatpush1.bf16.msra.mxu0 0
    %1670 = vmatprep.subr.bf16.mxu0 0
    %1671 = vmatpush1.bf16.msra.mxu0 0
    %1672 = vmatprep.subr.bf16.mxu0 0
    %1673 = vmatpush1.bf16.msra.mxu0 0
    %1674 = vmatprep.subr.bf16.mxu0 0
    %1675 = vmatpush1.bf16.msra.mxu0 0
    %1676 = vmatprep.subr.bf16.mxu0 0
    %1677 = vmatpush1.bf16.msra.mxu0 0
    %1678 = vmatprep.subr.bf16.mxu0 0
    %1679 = vmatpush1.bf16.msra.mxu0 0
    %1680 = vmatprep.mubr.bf16.mxu0 0
    %1681 = vmatmul.mubr.bf16.gmra.mrb[0].mxu0 %v1646
    %v1682 = vpop.f32.mrb[0].mxu0
    %v1683 = vadd.f32 0.0, %v1682
    %v1684 = vpop.f32.mrb[0].mxu0
    %v1685 = vpop.f32.mrb[0].mxu0
    %v1686 = vpop.f32.mrb[0].mxu0
    %1687 = vdwg.mxu0
    %v1688 = vadd.f32 %v1640, %v1683
    %v1689 = vxor.u32 %v1688, 2147483648
    %v1690 = vmul.f32 %v1689, 1.442695
    %v1691 = vpow.pop %v1690
    %v1692 = vadd.f32 %v1691, 1.0
    %v1693 = vrcp.pop %v1692
    %v1694 = vmul.f32 1.0, %v1693
    %v1695 = vadd.f32 %v1683, %v669
    %1697 = vrot.lane.b32.xlu0 %v1695, 64
    %v1698 = vpop.permute.xlu0 %1697
    %v1700 = vmul.f32 %v1694, %v1698
    %1702 = vrot.lane.b32.xlu0 %v1700, 64
    %v1703 = vpop.permute.xlu0 %1702
    %v1705 = vadd.f32 %v1640, %v1703
    %v1706 = vtanh.pop %v1705
    %v1707 = vsub.f32 1.0, %v1694
    %1709 = vrot.lane.b32.xlu0 %v1706, 96
    %v1710 = vpop.permute.xlu0 %1709
    %v1712 = vmul.f32 %v1707, %v1710
    %v1713 = vmul.f32 %v1694, %v1560
    %v1714 = vadd.f32 %v1712, %v1713
    %v1715 = vstv %s1561
    %vm1716 = vcmp.lt.s32.totalorder %v1715, %v484
    %v1717 = vsel %vm1716, 1, 0
    %1718 = vset.pattern.permute.xlu0 0
    %1719 = vperm.xlu0 %1718, %v1717
    %v1720 = vpop.permute.xlu0 %1719
    %vm1721 = vcmp.eq.s32.totalorder %v1720, 1
    %v1722 = vsel %vm1721, %v1638, %v1552
    %v1723 = vstv %s1562
    %vm1724 = vcmp.lt.s32.totalorder %v1723, %v484
    %v1725 = vsel %vm1724, 1, 0
    %1726 = vset.pattern.permute.xlu0 0
    %1727 = vperm.xlu0 %1726, %v1725
    %v1728 = vpop.permute.xlu0 %1727
    %vm1729 = vcmp.eq.s32.totalorder %v1728, 1
    %v1730 = vsel %vm1729, %v1714, %v1560
    %s1731 = sadd.s32 %s495, 7
    %s1732 = scalar_lea.vmem [#allocation2], 56
    %v1733 = vld [vmem:[%s1732] sm:$0xff]
    %v1734 = vpack.c.bf16 %v1722, %v1722
    %1736 = vrot.lane.b32.xlu0 %v1734, 96
    %v1737 = vpop.permute.xlu0 %1736
    %v1739 = vsel %vm515, %v1737, 0
    %1741 = vmatprep.subr.bf16.mxu0 0
    %1742 = vmatpush1.bf16.msra.mxu0 %v511
    %1743 = vmatprep.subr.bf16.mxu0 0
    %1744 = vmatpush1.bf16.msra.mxu0 %v512
    %1745 = vmatprep.subr.bf16.mxu0 0
    %1746 = vmatpush1.bf16.msra.mxu0 0
    %1747 = vmatprep.subr.bf16.mxu0 0
    %1748 = vmatpush1.bf16.msra.mxu0 0
    %1749 = vmatprep.subr.bf16.mxu0 0
    %1750 = vmatpush1.bf16.msra.mxu0 0
    %1751 = vmatprep.subr.bf16.mxu0 0
    %1752 = vmatpush1.bf16.msra.mxu0 0
    %1753 = vmatprep.subr.bf16.mxu0 0
    %1754 = vmatpush1.bf16.msra.mxu0 0
    %1755 = vmatprep.subr.bf16.mxu0 0
    %1756 = vmatpush1.bf16.msra.mxu0 0
    %1757 = vmatprep.subr.bf16.mxu0 0
    %1758 = vmatpush1.bf16.msra.mxu0 0
    %1759 = vmatprep.subr.bf16.mxu0 0
    %1760 = vmatpush1.bf16.msra.mxu0 0
    %1761 = vmatprep.subr.bf16.mxu0 0
    %1762 = vmatpush1.bf16.msra.mxu0 0
    %1763 = vmatprep.subr.bf16.mxu0 0
    %1764 = vmatpush1.bf16.msra.mxu0 0
    %1765 = vmatprep.subr.bf16.mxu0 0
    %1766 = vmatpush1.bf16.msra.mxu0 0
    %1767 = vmatprep.subr.bf16.mxu0 0
    %1768 = vmatpush1.bf16.msra.mxu0 0
    %1769 = vmatprep.subr.bf16.mxu0 0
    %1770 = vmatpush1.bf16.msra.mxu0 0
    %1771 = vmatprep.subr.bf16.mxu0 0
    %1772 = vmatpush1.bf16.msra.mxu0 0
    %1773 = vmatprep.mubr.bf16.mxu0 0
    %1774 = vmatmul.mubr.bf16.gmra.mrb[0].mxu0 %v1739
    %v1775 = vpop.f32.mrb[0].mxu0
    %v1776 = vadd.f32 0.0, %v1775
    %v1777 = vpop.f32.mrb[0].mxu0
    %v1778 = vpop.f32.mrb[0].mxu0
    %v1779 = vpop.f32.mrb[0].mxu0
    %1780 = vdwg.mxu0
    %v1781 = vadd.f32 %v1733, %v1776
    %v1782 = vxor.u32 %v1781, 2147483648
    %v1783 = vmul.f32 %v1782, 1.442695
    %v1784 = vpow.pop %v1783
    %v1785 = vadd.f32 %v1784, 1.0
    %v1786 = vrcp.pop %v1785
    %v1787 = vmul.f32 1.0, %v1786
    %v1788 = vadd.f32 %v1776, %v572
    %1790 = vrot.lane.b32.xlu0 %v1788, 64
    %v1791 = vpop.permute.xlu0 %1790
    %v1793 = vmul.f32 %v1787, %v1791
    %1795 = vrot.lane.b32.xlu0 %v1793, 64
    %v1796 = vpop.permute.xlu0 %1795
    %v1798 = vadd.f32 %v1733, %v1796
    %v1799 = vtanh.pop %v1798
    %v1800 = vsub.f32 1.0, %v1787
    %1802 = vrot.lane.b32.xlu0 %v1799, 96
    %v1803 = vpop.permute.xlu0 %1802
    %v1805 = vmul.f32 %v1800, %v1803
    %v1806 = vmul.f32 %v1787, %v1722
    %v1807 = vadd.f32 %v1805, %v1806
    %v1808 = vld [vmem:[#allocation3] sm:$0xff]
    %v1809 = vpack.c.bf16 %v1730, %v1730
    %1811 = vrot.lane.b32.xlu0 %v1809, 96
    %v1812 = vpop.permute.xlu0 %1811
    %v1814 = vsel %vm515, %v1812, 0
    %1816 = vmatprep.subr.bf16.mxu0 0
    %1817 = vmatpush1.bf16.msra.mxu0 %v609
    %1818 = vmatprep.subr.bf16.mxu0 0
    %1819 = vmatpush1.bf16.msra.mxu0 %v610
    %1820 = vmatprep.subr.bf16.mxu0 0
    %1821 = vmatpush1.bf16.msra.mxu0 0
    %1822 = vmatprep.subr.bf16.mxu0 0
    %1823 = vmatpush1.bf16.msra.mxu0 0
    %1824 = vmatprep.subr.bf16.mxu0 0
    %1825 = vmatpush1.bf16.msra.mxu0 0
    %1826 = vmatprep.subr.bf16.mxu0 0
    %1827 = vmatpush1.bf16.msra.mxu0 0
    %1828 = vmatprep.subr.bf16.mxu0 0
    %1829 = vmatpush1.bf16.msra.mxu0 0
    %1830 = vmatprep.subr.bf16.mxu0 0
    %1831 = vmatpush1.bf16.msra.mxu0 0
    %1832 = vmatprep.subr.bf16.mxu0 0
    %1833 = vmatpush1.bf16.msra.mxu0 0
    %1834 = vmatprep.subr.bf16.mxu0 0
    %1835 = vmatpush1.bf16.msra.mxu0 0
    %1836 = vmatprep.subr.bf16.mxu0 0
    %1837 = vmatpush1.bf16.msra.mxu0 0
    %1838 = vmatprep.subr.bf16.mxu0 0
    %1839 = vmatpush1.bf16.msra.mxu0 0
    %1840 = vmatprep.subr.bf16.mxu0 0
    %1841 = vmatpush1.bf16.msra.mxu0 0
    %1842 = vmatprep.subr.bf16.mxu0 0
    %1843 = vmatpush1.bf16.msra.mxu0 0
    %1844 = vmatprep.subr.bf16.mxu0 0
    %1845 = vmatpush1.bf16.msra.mxu0 0
    %1846 = vmatprep.subr.bf16.mxu0 0
    %1847 = vmatpush1.bf16.msra.mxu0 0
    %1848 = vmatprep.mubr.bf16.mxu0 0
    %1849 = vmatmul.mubr.bf16.gmra.mrb[0].mxu0 %v1814
    %v1850 = vpop.f32.mrb[0].mxu0
    %v1851 = vadd.f32 0.0, %v1850
    %v1852 = vpop.f32.mrb[0].mxu0
    %v1853 = vpop.f32.mrb[0].mxu0
    %v1854 = vpop.f32.mrb[0].mxu0
    %1855 = vdwg.mxu0
    %v1856 = vadd.f32 %v1808, %v1851
    %v1857 = vxor.u32 %v1856, 2147483648
    %v1858 = vmul.f32 %v1857, 1.442695
    %v1859 = vpow.pop %v1858
    %v1860 = vadd.f32 %v1859, 1.0
    %v1861 = vrcp.pop %v1860
    %v1862 = vmul.f32 1.0, %v1861
    %v1863 = vadd.f32 %v1851, %v669
    %1865 = vrot.lane.b32.xlu0 %v1863, 64
    %v1866 = vpop.permute.xlu0 %1865
    %v1868 = vmul.f32 %v1862, %v1866
    %1870 = vrot.lane.b32.xlu0 %v1868, 64
    %v1871 = vpop.permute.xlu0 %1870
    %v1873 = vadd.f32 %v1808, %v1871
    %v1874 = vtanh.pop %v1873
    %v1875 = vsub.f32 1.0, %v1862
    %1877 = vrot.lane.b32.xlu0 %v1874, 96
    %v1878 = vpop.permute.xlu0 %1877
    %v1880 = vmul.f32 %v1875, %v1878
    %v1881 = vmul.f32 %v1862, %v1730
    %v1882 = vadd.f32 %v1880, %v1881
    %v1883 = vstv %s1731
    %vm1884 = vcmp.lt.s32.totalorder %v1883, %v484
    %v1885 = vsel %vm1884, 1, 0
    %1886 = vset.pattern.permute.xlu0 0
    %1887 = vperm.xlu0 %1886, %v1885
    %v1888 = vpop.permute.xlu0 %1887
    %vm1889 = vcmp.eq.s32.totalorder %v1888, 1
    %v1890 = vsel %vm1889, %v1807, %v1722
    %v1891 = vstv %s497
    %vm1892 = vcmp.lt.s32.totalorder %v1891, %v484
    %v1893 = vsel %vm1892, 1, 0
    %1894 = vset.pattern.permute.xlu0 0
    %1895 = vperm.xlu0 %1894, %v1893
    %v1896 = vpop.permute.xlu0 %1895
    %vm1897 = vcmp.eq.s32.totalorder %v1896, 1
    %v1898 = vsel %vm1897, %v1882, %v1730
    %1900 = vrot.lane.b32.xlu0 %v1890, 96
    %v1901 = vpop.permute.xlu0 %1900
    %1903 = vst.msk [vmem:[#allocation4] sm:$0xff] %vm515, %v1901
    %1905 = vrot.lane.b32.xlu0 %v1898, 96
    %v1906 = vpop.permute.xlu0 %1905
    %1908 = vst.msk [vmem:[#allocation5] sm:$0xff] %vm515, %v1906
    // Predicated region
    $region138: #{tpu_custom_call.1} parent=1 // pred_check
      %p1909 = pneg %p237
    $region139: #{tpu_custom_call.1} parent=1 // pred_check_branch
      %1911 = sbr.rel (%p1909) target = $region141
    $region140: #{tpu_custom_call.1} parent=1 // pred_region
      %v1912 = vld [vmem:[%s13] sm:$0xff]
      %v1913 = vld [vmem:[%s13 + $0x8] sm:$0xff]
      %v1914 = vld [vmem:[%s13 + $0x10] sm:$0xff]
      %v1915 = vld [vmem:[%s13 + $0x18] sm:$0xff]
      %v1916 = vld [vmem:[#allocation24] sm:$0xff]
      %v1917 = vld [vmem:[#allocation24 + $0x8] sm:$0xff]
      %v1918 = vld [vmem:[#allocation24 + $0x10] sm:$0xff]
      %v1919 = vld [vmem:[#allocation24 + $0x18] sm:$0xff]
      %v1920 = vsel %vm515, %v1906, 0
      %1922 = vmatprep.subr.mxu0 0.0
      %1923 = vmatpush1.msra.mxu0 %v1916
      %1924 = vmatprep.subr.mxu0 0.0
      %1925 = vmatpush1.msra.mxu0 %v1917
      %1926 = vmatprep.subr.mxu0 0.0
      %1927 = vmatpush1.msra.mxu0 %v1918
      %1928 = vmatprep.subr.mxu0 0.0
      %1929 = vmatpush1.msra.mxu0 %v1919
      %1930 = vmatprep.subr.mxu0 0.0
      %1931 = vmatpush1.msra.mxu0 0.0
      %1932 = vmatprep.subr.mxu0 0.0
      %1933 = vmatpush1.msra.mxu0 0.0
      %1934 = vmatprep.subr.mxu0 0.0
      %1935 = vmatpush1.msra.mxu0 0.0
      %1936 = vmatprep.subr.mxu0 0.0
      %1937 = vmatpush1.msra.mxu0 0.0
      %1938 = vmatprep.subr.mxu0 0.0
      %1939 = vmatpush1.msra.mxu0 0.0
      %1940 = vmatprep.subr.mxu0 0.0
      %1941 = vmatpush1.msra.mxu0 0.0
      %1942 = vmatprep.subr.mxu0 0.0
      %1943 = vmatpush1.msra.mxu0 0.0
      %1944 = vmatprep.subr.mxu0 0.0
      %1945 = vmatpush1.msra.mxu0 0.0
      %1946 = vmatprep.subr.mxu0 0.0
      %1947 = vmatpush1.msra.mxu0 0.0
      %1948 = vmatprep.subr.mxu0 0.0
      %1949 = vmatpush1.msra.mxu0 0.0
      %1950 = vmatprep.subr.mxu0 0.0
      %1951 = vmatpush1.msra.mxu0 0.0
      %1952 = vmatprep.subr.mxu0 0.0
      %1953 = vmatpush1.msra.mxu0 0.0
      %1954 = vmatprep.subr.mxu0 0.0
      %1955 = vmatpush1.msra.mxu0 0.0
      %1956 = vmatprep.subr.mxu0 0.0
      %1957 = vmatpush1.msra.mxu0 0.0
      %1958 = vmatprep.subr.mxu0 0.0
      %1959 = vmatpush1.msra.mxu0 0.0
      %1960 = vmatprep.subr.mxu0 0.0
      %1961 = vmatpush1.msra.mxu0 0.0
      %1962 = vmatprep.subr.mxu0 0.0
      %1963 = vmatpush1.msra.mxu0 0.0
      %1964 = vmatprep.subr.mxu0 0.0
      %1965 = vmatpush1.msra.mxu0 0.0
      %1966 = vmatprep.subr.mxu0 0.0
      %1967 = vmatpush1.msra.mxu0 0.0
      %1968 = vmatprep.subr.mxu0 0.0
      %1969 = vmatpush1.msra.mxu0 0.0
      %1970 = vmatprep.subr.mxu0 0.0
      %1971 = vmatpush1.msra.mxu0 0.0
      %1972 = vmatprep.subr.mxu0 0.0
      %1973 = vmatpush1.msra.mxu0 0.0
      %1974 = vmatprep.subr.mxu0 0.0
      %1975 = vmatpush1.msra.mxu0 0.0
      %1976 = vmatprep.subr.mxu0 0.0
      %1977 = vmatpush1.msra.mxu0 0.0
      %1978 = vmatprep.subr.mxu0 0.0
      %1979 = vmatpush1.msra.mxu0 0.0
      %1980 = vmatprep.subr.mxu0 0.0
      %1981 = vmatpush1.msra.mxu0 0.0
      %1982 = vmatprep.subr.mxu0 0.0
      %1983 = vmatpush1.msra.mxu0 0.0
      %1984 = vmatprep.subr.mxu0 0.0
      %1985 = vmatpush1.msra.mxu0 0.0
      %1986 = vmatprep.mubr.f32.mxu0 0.0
      %1987 = vmatmul.mubr.f32.gmra.mrb[0].mxu0 %v1920
      %v1988 = vpop.f32.mrb[0].mxu0
      %v1989 = vadd.f32 0.0, %v1988
      %v1990 = vpop.f32.mrb[0].mxu0
      %1991 = vdwg.mxu0
      %v1992 = vsel %vm515, %v1901, 0
      %1994 = vmatprep.subr.mxu0 0.0
      %1995 = vmatpush1.msra.mxu0 %v1912
      %1996 = vmatprep.subr.mxu0 0.0
      %1997 = vmatpush1.msra.mxu0 %v1913
      %1998 = vmatprep.subr.mxu0 0.0
      %1999 = vmatpush1.msra.mxu0 %v1914
      %2000 = vmatprep.subr.mxu0 0.0
      %2001 = vmatpush1.msra.mxu0 %v1915
      %2002 = vmatprep.subr.mxu0 0.0
      %2003 = vmatpush1.msra.mxu0 0.0
      %2004 = vmatprep.subr.mxu0 0.0
      %2005 = vmatpush1.msra.mxu0 0.0
      %2006 = vmatprep.subr.mxu0 0.0
      %2007 = vmatpush1.msra.mxu0 0.0
      %2008 = vmatprep.subr.mxu0 0.0
      %2009 = vmatpush1.msra.mxu0 0.0
      %2010 = vmatprep.subr.mxu0 0.0
      %2011 = vmatpush1.msra.mxu0 0.0
      %2012 = vmatprep.subr.mxu0 0.0
      %2013 = vmatpush1.msra.mxu0 0.0
      %2014 = vmatprep.subr.mxu0 0.0
      %2015 = vmatpush1.msra.mxu0 0.0
      %2016 = vmatprep.subr.mxu0 0.0
      %2017 = vmatpush1.msra.mxu0 0.0
      %2018 = vmatprep.subr.mxu0 0.0
      %2019 = vmatpush1.msra.mxu0 0.0
      %2020 = vmatprep.subr.mxu0 0.0
      %2021 = vmatpush1.msra.mxu0 0.0
      %2022 = vmatprep.subr.mxu0 0.0
      %2023 = vmatpush1.msra.mxu0 0.0
      %2024 = vmatprep.subr.mxu0 0.0
      %2025 = vmatpush1.msra.mxu0 0.0
      %2026 = vmatprep.subr.mxu0 0.0
      %2027 = vmatpush1.msra.mxu0 0.0
      %2028 = vmatprep.subr.mxu0 0.0
      %2029 = vmatpush1.msra.mxu0 0.0
      %2030 = vmatprep.subr.mxu0 0.0
      %2031 = vmatpush1.msra.mxu0 0.0
      %2032 = vmatprep.subr.mxu0 0.0
      %2033 = vmatpush1.msra.mxu0 0.0
      %2034 = vmatprep.subr.mxu0 0.0
      %2035 = vmatpush1.msra.mxu0 0.0
      %2036 = vmatprep.subr.mxu0 0.0
      %2037 = vmatpush1.msra.mxu0 0.0
      %2038 = vmatprep.subr.mxu0 0.0
      %2039 = vmatpush1.msra.mxu0 0.0
      %2040 = vmatprep.subr.mxu0 0.0
      %2041 = vmatpush1.msra.mxu0 0.0
      %2042 = vmatprep.subr.mxu0 0.0
      %2043 = vmatpush1.msra.mxu0 0.0
      %2044 = vmatprep.subr.mxu0 0.0
      %2045 = vmatpush1.msra.mxu0 0.0
      %2046 = vmatprep.subr.mxu0 0.0
      %2047 = vmatpush1.msra.mxu0 0.0
      %2048 = vmatprep.subr.mxu0 0.0
      %2049 = vmatpush1.msra.mxu0 0.0
      %2050 = vmatprep.subr.mxu0 0.0
      %2051 = vmatpush1.msra.mxu0 0.0
      %2052 = vmatprep.subr.mxu0 0.0
      %2053 = vmatpush1.msra.mxu0 0.0
      %2054 = vmatprep.subr.mxu0 0.0
      %2055 = vmatpush1.msra.mxu0 0.0
      %2056 = vmatprep.subr.mxu0 0.0
      %2057 = vmatpush1.msra.mxu0 0.0
      %2058 = vmatprep.mubr.f32.mxu0 0.0
      %2059 = vmatmul.mubr.f32.gmra.mrb[0].mxu0 %v1992
      %v2060 = vpop.f32.mrb[0].mxu0
      %v2061 = vadd.f32 %v1989, %v2060
      %v2062 = vpop.f32.mrb[0].mxu0
      %2063 = vdwg.mxu0
      %v2064 = vld [vmem:[#allocation26] sm:$0x1]
      %v2066 = vlaneseq
      %v2067 = vshrl.u32 %v2066, 7
      %v2068 = vsub.s32 0, %v2067
      %v2069 = vrot.slane %v2064, %v2068
      %v2071 = vadd.f32 %v2061, %v2069
      %v2072 = vsel %vm515, %v2071, 0.0
      %2073 = vadd.xlane.f32.xlu0 %v2072
      %v2074 = vpop.xlane.xlu0 %2073
      %v2075 = vrcp.pop 32.0
      %v2076 = vmul.f32 %v2074, %v2075
      %v2077 = vsub.f32 %v2071, %v2076
      %v2078 = vmul.f32 %v2077, %v2077
      %v2079 = vsel %vm515, %v2078, 0.0
      %2080 = vadd.xlane.f32.xlu0 %v2079
      %v2081 = vpop.xlane.xlu0 %2080
      %v2082 = vmul.f32 %v2081, %v2075
      %v2083 = vadd.f32 %v2082, 1e-05
      %v2084 = vrsqrt.pop %v2083
      %v2085 = vmul.f32 %v2077, %v2084
      %v2086 = vld [vmem:[%s16] sm:$0x1]
      %v2088 = vlaneseq
      %v2089 = vshrl.u32 %v2088, 7
      %v2090 = vsub.s32 0, %v2089
      %v2091 = vrot.slane %v2086, %v2090
      %v2093 = vmul.f32 %v2085, %v2091
      %v2094 = vld [vmem:[%s17] sm:$0x1]
      %v2096 = vlaneseq
      %v2097 = vshrl.u32 %v2096, 7
      %v2098 = vsub.s32 0, %v2097
      %v2099 = vrot.slane %v2094, %v2098
      %v2101 = vadd.f32 %v2093, %v2099
      %vm2102 = vcmp.gt.f32.partialorder %v2101, 0.0
      %v2103 = vmul.f32 %v2101, 0.2
      %v2104 = vsel %vm2102, %v2101, %v2103
      %v2105 = vld [vmem:[%s18] sm:$0xff]
      %v2106 = vld [vmem:[%s18 + $0x8] sm:$0xff]
      %v2107 = vld [vmem:[%s18 + $0x10] sm:$0xff]
      %v2108 = vld [vmem:[%s18 + $0x18] sm:$0xff]
      %v2109 = vld [vmem:[%s19] sm:$0x1]
      %v2111 = vlaneseq
      %v2112 = vshrl.u32 %v2111, 7
      %v2113 = vsub.s32 0, %v2112
      %v2114 = vrot.slane %v2109, %v2113
      %v2117 = vsel %vm515, %v2104, 0
      %2119 = vmatprep.subr.mxu0 0.0
      %2120 = vmatpush1.msra.mxu0 %v2105
      %2121 = vmatprep.subr.mxu0 0.0
      %2122 = vmatpush1.msra.mxu0 %v2106
      %2123 = vmatprep.subr.mxu0 0.0
      %2124 = vmatpush1.msra.mxu0 %v2107
      %2125 = vmatprep.subr.mxu0 0.0
      %2126 = vmatpush1.msra.mxu0 %v2108
      %2127 = vmatprep.subr.mxu0 0.0
      %2128 = vmatpush1.msra.mxu0 0.0
      %2129 = vmatprep.subr.mxu0 0.0
      %2130 = vmatpush1.msra.mxu0 0.0
      %2131 = vmatprep.subr.mxu0 0.0
      %2132 = vmatpush1.msra.mxu0 0.0
      %2133 = vmatprep.subr.mxu0 0.0
      %2134 = vmatpush1.msra.mxu0 0.0
      %2135 = vmatprep.subr.mxu0 0.0
      %2136 = vmatpush1.msra.mxu0 0.0
      %2137 = vmatprep.subr.mxu0 0.0
      %2138 = vmatpush1.msra.mxu0 0.0
      %2139 = vmatprep.subr.mxu0 0.0
      %2140 = vmatpush1.msra.mxu0 0.0
      %2141 = vmatprep.subr.mxu0 0.0
      %2142 = vmatpush1.msra.mxu0 0.0
      %2143 = vmatprep.subr.mxu0 0.0
      %2144 = vmatpush1.msra.mxu0 0.0
      %2145 = vmatprep.subr.mxu0 0.0
      %2146 = vmatpush1.msra.mxu0 0.0
      %2147 = vmatprep.subr.mxu0 0.0
      %2148 = vmatpush1.msra.mxu0 0.0
      %2149 = vmatprep.subr.mxu0 0.0
      %2150 = vmatpush1.msra.mxu0 0.0
      %2151 = vmatprep.subr.mxu0 0.0
      %2152 = vmatpush1.msra.mxu0 0.0
      %2153 = vmatprep.subr.mxu0 0.0
      %2154 = vmatpush1.msra.mxu0 0.0
      %2155 = vmatprep.subr.mxu0 0.0
      %2156 = vmatpush1.msra.mxu0 0.0
      %2157 = vmatprep.subr.mxu0 0.0
      %2158 = vmatpush1.msra.mxu0 0.0
      %2159 = vmatprep.subr.mxu0 0.0
      %2160 = vmatpush1.msra.mxu0 0.0
      %2161 = vmatprep.subr.mxu0 0.0
      %2162 = vmatpush1.msra.mxu0 0.0
      %2163 = vmatprep.subr.mxu0 0.0
      %2164 = vmatpush1.msra.mxu0 0.0
      %2165 = vmatprep.subr.mxu0 0.0
      %2166 = vmatpush1.msra.mxu0 0.0
      %2167 = vmatprep.subr.mxu0 0.0
      %2168 = vmatpush1.msra.mxu0 0.0
      %2169 = vmatprep.subr.mxu0 0.0
      %2170 = vmatpush1.msra.mxu0 0.0
      %2171 = vmatprep.subr.mxu0 0.0
      %2172 = vmatpush1.msra.mxu0 0.0
      %2173 = vmatprep.subr.mxu0 0.0
      %2174 = vmatpush1.msra.mxu0 0.0
      %2175 = vmatprep.subr.mxu0 0.0
      %2176 = vmatpush1.msra.mxu0 0.0
      %2177 = vmatprep.subr.mxu0 0.0
      %2178 = vmatpush1.msra.mxu0 0.0
      %2179 = vmatprep.subr.mxu0 0.0
      %2180 = vmatpush1.msra.mxu0 0.0
      %2181 = vmatprep.subr.mxu0 0.0
      %2182 = vmatpush1.msra.mxu0 0.0
      %2183 = vmatprep.mubr.f32.mxu0 0.0
      %2184 = vmatmul.mubr.f32.gmra.mrb[0].mxu0 %v2117
      %v2185 = vpop.f32.mrb[0].mxu0
      %v2186 = vadd.f32 %v2114, %v2185
      %v2187 = vpop.f32.mrb[0].mxu0
      %2188 = vdwg.mxu0
      %2189 = vst.msk [vmem:[#allocation27] sm:$0xff] %vm515, %v2186
    $region141: #{tpu_custom_call.1} parent=1 // pred_fallthru
      _
    // Predicated region
    $region142: #{tpu_custom_call.1} parent=1 // pred_check
      _
    $region143: #{tpu_custom_call.1} parent=1 // pred_check_branch
      %2191 = sbr.rel (0) target = $region145
    $region144: #{tpu_custom_call.1} parent=1 // pred_region
      %s2193 = ssub.s32 128, 128
      %2194 = vsyncadd [#allocation8], %s2193
      %s2196 = sshll.u32 [#allocation27], 4
      %s2197 = int_to_ptr.vmem [resolvable:$true] %s2196
      %2199 = dma.vmem_to_hbm [thread:$0]  %s2197, 128, %s20, [#allocation8]
    $region145: #{tpu_custom_call.1} parent=1 // pred_fallthru
      _
    // Predicated region
    $region146: #{tpu_custom_call.1} parent=1 // pred_check
      _
    $region147: #{tpu_custom_call.1} parent=1 // pred_check_branch
      %2201 = sbr.rel (0) target = $region149
    $region148: #{tpu_custom_call.1} parent=1 // pred_region
      %2202 = dma.done [#allocation8], 128
    $region149: #{tpu_custom_call.1} parent=1 // pred_fallthru
      _
    %2203 = vsyncpa [#allocation7], 1
    %2204 = vsyncpa [#allocation10], 1
    %2205 = vsyncpa [#allocation13], 1
    %2206 = vsyncpa [#allocation16], 1
    %2207 = vsyncpa [#allocation19], 1
    %2208 = vsyncpa [#allocation22], 1
    %2209 = vsyncpa [#allocation25], 1
    %2210 = vsyncpa [#allocation8], 1

</llo_original>
